<compile_context>
chip_gen: v7x
topology: tpu7x:2x2x1
jax: 0.10.0
libtpu: 0.0.40
codegen_flags: <defaults>
</compile_context>

<pallas_src>
import functools

import numpy as np
import jax
import jax.numpy as jnp
from jax import lax
from jax.experimental import pallas as pl
from jax.experimental.pallas import tpu as pltpu

KERNEL_SIZE = 1024
N_ATOMS = 1024
N_LAYERS = 3
LN_EPS = 1e-5
LEAK = 0.2
NA_CHUNK = 256            # logits / argmax streamed in 256-column slices

_DOT = functools.partial(jnp.dot, precision=lax.Precision.HIGHEST,
                         preferred_element_type=jnp.float32)


# --------------------------- Pass 1: heads kernel ---------------------------- #

def heads_kernel(x_ref, W0_ref, Wbd_ref, bh_ref, g_ref, b_ref,
                 aWo_ref, abo_ref, mWo_ref, mbo_ref,
                 idx_ref, amp_ref):
    x = x_ref[...]                                    # (tm, C) f32
    tm, C = x.shape
    C2 = 2 * C

    # Hoisted constants (never rebuilt inside the layer loop).
    col2 = lax.broadcasted_iota(jnp.int32, (tm, C2), 1)
    in_atom = col2 < C                                # atom half of the fused state
    gamma = g_ref[...]                                # (1, 2C) packed [ag | mg]
    beta = b_ref[...]                                 # (1, 2C) packed [ab | mb]
    inv_c = 1.0 / C

    def ln_lrelu(h):
        # LayerNorm over each C-wide half separately.  Masked reductions keep the
        # fused (tm, 2C) slab intact (no lane slicing / concatenation needed).
        sum_a = jnp.sum(jnp.where(in_atom, h, 0.0), axis=-1, keepdims=True)
        sum_m = jnp.sum(jnp.where(in_atom, 0.0, h), axis=-1, keepdims=True)
        mu = jnp.where(in_atom, sum_a, sum_m) * inv_c
        d = h - mu
        d2 = d * d
        var_a = jnp.sum(jnp.where(in_atom, d2, 0.0), axis=-1, keepdims=True)
        var_m = jnp.sum(jnp.where(in_atom, 0.0, d2), axis=-1, keepdims=True)
        var = jnp.where(in_atom, var_a, var_m) * inv_c
        h = d * lax.rsqrt(var + LN_EPS) * gamma + beta
        return jnp.where(h > 0, h, LEAK * h)          # LeakyReLU(0.2)

    # ---- fused hidden stacks: one matmul per layer instead of two ----------
    h = _DOT(x, W0_ref[...]) + bh_ref[0]              # layer 0: shared input x
    h = ln_lrelu(h)
    for i in range(N_LAYERS - 1):                     # layers 1..: block-diagonal W
        h = _DOT(h, Wbd_ref[i]) + bh_ref[i + 1]
        h = ln_lrelu(h)

    # ---- to_amps final Linear (C->1): VPU multiply + lane reduce ------------
    # mWo_ref is a (1, 2C) row, zero-padded over the atom half.
    amps = jnp.sum(h * mWo_ref[...], axis=-1, keepdims=True) + mbo_ref[...]

    # ---- to_atom final Linear (C->N_ATOMS) + argmax, streamed over 256-col
    # chunks with a running (max, first-index) accumulator so the full
    # (tm, N_ATOMS) logits slab is never live.  First-index tie-break matches
    # torch / jnp.argmax.
    best_val = jnp.full((tm, 1), -jnp.inf, jnp.float32)
    best_idx = jnp.zeros((tm, 1), jnp.int32)
    colc = lax.broadcasted_iota(jnp.int32, (tm, NA_CHUNK), 1)
    for c in range(N_ATOMS // NA_CHUNK):
        c0 = c * NA_CHUNK
        lg = _DOT(h, aWo_ref[:, c0:c0 + NA_CHUNK]) + abo_ref[:, c0:c0 + NA_CHUNK]
        cmx = jnp.max(lg, axis=-1, keepdims=True)
        cix = jnp.min(jnp.where(lg == cmx, colc + c0, N_ATOMS),
                      axis=-1, keepdims=True)
        take = cmx > best_val                         # strict > keeps earlier chunk on ties
        best_idx = jnp.where(take, cix, best_idx)
        best_val = jnp.where(take, cmx, best_val)

    idx_ref[...] = best_idx.astype(jnp.int32)
    amp_ref[...] = amps.astype(amp_ref.dtype)


# --------- Pass 2: data-dependent row gather (auto double-buffered) ---------- #

def gather_scale_kernel(idx_ref, amps_ref, row_ref, out_ref):
    # row_ref already holds the dictionary row selected by this step's
    # scalar-prefetched index (data-dependent BlockSpec); Pallas double-buffers
    # the HBM fetch so the next row streams in while this one is scaled/stored.
    i = pl.program_id(0)
    out_ref[...] = row_ref[...] * amps_ref[i]         # (1,1024) * scalar amp


# ------------------------------- Wrapper ------------------------------------ #

def _pick_row_tile(M):
    # Do not split the grid for small problems: tiny tiles only waste MXU padding
    # and per-grid-step overhead (the grid is a serial loop on v5e/v6e).
    if M <= 256:
        return M
    for tm in (256, 128, 64, 32, 16, 8):
        if M % tm == 0:
            return tm
    return M                                          # awkward sizes: single tile


def _pack_params(params):
    (aWh, abh, ag, ab, aWo, abo, mWh, mbh, mg, mb, mWo, mbo, atoms) = params
    C = aWh.shape[-1]
    z = jnp.zeros((C, C), jnp.float32)
    # Layer 0 shares the input x -> horizontal concat; layers 1.. block-diagonal.
    W0 = jnp.concatenate([aWh[0], mWh[0]], axis=-1)                            # (C, 2C)
    Wbd = jnp.stack(
        [jnp.concatenate([jnp.concatenate([aWh[i], z], axis=-1),
                          jnp.concatenate([z, mWh[i]], axis=-1)], axis=0)
         for i in range(1, N_LAYERS)], axis=0)                                 # (L-1, 2C, 2C)
    bh = jnp.concatenate([abh, mbh], axis=-1)                                  # (L, 1, 2C)
    g = jnp.concatenate([ag, mg], axis=-1)                                     # (1, 2C)
    b = jnp.concatenate([ab, mb], axis=-1)                                     # (1, 2C)
    aWo_p = jnp.concatenate([aWo, jnp.zeros((C, N_ATOMS), jnp.float32)], axis=0)   # (2C, NA)
    mWo_p = jnp.concatenate([jnp.zeros((1, C), jnp.float32),
                             mWo.reshape(1, C)], axis=-1)                      # (1, 2C)
    return W0, Wbd, bh, g, b, aWo_p, abo, mWo_p, mbo, atoms


def generator_forward(x, params):
    W0, Wbd, bh, g, b, aWo_p, abo, mWo_p, mbo, atoms = _pack_params(params)
    batch, n_events, C = x.shape
    C2 = 2 * C
    M = batch * n_events
    tm = _pick_row_tile(M)
    assert M % tm == 0
    x2 = x.reshape(M, C).astype(jnp.float32)

    def rep(shape):
        zero = (0,) * len(shape)
        return pl.BlockSpec(shape, lambda i, z=zero: z)

    # ---- pass 1: per-row atom index + amplitude -----------------------------
    idx, amps = pl.pallas_call(
        heads_kernel,
        out_shape=(jax.ShapeDtypeStruct((M, 1), jnp.int32),
                   jax.ShapeDtypeStruct((M, 1), jnp.float32)),
        grid_spec=pltpu.PrefetchScalarGridSpec(
            num_scalar_prefetch=0,
            grid=(M // tm,),
            in_specs=[
                pl.BlockSpec((tm, C), lambda i: (i, 0)),   # x rows
                rep((C, C2)),                              # fused layer-0 weight [aW|mW]
                rep((N_LAYERS - 1, C2, C2)),               # fused block-diagonal weights
                rep((N_LAYERS, 1, C2)),                    # fused hidden biases
                rep((1, C2)), rep((1, C2)),                # fused shared LN gamma, beta
                rep((C2, N_ATOMS)), rep((1, N_ATOMS)),     # to_atom final W (zero-padded), b
                rep((1, C2)), rep((1, 1)),                 # to_amps final W row (zero-padded), b
            ],
            out_specs=[pl.BlockSpec((tm, 1), lambda i: (i, 0)),
                       pl.BlockSpec((tm, 1), lambda i: (i, 0))],
        ),
        compiler_params=pltpu.CompilerParams(
            dimension_semantics=("parallel",)),
    )(x2, W0, Wbd, bh, g, b, aWo_p, abo, mWo_p, mbo)

    # ---- pass 2: gather the selected dictionary rows straight from HBM ------
    # idx / amps are scalar-prefetched into SMEM; the atoms in_spec's index_map
    # reads idx[i] so Pallas DMAs exactly the selected 4 KiB row per step and
    # auto double-buffers it (overlap with the previous step's scale+store).
    out = pl.pallas_call(
        gather_scale_kernel,
        out_shape=jax.ShapeDtypeStruct((M, KERNEL_SIZE), jnp.float32),
        grid_spec=pltpu.PrefetchScalarGridSpec(
            num_scalar_prefetch=2,
            grid=(M,),
            in_specs=[pl.BlockSpec((1, KERNEL_SIZE),
                                   lambda i, idx, amp: (idx[i], 0))],
            out_specs=pl.BlockSpec((1, KERNEL_SIZE),
                                   lambda i, idx, amp: (i, 0)),
        ),
        compiler_params=pltpu.CompilerParams(
            dimension_semantics=("parallel",)),
    )(idx.reshape(M), amps.reshape(M), atoms)

    return out.reshape(batch, -1, KERNEL_SIZE)


# ------------------------- Deterministic parameters -------------------------- #

def init_params(key, C):
    ks = jax.random.split(key, 9)

    def lin(k, fan_in, shape):
        bound = 1.0 / np.sqrt(fan_in)
        return jax.random.uniform(k, shape, jnp.float32, -bound, bound)

    # to_atom stack
    aWh = lin(ks[0], C, (N_LAYERS, C, C))
    abh = lin(ks[1], C, (N_LAYERS, 1, C))
    ag = jnp.ones((1, C), jnp.float32)
    ab = jnp.zeros((1, C), jnp.float32)
    aWo = lin(ks[2], C, (C, N_ATOMS))
    abo = lin(ks[3], C, (1, N_ATOMS))
    # to_amps stack
    mWh = lin(ks[4], C, (N_LAYERS, C, C))
    mbh = lin(ks[5], C, (N_LAYERS, 1, C))
    mg = jnp.ones((1, C), jnp.float32)
    mb = jnp.zeros((1, C), jnp.float32)
    mWo = lin(ks[6], C, (C, 1))
    mbo = lin(ks[7], C, (1, 1))
    # atoms dictionary: uniform(-1, 1) like the nn.Parameter init
    atoms = jax.random.uniform(ks[8], (N_ATOMS, KERNEL_SIZE), jnp.float32, -1.0, 1.0)
    return (aWh, abh, ag, ab, aWo, abo, mWh, mbh, mg, mb, mWo, mbo, atoms)


# --------------------------- Pure-JAX reference ------------------------------ #

def generator_reference(x, params):
    (aWh, abh, ag, ab, aWo, abo,
     mWh, mbh, mg, mb, mWo, mbo, atoms) = params
    batch, n_events, C = x.shape
    h0 = x.reshape(-1, C).astype(jnp.float32)
    dot = functools.partial(jnp.dot, precision=lax.Precision.HIGHEST)

    def stack(h, Wh, bh, g, b):
        for i in range(N_LAYERS):
            h = dot(h, Wh[i]) + bh[i]
            mu = h.mean(-1, keepdims=True)
            var = jnp.square(h - mu).mean(-1, keepdims=True)
            h = (h - mu) / jnp.sqrt(var + LN_EPS) * g + b
            h = jnp.where(h > 0, h, LEAK * h)
        return h

    logits = dot(stack(h0, aWh, abh, ag, ab), aWo) + abo
    amps = dot(stack(h0, mWh, mbh, mg, mb), mWo) + mbo
    dirac = jax.nn.one_hot(jnp.argmax(logits, axis=-1), N_ATOMS, dtype=jnp.float32)
    out = dot(dirac, atoms) * amps
    return out.reshape(batch, -1, KERNEL_SIZE)


# ----------------------------------- Main ------------------------------------ #

if __name__ == "__main__":
    batch, n_events, channels = 2, 8, 32

    key = jax.random.PRNGKey(0)
    kx, kp = jax.random.split(key)
    x = jax.random.normal(kx, (batch, n_events, channels), jnp.float32)
    params = init_params(kp, channels)

    out = jax.block_until_ready(generator_forward(x, params))
    assert out.shape == (batch, n_events, KERNEL_SIZE), out.shape

    ref = jax.block_until_ready(generator_reference(x, params))
    np.testing.assert_allclose(np.asarray(out), np.asarray(ref),
                               rtol=2e-3, atol=2e-3)

    print("KERNEL_OK")
</pallas_src>

<mosaic_0001>
module attributes {stable_mosaic.version = 11 : i64} {
  func.func @heads_kernel(%arg0: i32, %arg1: memref<16x32xf32, #tpu.memory_space<vmem>>, %arg2: memref<32x64xf32, #tpu.memory_space<vmem>>, %arg3: memref<2x64x64xf32, #tpu.memory_space<vmem>>, %arg4: memref<3x1x64xf32, #tpu.memory_space<vmem>>, %arg5: memref<1x64xf32, #tpu.memory_space<vmem>>, %arg6: memref<1x64xf32, #tpu.memory_space<vmem>>, %arg7: memref<64x1024xf32, #tpu.memory_space<vmem>>, %arg8: memref<1x1024xf32, #tpu.memory_space<vmem>>, %arg9: memref<1x64xf32, #tpu.memory_space<vmem>>, %arg10: memref<1x1xf32, #tpu.memory_space<vmem>>, %arg11: memref<16x1xi32, #tpu.memory_space<vmem>>, %arg12: memref<16x1xf32, #tpu.memory_space<vmem>>) attributes {dimension_semantics = [#tpu.dimension_semantics<parallel>], iteration_bounds = array<i64: 1>, scalar_prefetch = 0 : i64, scratch_operands = 0 : i64, tpu.core_type = #tpu.core_type<tc>, window_params = [{transform_indices = @transform_0, window_bounds = array<i64: 16, 32>}, {pipeline_mode = #tpu.pipeline_mode<synchronous>, transform_indices = @transform_1, window_bounds = array<i64: 32, 64>}, {pipeline_mode = #tpu.pipeline_mode<synchronous>, transform_indices = @transform_2, window_bounds = array<i64: 2, 64, 64>}, {pipeline_mode = #tpu.pipeline_mode<synchronous>, transform_indices = @transform_3, window_bounds = array<i64: 3, 1, 64>}, {pipeline_mode = #tpu.pipeline_mode<synchronous>, transform_indices = @transform_4, window_bounds = array<i64: 1, 64>}, {pipeline_mode = #tpu.pipeline_mode<synchronous>, transform_indices = @transform_5, window_bounds = array<i64: 1, 64>}, {pipeline_mode = #tpu.pipeline_mode<synchronous>, transform_indices = @transform_6, window_bounds = array<i64: 64, 1024>}, {pipeline_mode = #tpu.pipeline_mode<synchronous>, transform_indices = @transform_7, window_bounds = array<i64: 1, 1024>}, {pipeline_mode = #tpu.pipeline_mode<synchronous>, transform_indices = @transform_8, window_bounds = array<i64: 1, 64>}, {pipeline_mode = #tpu.pipeline_mode<synchronous>, transform_indices = @transform_9, window_bounds = array<i64: 1, 1>}, {transform_indices = @transform_10, window_bounds = array<i64: 16, 1>}, {transform_indices = @transform_11, window_bounds = array<i64: 16, 1>}]} {
    %c0 = arith.constant 0 : index
    %c0_0 = arith.constant 0 : index
    %0 = vector.load %arg1[%c0, %c0_0] : memref<16x32xf32, #tpu.memory_space<vmem>>, vector<16x32xf32>
    %1 = tpu.iota {dimensions = array<i32: 1>} : vector<16x64xi32>
    %c32_i32 = arith.constant 32 : i32
    %2 = vector.broadcast %c32_i32 : i32 to vector<16x64xi32>
    %3 = arith.cmpi slt, %1, %2 : vector<16x64xi32>
    %c0_1 = arith.constant 0 : index
    %c0_2 = arith.constant 0 : index
    %4 = vector.load %arg5[%c0_1, %c0_2] : memref<1x64xf32, #tpu.memory_space<vmem>>, vector<1x64xf32>
    %c0_3 = arith.constant 0 : index
    %c0_4 = arith.constant 0 : index
    %5 = vector.load %arg6[%c0_3, %c0_4] : memref<1x64xf32, #tpu.memory_space<vmem>>, vector<1x64xf32>
    %c0_5 = arith.constant 0 : index
    %c0_6 = arith.constant 0 : index
    %6 = vector.load %arg2[%c0_5, %c0_6] : memref<32x64xf32, #tpu.memory_space<vmem>>, vector<32x64xf32>
    %cst = arith.constant dense<0.000000e+00> : vector<16x64xf32>
    %7 = tpu.matmul %0, %6, %cst {dimension_numbers = #tpu.dot_dimension_numbers<[1], [0], [0], [1], [0, 0, 1, 1], [], []>, precision = #tpu.contract_precision<fp32>} : vector<16x32xf32>, vector<32x64xf32>, vector<16x64xf32> -> vector<16x64xf32>
    %c0_7 = arith.constant 0 : index
    %c0_8 = arith.constant 0 : index
    %c0_9 = arith.constant 0 : index
    %8 = vector.load %arg4[%c0_7, %c0_8, %c0_9] : memref<3x1x64xf32, #tpu.memory_space<vmem>>, vector<1x1x64xf32>
    %9 = vector.shape_cast %8 : vector<1x1x64xf32> to vector<1x64xf32>
    %10 = vector.broadcast %9 : vector<1x64xf32> to vector<16x64xf32>
    %11 = arith.addf %7, %10 : vector<16x64xf32>
    %cst_10 = arith.constant 0.000000e+00 : f32
    %12 = vector.broadcast %cst_10 : f32 to vector<16x64xf32>
    %13 = arith.select %3, %11, %12 : vector<16x64xi1>, vector<16x64xf32>
    %cst_11 = arith.constant dense<0.000000e+00> : vector<16xf32>
    %14 = vector.multi_reduction <add>, %13, %cst_11 [1] : vector<16x64xf32> to vector<16xf32>
    %15 = vector.shape_cast %14 : vector<16xf32> to vector<16x1xf32>
    %cst_12 = arith.constant 0.000000e+00 : f32
    %16 = vector.broadcast %cst_12 : f32 to vector<16x64xf32>
    %17 = arith.select %3, %16, %11 : vector<16x64xi1>, vector<16x64xf32>
    %cst_13 = arith.constant dense<0.000000e+00> : vector<16xf32>
    %18 = vector.multi_reduction <add>, %17, %cst_13 [1] : vector<16x64xf32> to vector<16xf32>
    %19 = vector.shape_cast %18 : vector<16xf32> to vector<16x1xf32>
    %20 = vector.shape_cast %15 : vector<16x1xf32> to vector<16x1xf32>
    %21 = vector.broadcast %20 : vector<16x1xf32> to vector<16x64xf32>
    %22 = vector.shape_cast %19 : vector<16x1xf32> to vector<16x1xf32>
    %23 = vector.broadcast %22 : vector<16x1xf32> to vector<16x64xf32>
    %24 = arith.select %3, %21, %23 : vector<16x64xi1>, vector<16x64xf32>
    %cst_14 = arith.constant 3.125000e-02 : f32
    %25 = vector.broadcast %cst_14 : f32 to vector<16x64xf32>
    %26 = arith.mulf %24, %25 : vector<16x64xf32>
    %27 = arith.subf %11, %26 : vector<16x64xf32>
    %28 = arith.mulf %27, %27 : vector<16x64xf32>
    %cst_15 = arith.constant 0.000000e+00 : f32
    %29 = vector.broadcast %cst_15 : f32 to vector<16x64xf32>
    %30 = arith.select %3, %28, %29 : vector<16x64xi1>, vector<16x64xf32>
    %cst_16 = arith.constant dense<0.000000e+00> : vector<16xf32>
    %31 = vector.multi_reduction <add>, %30, %cst_16 [1] : vector<16x64xf32> to vector<16xf32>
    %32 = vector.shape_cast %31 : vector<16xf32> to vector<16x1xf32>
    %cst_17 = arith.constant 0.000000e+00 : f32
    %33 = vector.broadcast %cst_17 : f32 to vector<16x64xf32>
    %34 = arith.select %3, %33, %28 : vector<16x64xi1>, vector<16x64xf32>
    %cst_18 = arith.constant dense<0.000000e+00> : vector<16xf32>
    %35 = vector.multi_reduction <add>, %34, %cst_18 [1] : vector<16x64xf32> to vector<16xf32>
    %36 = vector.shape_cast %35 : vector<16xf32> to vector<16x1xf32>
    %37 = vector.shape_cast %32 : vector<16x1xf32> to vector<16x1xf32>
    %38 = vector.broadcast %37 : vector<16x1xf32> to vector<16x64xf32>
    %39 = vector.shape_cast %36 : vector<16x1xf32> to vector<16x1xf32>
    %40 = vector.broadcast %39 : vector<16x1xf32> to vector<16x64xf32>
    %41 = arith.select %3, %38, %40 : vector<16x64xi1>, vector<16x64xf32>
    %cst_19 = arith.constant 3.125000e-02 : f32
    %42 = vector.broadcast %cst_19 : f32 to vector<16x64xf32>
    %43 = arith.mulf %41, %42 : vector<16x64xf32>
    %cst_20 = arith.constant 9.99999974E-6 : f32
    %44 = vector.broadcast %cst_20 : f32 to vector<16x64xf32>
    %45 = arith.addf %43, %44 : vector<16x64xf32>
    %46 = math.rsqrt %45 : vector<16x64xf32>
    %47 = arith.mulf %27, %46 : vector<16x64xf32>
    %48 = vector.broadcast %4 : vector<1x64xf32> to vector<16x64xf32>
    %49 = arith.mulf %47, %48 : vector<16x64xf32>
    %50 = vector.broadcast %5 : vector<1x64xf32> to vector<16x64xf32>
    %51 = arith.addf %49, %50 : vector<16x64xf32>
    %cst_21 = arith.constant 0.000000e+00 : f32
    %52 = vector.broadcast %cst_21 : f32 to vector<16x64xf32>
    %53 = arith.cmpf ogt, %51, %52 : vector<16x64xf32>
    %cst_22 = arith.constant 2.000000e-01 : f32
    %54 = vector.broadcast %cst_22 : f32 to vector<16x64xf32>
    %55 = arith.mulf %54, %51 : vector<16x64xf32>
    %56 = arith.select %53, %51, %55 : vector<16x64xi1>, vector<16x64xf32>
    %c0_23 = arith.constant 0 : index
    %c0_24 = arith.constant 0 : index
    %c0_25 = arith.constant 0 : index
    %57 = vector.load %arg3[%c0_23, %c0_24, %c0_25] : memref<2x64x64xf32, #tpu.memory_space<vmem>>, vector<1x64x64xf32>
    %58 = vector.shape_cast %57 : vector<1x64x64xf32> to vector<64x64xf32>
    %cst_26 = arith.constant dense<0.000000e+00> : vector<16x64xf32>
    %59 = tpu.matmul %56, %58, %cst_26 {dimension_numbers = #tpu.dot_dimension_numbers<[1], [0], [0], [1], [0, 0, 1, 1], [], []>, precision = #tpu.contract_precision<fp32>} : vector<16x64xf32>, vector<64x64xf32>, vector<16x64xf32> -> vector<16x64xf32>
    %c1 = arith.constant 1 : index
    %c0_27 = arith.constant 0 : index
    %c0_28 = arith.constant 0 : index
    %60 = vector.load %arg4[%c1, %c0_27, %c0_28] : memref<3x1x64xf32, #tpu.memory_space<vmem>>, vector<1x1x64xf32>
    %61 = vector.shape_cast %60 : vector<1x1x64xf32> to vector<1x64xf32>
    %62 = vector.broadcast %61 : vector<1x64xf32> to vector<16x64xf32>
    %63 = arith.addf %59, %62 : vector<16x64xf32>
    %cst_29 = arith.constant 0.000000e+00 : f32
    %64 = vector.broadcast %cst_29 : f32 to vector<16x64xf32>
    %65 = arith.select %3, %63, %64 : vector<16x64xi1>, vector<16x64xf32>
    %cst_30 = arith.constant dense<0.000000e+00> : vector<16xf32>
    %66 = vector.multi_reduction <add>, %65, %cst_30 [1] : vector<16x64xf32> to vector<16xf32>
    %67 = vector.shape_cast %66 : vector<16xf32> to vector<16x1xf32>
    %cst_31 = arith.constant 0.000000e+00 : f32
    %68 = vector.broadcast %cst_31 : f32 to vector<16x64xf32>
    %69 = arith.select %3, %68, %63 : vector<16x64xi1>, vector<16x64xf32>
    %cst_32 = arith.constant dense<0.000000e+00> : vector<16xf32>
    %70 = vector.multi_reduction <add>, %69, %cst_32 [1] : vector<16x64xf32> to vector<16xf32>
    %71 = vector.shape_cast %70 : vector<16xf32> to vector<16x1xf32>
    %72 = vector.shape_cast %67 : vector<16x1xf32> to vector<16x1xf32>
    %73 = vector.broadcast %72 : vector<16x1xf32> to vector<16x64xf32>
    %74 = vector.shape_cast %71 : vector<16x1xf32> to vector<16x1xf32>
    %75 = vector.broadcast %74 : vector<16x1xf32> to vector<16x64xf32>
    %76 = arith.select %3, %73, %75 : vector<16x64xi1>, vector<16x64xf32>
    %cst_33 = arith.constant 3.125000e-02 : f32
    %77 = vector.broadcast %cst_33 : f32 to vector<16x64xf32>
    %78 = arith.mulf %76, %77 : vector<16x64xf32>
    %79 = arith.subf %63, %78 : vector<16x64xf32>
    %80 = arith.mulf %79, %79 : vector<16x64xf32>
    %cst_34 = arith.constant 0.000000e+00 : f32
    %81 = vector.broadcast %cst_34 : f32 to vector<16x64xf32>
    %82 = arith.select %3, %80, %81 : vector<16x64xi1>, vector<16x64xf32>
    %cst_35 = arith.constant dense<0.000000e+00> : vector<16xf32>
    %83 = vector.multi_reduction <add>, %82, %cst_35 [1] : vector<16x64xf32> to vector<16xf32>
    %84 = vector.shape_cast %83 : vector<16xf32> to vector<16x1xf32>
    %cst_36 = arith.constant 0.000000e+00 : f32
    %85 = vector.broadcast %cst_36 : f32 to vector<16x64xf32>
    %86 = arith.select %3, %85, %80 : vector<16x64xi1>, vector<16x64xf32>
    %cst_37 = arith.constant dense<0.000000e+00> : vector<16xf32>
    %87 = vector.multi_reduction <add>, %86, %cst_37 [1] : vector<16x64xf32> to vector<16xf32>
    %88 = vector.shape_cast %87 : vector<16xf32> to vector<16x1xf32>
    %89 = vector.shape_cast %84 : vector<16x1xf32> to vector<16x1xf32>
    %90 = vector.broadcast %89 : vector<16x1xf32> to vector<16x64xf32>
    %91 = vector.shape_cast %88 : vector<16x1xf32> to vector<16x1xf32>
    %92 = vector.broadcast %91 : vector<16x1xf32> to vector<16x64xf32>
    %93 = arith.select %3, %90, %92 : vector<16x64xi1>, vector<16x64xf32>
    %cst_38 = arith.constant 3.125000e-02 : f32
    %94 = vector.broadcast %cst_38 : f32 to vector<16x64xf32>
    %95 = arith.mulf %93, %94 : vector<16x64xf32>
    %cst_39 = arith.constant 9.99999974E-6 : f32
    %96 = vector.broadcast %cst_39 : f32 to vector<16x64xf32>
    %97 = arith.addf %95, %96 : vector<16x64xf32>
    %98 = math.rsqrt %97 : vector<16x64xf32>
    %99 = arith.mulf %79, %98 : vector<16x64xf32>
    %100 = vector.broadcast %4 : vector<1x64xf32> to vector<16x64xf32>
    %101 = arith.mulf %99, %100 : vector<16x64xf32>
    %102 = vector.broadcast %5 : vector<1x64xf32> to vector<16x64xf32>
    %103 = arith.addf %101, %102 : vector<16x64xf32>
    %cst_40 = arith.constant 0.000000e+00 : f32
    %104 = vector.broadcast %cst_40 : f32 to vector<16x64xf32>
    %105 = arith.cmpf ogt, %103, %104 : vector<16x64xf32>
    %cst_41 = arith.constant 2.000000e-01 : f32
    %106 = vector.broadcast %cst_41 : f32 to vector<16x64xf32>
    %107 = arith.mulf %106, %103 : vector<16x64xf32>
    %108 = arith.select %105, %103, %107 : vector<16x64xi1>, vector<16x64xf32>
    %c1_42 = arith.constant 1 : index
    %c0_43 = arith.constant 0 : index
    %c0_44 = arith.constant 0 : index
    %109 = vector.load %arg3[%c1_42, %c0_43, %c0_44] : memref<2x64x64xf32, #tpu.memory_space<vmem>>, vector<1x64x64xf32>
    %110 = vector.shape_cast %109 : vector<1x64x64xf32> to vector<64x64xf32>
    %cst_45 = arith.constant dense<0.000000e+00> : vector<16x64xf32>
    %111 = tpu.matmul %108, %110, %cst_45 {dimension_numbers = #tpu.dot_dimension_numbers<[1], [0], [0], [1], [0, 0, 1, 1], [], []>, precision = #tpu.contract_precision<fp32>} : vector<16x64xf32>, vector<64x64xf32>, vector<16x64xf32> -> vector<16x64xf32>
    %c2 = arith.constant 2 : index
    %c0_46 = arith.constant 0 : index
    %c0_47 = arith.constant 0 : index
    %112 = vector.load %arg4[%c2, %c0_46, %c0_47] : memref<3x1x64xf32, #tpu.memory_space<vmem>>, vector<1x1x64xf32>
    %113 = vector.shape_cast %112 : vector<1x1x64xf32> to vector<1x64xf32>
    %114 = vector.broadcast %113 : vector<1x64xf32> to vector<16x64xf32>
    %115 = arith.addf %111, %114 : vector<16x64xf32>
    %cst_48 = arith.constant 0.000000e+00 : f32
    %116 = vector.broadcast %cst_48 : f32 to vector<16x64xf32>
    %117 = arith.select %3, %115, %116 : vector<16x64xi1>, vector<16x64xf32>
    %cst_49 = arith.constant dense<0.000000e+00> : vector<16xf32>
    %118 = vector.multi_reduction <add>, %117, %cst_49 [1] : vector<16x64xf32> to vector<16xf32>
    %119 = vector.shape_cast %118 : vector<16xf32> to vector<16x1xf32>
    %cst_50 = arith.constant 0.000000e+00 : f32
    %120 = vector.broadcast %cst_50 : f32 to vector<16x64xf32>
    %121 = arith.select %3, %120, %115 : vector<16x64xi1>, vector<16x64xf32>
    %cst_51 = arith.constant dense<0.000000e+00> : vector<16xf32>
    %122 = vector.multi_reduction <add>, %121, %cst_51 [1] : vector<16x64xf32> to vector<16xf32>
    %123 = vector.shape_cast %122 : vector<16xf32> to vector<16x1xf32>
    %124 = vector.shape_cast %119 : vector<16x1xf32> to vector<16x1xf32>
    %125 = vector.broadcast %124 : vector<16x1xf32> to vector<16x64xf32>
    %126 = vector.shape_cast %123 : vector<16x1xf32> to vector<16x1xf32>
    %127 = vector.broadcast %126 : vector<16x1xf32> to vector<16x64xf32>
    %128 = arith.select %3, %125, %127 : vector<16x64xi1>, vector<16x64xf32>
    %cst_52 = arith.constant 3.125000e-02 : f32
    %129 = vector.broadcast %cst_52 : f32 to vector<16x64xf32>
    %130 = arith.mulf %128, %129 : vector<16x64xf32>
    %131 = arith.subf %115, %130 : vector<16x64xf32>
    %132 = arith.mulf %131, %131 : vector<16x64xf32>
    %cst_53 = arith.constant 0.000000e+00 : f32
    %133 = vector.broadcast %cst_53 : f32 to vector<16x64xf32>
    %134 = arith.select %3, %132, %133 : vector<16x64xi1>, vector<16x64xf32>
    %cst_54 = arith.constant dense<0.000000e+00> : vector<16xf32>
    %135 = vector.multi_reduction <add>, %134, %cst_54 [1] : vector<16x64xf32> to vector<16xf32>
    %136 = vector.shape_cast %135 : vector<16xf32> to vector<16x1xf32>
    %cst_55 = arith.constant 0.000000e+00 : f32
    %137 = vector.broadcast %cst_55 : f32 to vector<16x64xf32>
    %138 = arith.select %3, %137, %132 : vector<16x64xi1>, vector<16x64xf32>
    %cst_56 = arith.constant dense<0.000000e+00> : vector<16xf32>
    %139 = vector.multi_reduction <add>, %138, %cst_56 [1] : vector<16x64xf32> to vector<16xf32>
    %140 = vector.shape_cast %139 : vector<16xf32> to vector<16x1xf32>
    %141 = vector.shape_cast %136 : vector<16x1xf32> to vector<16x1xf32>
    %142 = vector.broadcast %141 : vector<16x1xf32> to vector<16x64xf32>
    %143 = vector.shape_cast %140 : vector<16x1xf32> to vector<16x1xf32>
    %144 = vector.broadcast %143 : vector<16x1xf32> to vector<16x64xf32>
    %145 = arith.select %3, %142, %144 : vector<16x64xi1>, vector<16x64xf32>
    %cst_57 = arith.constant 3.125000e-02 : f32
    %146 = vector.broadcast %cst_57 : f32 to vector<16x64xf32>
    %147 = arith.mulf %145, %146 : vector<16x64xf32>
    %cst_58 = arith.constant 9.99999974E-6 : f32
    %148 = vector.broadcast %cst_58 : f32 to vector<16x64xf32>
    %149 = arith.addf %147, %148 : vector<16x64xf32>
    %150 = math.rsqrt %149 : vector<16x64xf32>
    %151 = arith.mulf %131, %150 : vector<16x64xf32>
    %152 = vector.broadcast %4 : vector<1x64xf32> to vector<16x64xf32>
    %153 = arith.mulf %151, %152 : vector<16x64xf32>
    %154 = vector.broadcast %5 : vector<1x64xf32> to vector<16x64xf32>
    %155 = arith.addf %153, %154 : vector<16x64xf32>
    %cst_59 = arith.constant 0.000000e+00 : f32
    %156 = vector.broadcast %cst_59 : f32 to vector<16x64xf32>
    %157 = arith.cmpf ogt, %155, %156 : vector<16x64xf32>
    %cst_60 = arith.constant 2.000000e-01 : f32
    %158 = vector.broadcast %cst_60 : f32 to vector<16x64xf32>
    %159 = arith.mulf %158, %155 : vector<16x64xf32>
    %160 = arith.select %157, %155, %159 : vector<16x64xi1>, vector<16x64xf32>
    %c0_61 = arith.constant 0 : index
    %c0_62 = arith.constant 0 : index
    %161 = vector.load %arg9[%c0_61, %c0_62] : memref<1x64xf32, #tpu.memory_space<vmem>>, vector<1x64xf32>
    %162 = vector.broadcast %161 : vector<1x64xf32> to vector<16x64xf32>
    %163 = arith.mulf %160, %162 : vector<16x64xf32>
    %cst_63 = arith.constant dense<0.000000e+00> : vector<16xf32>
    %164 = vector.multi_reduction <add>, %163, %cst_63 [1] : vector<16x64xf32> to vector<16xf32>
    %165 = vector.shape_cast %164 : vector<16xf32> to vector<16x1xf32>
    %c0_64 = arith.constant 0 : index
    %c0_65 = arith.constant 0 : index
    %166 = vector.load %arg10[%c0_64, %c0_65] : memref<1x1xf32, #tpu.memory_space<vmem>>, vector<1x1xf32>
    %167 = vector.broadcast %166 : vector<1x1xf32> to vector<16x1xf32>
    %168 = arith.addf %165, %167 : vector<16x1xf32>
    %cst_66 = arith.constant 0xFF800000 : f32
    %169 = vector.broadcast %cst_66 : f32 to vector<16x1xf32>
    %c0_i32 = arith.constant 0 : i32
    %170 = vector.broadcast %c0_i32 : i32 to vector<16x1xi32>
    %171 = tpu.iota {dimensions = array<i32: 1>} : vector<16x256xi32>
    %c0_67 = arith.constant 0 : index
    %c0_68 = arith.constant 0 : index
    %172 = vector.load %arg7[%c0_67, %c0_68] : memref<64x1024xf32, #tpu.memory_space<vmem>>, vector<64x256xf32>
    %cst_69 = arith.constant dense<0.000000e+00> : vector<16x256xf32>
    %173 = tpu.matmul %160, %172, %cst_69 {dimension_numbers = #tpu.dot_dimension_numbers<[1], [0], [0], [1], [0, 0, 1, 1], [], []>, precision = #tpu.contract_precision<fp32>} : vector<16x64xf32>, vector<64x256xf32>, vector<16x256xf32> -> vector<16x256xf32>
    %c0_70 = arith.constant 0 : index
    %c0_71 = arith.constant 0 : index
    %174 = vector.load %arg8[%c0_70, %c0_71] : memref<1x1024xf32, #tpu.memory_space<vmem>>, vector<1x256xf32>
    %175 = vector.broadcast %174 : vector<1x256xf32> to vector<16x256xf32>
    %176 = arith.addf %173, %175 : vector<16x256xf32>
    %cst_72 = arith.constant dense<0xFF800000> : vector<16xf32>
    %177 = vector.multi_reduction <maximumf>, %176, %cst_72 [1] : vector<16x256xf32> to vector<16xf32>
    %178 = vector.shape_cast %177 : vector<16xf32> to vector<16x1xf32>
    %179 = vector.broadcast %178 : vector<16x1xf32> to vector<16x256xf32>
    %180 = arith.cmpf oeq, %176, %179 : vector<16x256xf32>
    %c0_i32_73 = arith.constant 0 : i32
    %181 = vector.broadcast %c0_i32_73 : i32 to vector<16x256xi32>
    %182 = arith.addi %171, %181 : vector<16x256xi32>
    %c1024_i32 = arith.constant 1024 : i32
    %183 = vector.broadcast %c1024_i32 : i32 to vector<16x256xi32>
    %184 = arith.select %180, %182, %183 : vector<16x256xi1>, vector<16x256xi32>
    %cst_74 = arith.constant dense<2147483647> : vector<16xi32>
    %185 = vector.multi_reduction <minsi>, %184, %cst_74 [1] : vector<16x256xi32> to vector<16xi32>
    %186 = vector.shape_cast %185 : vector<16xi32> to vector<16x1xi32>
    %187 = arith.cmpf ogt, %178, %169 : vector<16x1xf32>
    %188 = arith.select %187, %186, %170 : vector<16x1xi1>, vector<16x1xi32>
    %189 = arith.select %187, %178, %169 : vector<16x1xi1>, vector<16x1xf32>
    %c0_75 = arith.constant 0 : index
    %c256 = arith.constant 256 : index
    %190 = vector.load %arg7[%c0_75, %c256] : memref<64x1024xf32, #tpu.memory_space<vmem>>, vector<64x256xf32>
    %cst_76 = arith.constant dense<0.000000e+00> : vector<16x256xf32>
    %191 = tpu.matmul %160, %190, %cst_76 {dimension_numbers = #tpu.dot_dimension_numbers<[1], [0], [0], [1], [0, 0, 1, 1], [], []>, precision = #tpu.contract_precision<fp32>} : vector<16x64xf32>, vector<64x256xf32>, vector<16x256xf32> -> vector<16x256xf32>
    %c0_77 = arith.constant 0 : index
    %c256_78 = arith.constant 256 : index
    %192 = vector.load %arg8[%c0_77, %c256_78] : memref<1x1024xf32, #tpu.memory_space<vmem>>, vector<1x256xf32>
    %193 = vector.broadcast %192 : vector<1x256xf32> to vector<16x256xf32>
    %194 = arith.addf %191, %193 : vector<16x256xf32>
    %cst_79 = arith.constant dense<0xFF800000> : vector<16xf32>
    %195 = vector.multi_reduction <maximumf>, %194, %cst_79 [1] : vector<16x256xf32> to vector<16xf32>
    %196 = vector.shape_cast %195 : vector<16xf32> to vector<16x1xf32>
    %197 = vector.broadcast %196 : vector<16x1xf32> to vector<16x256xf32>
    %198 = arith.cmpf oeq, %194, %197 : vector<16x256xf32>
    %c256_i32 = arith.constant 256 : i32
    %199 = vector.broadcast %c256_i32 : i32 to vector<16x256xi32>
    %200 = arith.addi %171, %199 : vector<16x256xi32>
    %c1024_i32_80 = arith.constant 1024 : i32
    %201 = vector.broadcast %c1024_i32_80 : i32 to vector<16x256xi32>
    %202 = arith.select %198, %200, %201 : vector<16x256xi1>, vector<16x256xi32>
    %cst_81 = arith.constant dense<2147483647> : vector<16xi32>
    %203 = vector.multi_reduction <minsi>, %202, %cst_81 [1] : vector<16x256xi32> to vector<16xi32>
    %204 = vector.shape_cast %203 : vector<16xi32> to vector<16x1xi32>
    %205 = arith.cmpf ogt, %196, %189 : vector<16x1xf32>
    %206 = arith.select %205, %204, %188 : vector<16x1xi1>, vector<16x1xi32>
    %207 = arith.select %205, %196, %189 : vector<16x1xi1>, vector<16x1xf32>
    %c0_82 = arith.constant 0 : index
    %c512 = arith.constant 512 : index
    %208 = vector.load %arg7[%c0_82, %c512] : memref<64x1024xf32, #tpu.memory_space<vmem>>, vector<64x256xf32>
    %cst_83 = arith.constant dense<0.000000e+00> : vector<16x256xf32>
    %209 = tpu.matmul %160, %208, %cst_83 {dimension_numbers = #tpu.dot_dimension_numbers<[1], [0], [0], [1], [0, 0, 1, 1], [], []>, precision = #tpu.contract_precision<fp32>} : vector<16x64xf32>, vector<64x256xf32>, vector<16x256xf32> -> vector<16x256xf32>
    %c0_84 = arith.constant 0 : index
    %c512_85 = arith.constant 512 : index
    %210 = vector.load %arg8[%c0_84, %c512_85] : memref<1x1024xf32, #tpu.memory_space<vmem>>, vector<1x256xf32>
    %211 = vector.broadcast %210 : vector<1x256xf32> to vector<16x256xf32>
    %212 = arith.addf %209, %211 : vector<16x256xf32>
    %cst_86 = arith.constant dense<0xFF800000> : vector<16xf32>
    %213 = vector.multi_reduction <maximumf>, %212, %cst_86 [1] : vector<16x256xf32> to vector<16xf32>
    %214 = vector.shape_cast %213 : vector<16xf32> to vector<16x1xf32>
    %215 = vector.broadcast %214 : vector<16x1xf32> to vector<16x256xf32>
    %216 = arith.cmpf oeq, %212, %215 : vector<16x256xf32>
    %c512_i32 = arith.constant 512 : i32
    %217 = vector.broadcast %c512_i32 : i32 to vector<16x256xi32>
    %218 = arith.addi %171, %217 : vector<16x256xi32>
    %c1024_i32_87 = arith.constant 1024 : i32
    %219 = vector.broadcast %c1024_i32_87 : i32 to vector<16x256xi32>
    %220 = arith.select %216, %218, %219 : vector<16x256xi1>, vector<16x256xi32>
    %cst_88 = arith.constant dense<2147483647> : vector<16xi32>
    %221 = vector.multi_reduction <minsi>, %220, %cst_88 [1] : vector<16x256xi32> to vector<16xi32>
    %222 = vector.shape_cast %221 : vector<16xi32> to vector<16x1xi32>
    %223 = arith.cmpf ogt, %214, %207 : vector<16x1xf32>
    %224 = arith.select %223, %222, %206 : vector<16x1xi1>, vector<16x1xi32>
    %225 = arith.select %223, %214, %207 : vector<16x1xi1>, vector<16x1xf32>
    %c0_89 = arith.constant 0 : index
    %c768 = arith.constant 768 : index
    %226 = vector.load %arg7[%c0_89, %c768] : memref<64x1024xf32, #tpu.memory_space<vmem>>, vector<64x256xf32>
    %cst_90 = arith.constant dense<0.000000e+00> : vector<16x256xf32>
    %227 = tpu.matmul %160, %226, %cst_90 {dimension_numbers = #tpu.dot_dimension_numbers<[1], [0], [0], [1], [0, 0, 1, 1], [], []>, precision = #tpu.contract_precision<fp32>} : vector<16x64xf32>, vector<64x256xf32>, vector<16x256xf32> -> vector<16x256xf32>
    %c0_91 = arith.constant 0 : index
    %c768_92 = arith.constant 768 : index
    %228 = vector.load %arg8[%c0_91, %c768_92] : memref<1x1024xf32, #tpu.memory_space<vmem>>, vector<1x256xf32>
    %229 = vector.broadcast %228 : vector<1x256xf32> to vector<16x256xf32>
    %230 = arith.addf %227, %229 : vector<16x256xf32>
    %cst_93 = arith.constant dense<0xFF800000> : vector<16xf32>
    %231 = vector.multi_reduction <maximumf>, %230, %cst_93 [1] : vector<16x256xf32> to vector<16xf32>
    %232 = vector.shape_cast %231 : vector<16xf32> to vector<16x1xf32>
    %233 = vector.broadcast %232 : vector<16x1xf32> to vector<16x256xf32>
    %234 = arith.cmpf oeq, %230, %233 : vector<16x256xf32>
    %c768_i32 = arith.constant 768 : i32
    %235 = vector.broadcast %c768_i32 : i32 to vector<16x256xi32>
    %236 = arith.addi %171, %235 : vector<16x256xi32>
    %c1024_i32_94 = arith.constant 1024 : i32
    %237 = vector.broadcast %c1024_i32_94 : i32 to vector<16x256xi32>
    %238 = arith.select %234, %236, %237 : vector<16x256xi1>, vector<16x256xi32>
    %cst_95 = arith.constant dense<2147483647> : vector<16xi32>
    %239 = vector.multi_reduction <minsi>, %238, %cst_95 [1] : vector<16x256xi32> to vector<16xi32>
    %240 = vector.shape_cast %239 : vector<16xi32> to vector<16x1xi32>
    %241 = arith.cmpf ogt, %232, %225 : vector<16x1xf32>
    %242 = arith.select %241, %240, %224 : vector<16x1xi1>, vector<16x1xi32>
    %c0_96 = arith.constant 0 : index
    %c0_97 = arith.constant 0 : index
    %243 = vector.load %arg11[%c0_96, %c0_97] : memref<16x1xi32, #tpu.memory_space<vmem>>, vector<16x1xi32>
    tpu.vector_store %arg11[%c0_96, %c0_97], %242 {strides = array<i32>} : memref<16x1xi32, #tpu.memory_space<vmem>>, vector<16x1xi32>,
    %c0_98 = arith.constant 0 : index
    %c0_99 = arith.constant 0 : index
    %244 = vector.load %arg12[%c0_98, %c0_99] : memref<16x1xf32, #tpu.memory_space<vmem>>, vector<16x1xf32>
    tpu.vector_store %arg12[%c0_98, %c0_99], %168 {strides = array<i32>} : memref<16x1xf32, #tpu.memory_space<vmem>>, vector<16x1xf32>,
    return
  }
  func.func @transform_0(%arg0: i32) -> (i32, i32) {
    %c0_i32 = arith.constant 0 : i32
    %c0_i32_0 = arith.constant 0 : i32
    return %arg0, %c0_i32 : i32, i32
  }
  func.func @transform_1(%arg0: i32) -> (i32, i32) {
    %c0_i32 = arith.constant 0 : i32
    %c0_i32_0 = arith.constant 0 : i32
    %c0_i32_1 = arith.constant 0 : i32
    return %c0_i32, %c0_i32_0 : i32, i32
  }
  func.func @transform_2(%arg0: i32) -> (i32, i32, i32) {
    %c0_i32 = arith.constant 0 : i32
    %c0_i32_0 = arith.constant 0 : i32
    %c0_i32_1 = arith.constant 0 : i32
    %c0_i32_2 = arith.constant 0 : i32
    return %c0_i32, %c0_i32_0, %c0_i32_1 : i32, i32, i32
  }
  func.func @transform_3(%arg0: i32) -> (i32, i32, i32) {
    %c0_i32 = arith.constant 0 : i32
    %c0_i32_0 = arith.constant 0 : i32
    %c0_i32_1 = arith.constant 0 : i32
    %c0_i32_2 = arith.constant 0 : i32
    return %c0_i32, %c0_i32_0, %c0_i32_1 : i32, i32, i32
  }
  func.func @transform_4(%arg0: i32) -> (i32, i32) {
    %c0_i32 = arith.constant 0 : i32
    %c0_i32_0 = arith.constant 0 : i32
    %c0_i32_1 = arith.constant 0 : i32
    return %c0_i32, %c0_i32_0 : i32, i32
  }
  func.func @transform_5(%arg0: i32) -> (i32, i32) {
    %c0_i32 = arith.constant 0 : i32
    %c0_i32_0 = arith.constant 0 : i32
    %c0_i32_1 = arith.constant 0 : i32
    return %c0_i32, %c0_i32_0 : i32, i32
  }
  func.func @transform_6(%arg0: i32) -> (i32, i32) {
    %c0_i32 = arith.constant 0 : i32
    %c0_i32_0 = arith.constant 0 : i32
    %c0_i32_1 = arith.constant 0 : i32
    return %c0_i32, %c0_i32_0 : i32, i32
  }
  func.func @transform_7(%arg0: i32) -> (i32, i32) {
    %c0_i32 = arith.constant 0 : i32
    %c0_i32_0 = arith.constant 0 : i32
    %c0_i32_1 = arith.constant 0 : i32
    return %c0_i32, %c0_i32_0 : i32, i32
  }
  func.func @transform_8(%arg0: i32) -> (i32, i32) {
    %c0_i32 = arith.constant 0 : i32
    %c0_i32_0 = arith.constant 0 : i32
    %c0_i32_1 = arith.constant 0 : i32
    return %c0_i32, %c0_i32_0 : i32, i32
  }
  func.func @transform_9(%arg0: i32) -> (i32, i32) {
    %c0_i32 = arith.constant 0 : i32
    %c0_i32_0 = arith.constant 0 : i32
    %c0_i32_1 = arith.constant 0 : i32
    return %c0_i32, %c0_i32_0 : i32, i32
  }
  func.func @transform_10(%arg0: i32) -> (i32, i32) {
    %c0_i32 = arith.constant 0 : i32
    %c0_i32_0 = arith.constant 0 : i32
    return %arg0, %c0_i32 : i32, i32
  }
  func.func @transform_11(%arg0: i32) -> (i32, i32) {
    %c0_i32 = arith.constant 0 : i32
    %c0_i32_0 = arith.constant 0 : i32
    return %arg0, %c0_i32 : i32, i32
  }
}

</mosaic_0001>

<llo_original>
// kernel: tpu_custom_call.1
$region0: #{tpu_custom_call.1}
  #allocation0 [shape = 'u32[]', space=smem, size = 0x4, offset = 0x4, fixed_abs, tag = 'smem constant byte address 0x4 - core index']
  #allocation1 [shape = 'u32[144,128]{1,0:T(1,128)}', space=vmem, size = 0x12000, scoped, tag = 'internal scratch']
  #allocation2 [shape = 'f32[1,1]{1,0:T(1,128)S(1)}', space=vmem, size = 0x200, scoped, tag = 'scoped memory for tpu_custom_call.1']
  %s0 = inlined_call_operand.hbm [shape: f32[16,32], index: 0, kind: input, shape index: {}]
  %s1 = inlined_call_operand.hbm [shape: f32[32,64], index: 1, kind: input, shape index: {}]
  %s2 = inlined_call_operand.hbm [shape: f32[2,64,64], index: 2, kind: input, shape index: {}]
  %s3 = inlined_call_operand.vmem [shape: f32[3,1,64], index: 3, kind: input, shape index: {}]
  %s4 = inlined_call_operand.vmem [shape: f32[1,64], index: 4, kind: input, shape index: {}]
  %s5 = inlined_call_operand.vmem [shape: f32[1,64], index: 5, kind: input, shape index: {}]
  %s6 = inlined_call_operand.hbm [shape: f32[64,1024], index: 6, kind: input, shape index: {}]
  %s7 = inlined_call_operand.vmem [shape: f32[1,1024], index: 7, kind: input, shape index: {}]
  %s8 = inlined_call_operand.vmem [shape: f32[1,64], index: 8, kind: input, shape index: {}]
  %s9 = inlined_call_operand.<no memory space> [shape: f32[1,1], index: 9, kind: input, shape index: {}]
  %s10 = inlined_call_operand.vmem [shape: s32[16,1], index: 10, kind: output, shape index: {0}]
  %s11 = inlined_call_operand.vmem [shape: f32[16,1], index: 11, kind: output, shape index: {1}]
  %12 = xla_tuple %s10, %s11
  %s13 = sld [smem:[#allocation0]]
  $region74: #{tpu_custom_call.1} parent=0
    _
  %s15 = ssub.s32 1, %s13
  %s16 = scalar_select 0, %s15, %s13
  %v17 = vstv %s9
  %18 = vst [vmem:[#allocation2] sm:$0x1] %v17
  $region1: #{tpu_custom_call.1} parent=0
    #allocation3 [shape = 'u8[8192]{0}', space=vmem, size = 0x2000, scoped, tag = 'input window, operand 0, single buffered']
    #allocation4 [shape = 's32[1]{0}', space=sflag, size = 0x4, scoped, tag = 'scoped memory for tpu_custom_call.1']
    #allocation5 [shape = 'u8[16384]{0}', space=vmem, size = 0x4000, scoped, tag = 'input window, operand 1, single buffered']
    #allocation6 [shape = 's32[1]{0}', space=sflag, size = 0x4, scoped, tag = 'scoped memory for tpu_custom_call.1']
    #allocation7 [shape = 'u8[65536]{0}', space=vmem, size = 0x10000, scoped, tag = 'input window, operand 2, single buffered']
    #allocation8 [shape = 'u8[262144]{0}', space=vmem, size = 0x40000, scoped, tag = 'input window, operand 6, single buffered']
    #allocation9 [shape = 's32[1]{0}', space=sflag, size = 0x4, scoped, tag = 'scoped memory for tpu_custom_call.1']
    %19 = vsyncpa [#allocation4], 0
    %20 = vsyncpa [#allocation6], 0
    %21 = vsyncpa [#allocation9], 0
    // Predicated region
    $region2: #{tpu_custom_call.1} parent=1 // pred_check
      _
    $region3: #{tpu_custom_call.1} parent=1 // pred_check_branch
      %23 = sbr.rel (0) target = $region5
    $region4: #{tpu_custom_call.1} parent=1 // pred_region
      %s25 = ssub.s32 256, 256
      %26 = vsyncadd [#allocation4], %s25
      %s27 = sshll.u32 [#allocation3], 4
      %s28 = int_to_ptr.vmem [resolvable:$true] %s27
      %33 = dma.hbm_to_vmem [thread:$0]  %s0, 256, %s28, [#allocation4], 128, 128, 8
    $region5: #{tpu_custom_call.1} parent=1 // pred_fallthru
      _
    // Predicated region
    $region6: #{tpu_custom_call.1} parent=1 // pred_check
      _
    $region7: #{tpu_custom_call.1} parent=1 // pred_check_branch
      %35 = sbr.rel (0) target = $region9
    $region8: #{tpu_custom_call.1} parent=1 // pred_region
      %s37 = ssub.s32 512, 512
      %38 = vsyncadd [#allocation6], %s37
      %s39 = sshll.u32 [#allocation5], 4
      %s40 = int_to_ptr.vmem [resolvable:$true] %s39
      %45 = dma.hbm_to_vmem [thread:$0]  %s1, 512, %s40, [#allocation6], 128, 128, 8
    $region9: #{tpu_custom_call.1} parent=1 // pred_fallthru
      _
    // Predicated region
    $region10: #{tpu_custom_call.1} parent=1 // pred_check
      _
    $region11: #{tpu_custom_call.1} parent=1 // pred_check_branch
      %47 = sbr.rel (0) target = $region13
    $region12: #{tpu_custom_call.1} parent=1 // pred_region
      %s49 = ssub.s32 2048, 2048
      %50 = vsyncadd [#allocation6], %s49
      %s51 = sshll.u32 [#allocation7], 4
      %s52 = int_to_ptr.vmem [resolvable:$true] %s51
      %57 = dma.hbm_to_vmem [thread:$0]  %s2, 2048, %s52, [#allocation6], 128, 128, 8
    $region13: #{tpu_custom_call.1} parent=1 // pred_fallthru
      _
    // Predicated region
    $region14: #{tpu_custom_call.1} parent=1 // pred_check
      _
    $region15: #{tpu_custom_call.1} parent=1 // pred_check_branch
      %59 = sbr.rel (0) target = $region17
    $region16: #{tpu_custom_call.1} parent=1 // pred_region
      _
    $region17: #{tpu_custom_call.1} parent=1 // pred_fallthru
      _
    // Predicated region
    $region18: #{tpu_custom_call.1} parent=1 // pred_check
      _
    $region19: #{tpu_custom_call.1} parent=1 // pred_check_branch
      %61 = sbr.rel (0) target = $region21
    $region20: #{tpu_custom_call.1} parent=1 // pred_region
      _
    $region21: #{tpu_custom_call.1} parent=1 // pred_fallthru
      _
    // Predicated region
    $region22: #{tpu_custom_call.1} parent=1 // pred_check
      _
    $region23: #{tpu_custom_call.1} parent=1 // pred_check_branch
      %63 = sbr.rel (0) target = $region25
    $region24: #{tpu_custom_call.1} parent=1 // pred_region
      _
    $region25: #{tpu_custom_call.1} parent=1 // pred_fallthru
      _
    // Predicated region
    $region26: #{tpu_custom_call.1} parent=1 // pred_check
      _
    $region27: #{tpu_custom_call.1} parent=1 // pred_check_branch
      %65 = sbr.rel (0) target = $region29
    $region28: #{tpu_custom_call.1} parent=1 // pred_region
      %s67 = ssub.s32 8192, 8192
      %68 = vsyncadd [#allocation9], %s67
      %s69 = sshll.u32 [#allocation8], 4
      %s70 = int_to_ptr.vmem [resolvable:$true] %s69
      %75 = dma.hbm_to_vmem [thread:$0]  %s6, 8192, %s70, [#allocation9], 1024, 1024, 64
    $region29: #{tpu_custom_call.1} parent=1 // pred_fallthru
      _
    // Predicated region
    $region30: #{tpu_custom_call.1} parent=1 // pred_check
      _
    $region31: #{tpu_custom_call.1} parent=1 // pred_check_branch
      %77 = sbr.rel (0) target = $region33
    $region32: #{tpu_custom_call.1} parent=1 // pred_region
      _
    $region33: #{tpu_custom_call.1} parent=1 // pred_fallthru
      _
    // Predicated region
    $region34: #{tpu_custom_call.1} parent=1 // pred_check
      _
    $region35: #{tpu_custom_call.1} parent=1 // pred_check_branch
      %79 = sbr.rel (0) target = $region37
    $region36: #{tpu_custom_call.1} parent=1 // pred_region
      _
    $region37: #{tpu_custom_call.1} parent=1 // pred_fallthru
      _
    // Predicated region
    $region38: #{tpu_custom_call.1} parent=1 // pred_check
      _
    $region39: #{tpu_custom_call.1} parent=1 // pred_check_branch
      %81 = sbr.rel (0) target = $region41
    $region40: #{tpu_custom_call.1} parent=1 // pred_region
      _
    $region41: #{tpu_custom_call.1} parent=1 // pred_fallthru
      _
    // Predicated region
    $region42: #{tpu_custom_call.1} parent=1 // pred_check
      _
    $region43: #{tpu_custom_call.1} parent=1 // pred_check_branch
      %83 = sbr.rel (0) target = $region45
    $region44: #{tpu_custom_call.1} parent=1 // pred_region
      %84 = dma.done [#allocation4], 256
    $region45: #{tpu_custom_call.1} parent=1 // pred_fallthru
      _
    // Predicated region
    $region46: #{tpu_custom_call.1} parent=1 // pred_check
      _
    $region47: #{tpu_custom_call.1} parent=1 // pred_check_branch
      %86 = sbr.rel (0) target = $region49
    $region48: #{tpu_custom_call.1} parent=1 // pred_region
      %87 = dma.done [#allocation6], 512
    $region49: #{tpu_custom_call.1} parent=1 // pred_fallthru
      _
    // Predicated region
    $region50: #{tpu_custom_call.1} parent=1 // pred_check
      _
    $region51: #{tpu_custom_call.1} parent=1 // pred_check_branch
      %89 = sbr.rel (0) target = $region53
    $region52: #{tpu_custom_call.1} parent=1 // pred_region
      %90 = dma.done [#allocation6], 2048
    $region53: #{tpu_custom_call.1} parent=1 // pred_fallthru
      _
    // Predicated region
    $region54: #{tpu_custom_call.1} parent=1 // pred_check
      _
    $region55: #{tpu_custom_call.1} parent=1 // pred_check_branch
      %92 = sbr.rel (0) target = $region57
    $region56: #{tpu_custom_call.1} parent=1 // pred_region
      %93 = dma.done [#allocation9], 8192
    $region57: #{tpu_custom_call.1} parent=1 // pred_fallthru
      _
    %v94 = vld [vmem:[#allocation3] sm:$0xff]
    %v95 = vld [vmem:[#allocation3 + $0x8] sm:$0xff]
    %v96 = vlaneseq
    %v97 = vand.u32 %v96, 127
    %vm98 = vcmp.lt.s32.totalorder %v97, 32
    %v99 = vld [vmem:[%s4] sm:$0x1]
    %v100 = vld [vmem:[%s5] sm:$0x1]
    %v101 = vld [vmem:[#allocation5] sm:$0xff]
    %v102 = vld [vmem:[#allocation5 + $0x8] sm:$0xff]
    %v103 = vld [vmem:[#allocation5 + $0x10] sm:$0xff]
    %v104 = vld [vmem:[#allocation5 + $0x18] sm:$0xff]
    %v105 = vld [vmem:[%s3] sm:$0x1]
    %v107 = vlaneseq
    %v108 = vshrl.u32 %v107, 7
    %v109 = vsub.s32 0, %v108
    %v110 = vrot.slane %v105, %v109
    %vm112 = vcmask 261120
    %v114 = vsel %vm112, %v94, 0
    %v117 = vsel %vm112, %v95, 0
    %119 = vmatprep.subr.mxu0 0.0
    %v120 = vand.u32 %v101, 4294901760
    %121 = vmatpush1.msra.mxu0 %v120
    %122 = vmatprep.subr.mxu0 0.0
    %v123 = vand.u32 %v102, 4294901760
    %124 = vmatpush1.msra.mxu0 %v123
    %125 = vmatprep.subr.mxu0 0.0
    %v126 = vand.u32 %v103, 4294901760
    %127 = vmatpush1.msra.mxu0 %v126
    %128 = vmatprep.subr.mxu0 0.0
    %v129 = vand.u32 %v104, 4294901760
    %130 = vmatpush1.msra.mxu0 %v129
    %131 = vmatprep.subr.mxu0 0.0
    %132 = vmatpush1.msra.mxu0 0.0
    %133 = vmatprep.subr.mxu0 0.0
    %134 = vmatpush1.msra.mxu0 0.0
    %135 = vmatprep.subr.mxu0 0.0
    %136 = vmatpush1.msra.mxu0 0.0
    %137 = vmatprep.subr.mxu0 0.0
    %138 = vmatpush1.msra.mxu0 0.0
    %139 = vmatprep.subr.mxu0 0.0
    %140 = vmatpush1.msra.mxu0 0.0
    %141 = vmatprep.subr.mxu0 0.0
    %142 = vmatpush1.msra.mxu0 0.0
    %143 = vmatprep.subr.mxu0 0.0
    %144 = vmatpush1.msra.mxu0 0.0
    %145 = vmatprep.subr.mxu0 0.0
    %146 = vmatpush1.msra.mxu0 0.0
    %147 = vmatprep.subr.mxu0 0.0
    %148 = vmatpush1.msra.mxu0 0.0
    %149 = vmatprep.subr.mxu0 0.0
    %150 = vmatpush1.msra.mxu0 0.0
    %151 = vmatprep.subr.mxu0 0.0
    %152 = vmatpush1.msra.mxu0 0.0
    %153 = vmatprep.subr.mxu0 0.0
    %154 = vmatpush1.msra.mxu0 0.0
    %155 = vmatprep.subr.mxu0 0.0
    %156 = vmatpush1.msra.mxu0 0.0
    %157 = vmatprep.subr.mxu0 0.0
    %158 = vmatpush1.msra.mxu0 0.0
    %159 = vmatprep.subr.mxu0 0.0
    %160 = vmatpush1.msra.mxu0 0.0
    %161 = vmatprep.subr.mxu0 0.0
    %162 = vmatpush1.msra.mxu0 0.0
    %163 = vmatprep.subr.mxu0 0.0
    %164 = vmatpush1.msra.mxu0 0.0
    %165 = vmatprep.subr.mxu0 0.0
    %166 = vmatpush1.msra.mxu0 0.0
    %167 = vmatprep.subr.mxu0 0.0
    %168 = vmatpush1.msra.mxu0 0.0
    %169 = vmatprep.subr.mxu0 0.0
    %170 = vmatpush1.msra.mxu0 0.0
    %171 = vmatprep.subr.mxu0 0.0
    %172 = vmatpush1.msra.mxu0 0.0
    %173 = vmatprep.subr.mxu0 0.0
    %174 = vmatpush1.msra.mxu0 0.0
    %175 = vmatprep.subr.mxu0 0.0
    %176 = vmatpush1.msra.mxu0 0.0
    %177 = vmatprep.subr.mxu0 0.0
    %178 = vmatpush1.msra.mxu0 0.0
    %179 = vmatprep.subr.mxu0 0.0
    %180 = vmatpush1.msra.mxu0 0.0
    %181 = vmatprep.subr.mxu0 0.0
    %182 = vmatpush1.msra.mxu0 0.0
    %183 = vmatprep.subr.mxu0 0.0
    %184 = vmatpush1.msra.mxu0 0.0
    %185 = vmatprep.subr.mxu0 0.0
    %186 = vmatpush1.msra.mxu0 0.0
    %187 = vmatprep.mubr.f32.mxu0 0.0
    %v188 = vand.u32 %v114, 4294901760
    %v189 = vsub.f32 %v114, %v188
    %v190 = vand.u32 %v189, 4294901760
    %v191 = vsub.f32 %v189, %v190
    %v192 = vand.u32 %v191, 4294901760
    %193 = vmatmul.mubr.f32.gmra.mrb[0].mxu0 %v192
    %v194 = vpop.f32.mrb[0].mxu0
    %v195 = vadd.f32 %v110, %v194
    %v196 = vpop.f32.mrb[0].mxu0
    %197 = vmatprep.mubr.f32.mxu0 0.0
    %v198 = vand.u32 %v117, 4294901760
    %v199 = vsub.f32 %v117, %v198
    %v200 = vand.u32 %v199, 4294901760
    %v201 = vsub.f32 %v199, %v200
    %v202 = vand.u32 %v201, 4294901760
    %203 = vmatmul.mubr.f32.gmra.mrb[0].mxu0 %v202
    %v204 = vpop.f32.mrb[0].mxu0
    %v205 = vadd.f32 %v110, %v204
    %v206 = vpop.f32.mrb[0].mxu0
    %207 = vdwg.mxu0
    %208 = vmatprep.subr.mxu0 0.0
    %v209 = vand.u32 %v101, 4294901760
    %v210 = vsub.f32 %v101, %v209
    %v211 = vand.u32 %v210, 4294901760
    %v212 = vsub.f32 %v210, %v211
    %v213 = vand.u32 %v212, 4294901760
    %214 = vmatpush1.msra.mxu0 %v213
    %215 = vmatprep.subr.mxu0 0.0
    %v216 = vand.u32 %v102, 4294901760
    %v217 = vsub.f32 %v102, %v216
    %v218 = vand.u32 %v217, 4294901760
    %v219 = vsub.f32 %v217, %v218
    %v220 = vand.u32 %v219, 4294901760
    %221 = vmatpush1.msra.mxu0 %v220
    %222 = vmatprep.subr.mxu0 0.0
    %v223 = vand.u32 %v103, 4294901760
    %v224 = vsub.f32 %v103, %v223
    %v225 = vand.u32 %v224, 4294901760
    %v226 = vsub.f32 %v224, %v225
    %v227 = vand.u32 %v226, 4294901760
    %228 = vmatpush1.msra.mxu0 %v227
    %229 = vmatprep.subr.mxu0 0.0
    %v230 = vand.u32 %v104, 4294901760
    %v231 = vsub.f32 %v104, %v230
    %v232 = vand.u32 %v231, 4294901760
    %v233 = vsub.f32 %v231, %v232
    %v234 = vand.u32 %v233, 4294901760
    %235 = vmatpush1.msra.mxu0 %v234
    %236 = vmatprep.subr.mxu0 0.0
    %237 = vmatpush1.msra.mxu0 0.0
    %238 = vmatprep.subr.mxu0 0.0
    %239 = vmatpush1.msra.mxu0 0.0
    %240 = vmatprep.subr.mxu0 0.0
    %241 = vmatpush1.msra.mxu0 0.0
    %242 = vmatprep.subr.mxu0 0.0
    %243 = vmatpush1.msra.mxu0 0.0
    %244 = vmatprep.subr.mxu0 0.0
    %245 = vmatpush1.msra.mxu0 0.0
    %246 = vmatprep.subr.mxu0 0.0
    %247 = vmatpush1.msra.mxu0 0.0
    %248 = vmatprep.subr.mxu0 0.0
    %249 = vmatpush1.msra.mxu0 0.0
    %250 = vmatprep.subr.mxu0 0.0
    %251 = vmatpush1.msra.mxu0 0.0
    %252 = vmatprep.subr.mxu0 0.0
    %253 = vmatpush1.msra.mxu0 0.0
    %254 = vmatprep.subr.mxu0 0.0
    %255 = vmatpush1.msra.mxu0 0.0
    %256 = vmatprep.subr.mxu0 0.0
    %257 = vmatpush1.msra.mxu0 0.0
    %258 = vmatprep.subr.mxu0 0.0
    %259 = vmatpush1.msra.mxu0 0.0
    %260 = vmatprep.subr.mxu0 0.0
    %261 = vmatpush1.msra.mxu0 0.0
    %262 = vmatprep.subr.mxu0 0.0
    %263 = vmatpush1.msra.mxu0 0.0
    %264 = vmatprep.subr.mxu0 0.0
    %265 = vmatpush1.msra.mxu0 0.0
    %266 = vmatprep.subr.mxu0 0.0
    %267 = vmatpush1.msra.mxu0 0.0
    %268 = vmatprep.subr.mxu0 0.0
    %269 = vmatpush1.msra.mxu0 0.0
    %270 = vmatprep.subr.mxu0 0.0
    %271 = vmatpush1.msra.mxu0 0.0
    %272 = vmatprep.subr.mxu0 0.0
    %273 = vmatpush1.msra.mxu0 0.0
    %274 = vmatprep.subr.mxu0 0.0
    %275 = vmatpush1.msra.mxu0 0.0
    %276 = vmatprep.subr.mxu0 0.0
    %277 = vmatpush1.msra.mxu0 0.0
    %278 = vmatprep.subr.mxu0 0.0
    %279 = vmatpush1.msra.mxu0 0.0
    %280 = vmatprep.subr.mxu0 0.0
    %281 = vmatpush1.msra.mxu0 0.0
    %282 = vmatprep.subr.mxu0 0.0
    %283 = vmatpush1.msra.mxu0 0.0
    %284 = vmatprep.subr.mxu0 0.0
    %285 = vmatpush1.msra.mxu0 0.0
    %286 = vmatprep.subr.mxu0 0.0
    %287 = vmatpush1.msra.mxu0 0.0
    %288 = vmatprep.subr.mxu0 0.0
    %289 = vmatpush1.msra.mxu0 0.0
    %290 = vmatprep.subr.mxu0 0.0
    %291 = vmatpush1.msra.mxu0 0.0
    %292 = vmatprep.mubr.f32.mxu0 0.0
    %v293 = vand.u32 %v114, 4294901760
    %294 = vmatmul.mubr.f32.gmra.mrb[0].mxu0 %v293
    %v295 = vpop.f32.mrb[0].mxu0
    %v296 = vadd.f32 %v195, %v295
    %v297 = vpop.f32.mrb[0].mxu0
    %298 = vmatprep.mubr.f32.mxu0 0.0
    %v299 = vand.u32 %v117, 4294901760
    %300 = vmatmul.mubr.f32.gmra.mrb[0].mxu0 %v299
    %v301 = vpop.f32.mrb[0].mxu0
    %v302 = vadd.f32 %v205, %v301
    %v303 = vpop.f32.mrb[0].mxu0
    %304 = vdwg.mxu0
    %305 = vmatprep.subr.mxu0 0.0
    %v306 = vand.u32 %v101, 4294901760
    %v307 = vsub.f32 %v101, %v306
    %308 = vmatpush1.msra.mxu0 %v307
    %309 = vmatprep.subr.mxu0 0.0
    %v310 = vand.u32 %v102, 4294901760
    %v311 = vsub.f32 %v102, %v310
    %312 = vmatpush1.msra.mxu0 %v311
    %313 = vmatprep.subr.mxu0 0.0
    %v314 = vand.u32 %v103, 4294901760
    %v315 = vsub.f32 %v103, %v314
    %316 = vmatpush1.msra.mxu0 %v315
    %317 = vmatprep.subr.mxu0 0.0
    %v318 = vand.u32 %v104, 4294901760
    %v319 = vsub.f32 %v104, %v318
    %320 = vmatpush1.msra.mxu0 %v319
    %321 = vmatprep.subr.mxu0 0.0
    %322 = vmatpush1.msra.mxu0 0.0
    %323 = vmatprep.subr.mxu0 0.0
    %324 = vmatpush1.msra.mxu0 0.0
    %325 = vmatprep.subr.mxu0 0.0
    %326 = vmatpush1.msra.mxu0 0.0
    %327 = vmatprep.subr.mxu0 0.0
    %328 = vmatpush1.msra.mxu0 0.0
    %329 = vmatprep.subr.mxu0 0.0
    %330 = vmatpush1.msra.mxu0 0.0
    %331 = vmatprep.subr.mxu0 0.0
    %332 = vmatpush1.msra.mxu0 0.0
    %333 = vmatprep.subr.mxu0 0.0
    %334 = vmatpush1.msra.mxu0 0.0
    %335 = vmatprep.subr.mxu0 0.0
    %336 = vmatpush1.msra.mxu0 0.0
    %337 = vmatprep.subr.mxu0 0.0
    %338 = vmatpush1.msra.mxu0 0.0
    %339 = vmatprep.subr.mxu0 0.0
    %340 = vmatpush1.msra.mxu0 0.0
    %341 = vmatprep.subr.mxu0 0.0
    %342 = vmatpush1.msra.mxu0 0.0
    %343 = vmatprep.subr.mxu0 0.0
    %344 = vmatpush1.msra.mxu0 0.0
    %345 = vmatprep.subr.mxu0 0.0
    %346 = vmatpush1.msra.mxu0 0.0
    %347 = vmatprep.subr.mxu0 0.0
    %348 = vmatpush1.msra.mxu0 0.0
    %349 = vmatprep.subr.mxu0 0.0
    %350 = vmatpush1.msra.mxu0 0.0
    %351 = vmatprep.subr.mxu0 0.0
    %352 = vmatpush1.msra.mxu0 0.0
    %353 = vmatprep.subr.mxu0 0.0
    %354 = vmatpush1.msra.mxu0 0.0
    %355 = vmatprep.subr.mxu0 0.0
    %356 = vmatpush1.msra.mxu0 0.0
    %357 = vmatprep.subr.mxu0 0.0
    %358 = vmatpush1.msra.mxu0 0.0
    %359 = vmatprep.subr.mxu0 0.0
    %360 = vmatpush1.msra.mxu0 0.0
    %361 = vmatprep.subr.mxu0 0.0
    %362 = vmatpush1.msra.mxu0 0.0
    %363 = vmatprep.subr.mxu0 0.0
    %364 = vmatpush1.msra.mxu0 0.0
    %365 = vmatprep.subr.mxu0 0.0
    %366 = vmatpush1.msra.mxu0 0.0
    %367 = vmatprep.subr.mxu0 0.0
    %368 = vmatpush1.msra.mxu0 0.0
    %369 = vmatprep.subr.mxu0 0.0
    %370 = vmatpush1.msra.mxu0 0.0
    %371 = vmatprep.subr.mxu0 0.0
    %372 = vmatpush1.msra.mxu0 0.0
    %373 = vmatprep.subr.mxu0 0.0
    %374 = vmatpush1.msra.mxu0 0.0
    %375 = vmatprep.subr.mxu0 0.0
    %376 = vmatpush1.msra.mxu0 0.0
    %377 = vmatprep.mubr.f32.mxu0 0.0
    %v378 = vand.u32 %v114, 4294901760
    %v379 = vsub.f32 %v114, %v378
    %380 = vmatmul.mubr.f32.gmra.mrb[0].mxu0 %v379
    %v381 = vpop.f32.mrb[0].mxu0
    %v382 = vadd.f32 %v296, %v381
    %v383 = vpop.f32.mrb[0].mxu0
    %384 = vmatprep.mubr.f32.mxu0 0.0
    %v385 = vand.u32 %v117, 4294901760
    %v386 = vsub.f32 %v117, %v385
    %387 = vmatmul.mubr.f32.gmra.mrb[0].mxu0 %v386
    %v388 = vpop.f32.mrb[0].mxu0
    %v389 = vadd.f32 %v302, %v388
    %v390 = vpop.f32.mrb[0].mxu0
    %391 = vdwg.mxu0
    %392 = vmatprep.subr.mxu0 0.0
    %v393 = vand.u32 %v101, 4294901760
    %394 = vmatpush1.msra.mxu0 %v393
    %395 = vmatprep.subr.mxu0 0.0
    %v396 = vand.u32 %v102, 4294901760
    %397 = vmatpush1.msra.mxu0 %v396
    %398 = vmatprep.subr.mxu0 0.0
    %v399 = vand.u32 %v103, 4294901760
    %400 = vmatpush1.msra.mxu0 %v399
    %401 = vmatprep.subr.mxu0 0.0
    %v402 = vand.u32 %v104, 4294901760
    %403 = vmatpush1.msra.mxu0 %v402
    %404 = vmatprep.subr.mxu0 0.0
    %405 = vmatpush1.msra.mxu0 0.0
    %406 = vmatprep.subr.mxu0 0.0
    %407 = vmatpush1.msra.mxu0 0.0
    %408 = vmatprep.subr.mxu0 0.0
    %409 = vmatpush1.msra.mxu0 0.0
    %410 = vmatprep.subr.mxu0 0.0
    %411 = vmatpush1.msra.mxu0 0.0
    %412 = vmatprep.subr.mxu0 0.0
    %413 = vmatpush1.msra.mxu0 0.0
    %414 = vmatprep.subr.mxu0 0.0
    %415 = vmatpush1.msra.mxu0 0.0
    %416 = vmatprep.subr.mxu0 0.0
    %417 = vmatpush1.msra.mxu0 0.0
    %418 = vmatprep.subr.mxu0 0.0
    %419 = vmatpush1.msra.mxu0 0.0
    %420 = vmatprep.subr.mxu0 0.0
    %421 = vmatpush1.msra.mxu0 0.0
    %422 = vmatprep.subr.mxu0 0.0
    %423 = vmatpush1.msra.mxu0 0.0
    %424 = vmatprep.subr.mxu0 0.0
    %425 = vmatpush1.msra.mxu0 0.0
    %426 = vmatprep.subr.mxu0 0.0
    %427 = vmatpush1.msra.mxu0 0.0
    %428 = vmatprep.subr.mxu0 0.0
    %429 = vmatpush1.msra.mxu0 0.0
    %430 = vmatprep.subr.mxu0 0.0
    %431 = vmatpush1.msra.mxu0 0.0
    %432 = vmatprep.subr.mxu0 0.0
    %433 = vmatpush1.msra.mxu0 0.0
    %434 = vmatprep.subr.mxu0 0.0
    %435 = vmatpush1.msra.mxu0 0.0
    %436 = vmatprep.subr.mxu0 0.0
    %437 = vmatpush1.msra.mxu0 0.0
    %438 = vmatprep.subr.mxu0 0.0
    %439 = vmatpush1.msra.mxu0 0.0
    %440 = vmatprep.subr.mxu0 0.0
    %441 = vmatpush1.msra.mxu0 0.0
    %442 = vmatprep.subr.mxu0 0.0
    %443 = vmatpush1.msra.mxu0 0.0
    %444 = vmatprep.subr.mxu0 0.0
    %445 = vmatpush1.msra.mxu0 0.0
    %446 = vmatprep.subr.mxu0 0.0
    %447 = vmatpush1.msra.mxu0 0.0
    %448 = vmatprep.subr.mxu0 0.0
    %449 = vmatpush1.msra.mxu0 0.0
    %450 = vmatprep.subr.mxu0 0.0
    %451 = vmatpush1.msra.mxu0 0.0
    %452 = vmatprep.subr.mxu0 0.0
    %453 = vmatpush1.msra.mxu0 0.0
    %454 = vmatprep.subr.mxu0 0.0
    %455 = vmatpush1.msra.mxu0 0.0
    %456 = vmatprep.subr.mxu0 0.0
    %457 = vmatpush1.msra.mxu0 0.0
    %458 = vmatprep.subr.mxu0 0.0
    %459 = vmatpush1.msra.mxu0 0.0
    %460 = vmatprep.mubr.f32.mxu0 0.0
    %v461 = vand.u32 %v114, 4294901760
    %v462 = vsub.f32 %v114, %v461
    %v463 = vand.u32 %v462, 4294901760
    %464 = vmatmul.mubr.f32.gmra.mrb[0].mxu0 %v463
    %v465 = vpop.f32.mrb[0].mxu0
    %v466 = vadd.f32 %v382, %v465
    %v467 = vpop.f32.mrb[0].mxu0
    %468 = vmatprep.mubr.f32.mxu0 0.0
    %v469 = vand.u32 %v117, 4294901760
    %v470 = vsub.f32 %v117, %v469
    %v471 = vand.u32 %v470, 4294901760
    %472 = vmatmul.mubr.f32.gmra.mrb[0].mxu0 %v471
    %v473 = vpop.f32.mrb[0].mxu0
    %v474 = vadd.f32 %v389, %v473
    %v475 = vpop.f32.mrb[0].mxu0
    %476 = vdwg.mxu0
    %477 = vmatprep.subr.mxu0 0.0
    %v478 = vand.u32 %v101, 4294901760
    %v479 = vsub.f32 %v101, %v478
    %v480 = vand.u32 %v479, 4294901760
    %481 = vmatpush1.msra.mxu0 %v480
    %482 = vmatprep.subr.mxu0 0.0
    %v483 = vand.u32 %v102, 4294901760
    %v484 = vsub.f32 %v102, %v483
    %v485 = vand.u32 %v484, 4294901760
    %486 = vmatpush1.msra.mxu0 %v485
    %487 = vmatprep.subr.mxu0 0.0
    %v488 = vand.u32 %v103, 4294901760
    %v489 = vsub.f32 %v103, %v488
    %v490 = vand.u32 %v489, 4294901760
    %491 = vmatpush1.msra.mxu0 %v490
    %492 = vmatprep.subr.mxu0 0.0
    %v493 = vand.u32 %v104, 4294901760
    %v494 = vsub.f32 %v104, %v493
    %v495 = vand.u32 %v494, 4294901760
    %496 = vmatpush1.msra.mxu0 %v495
    %497 = vmatprep.subr.mxu0 0.0
    %498 = vmatpush1.msra.mxu0 0.0
    %499 = vmatprep.subr.mxu0 0.0
    %500 = vmatpush1.msra.mxu0 0.0
    %501 = vmatprep.subr.mxu0 0.0
    %502 = vmatpush1.msra.mxu0 0.0
    %503 = vmatprep.subr.mxu0 0.0
    %504 = vmatpush1.msra.mxu0 0.0
    %505 = vmatprep.subr.mxu0 0.0
    %506 = vmatpush1.msra.mxu0 0.0
    %507 = vmatprep.subr.mxu0 0.0
    %508 = vmatpush1.msra.mxu0 0.0
    %509 = vmatprep.subr.mxu0 0.0
    %510 = vmatpush1.msra.mxu0 0.0
    %511 = vmatprep.subr.mxu0 0.0
    %512 = vmatpush1.msra.mxu0 0.0
    %513 = vmatprep.subr.mxu0 0.0
    %514 = vmatpush1.msra.mxu0 0.0
    %515 = vmatprep.subr.mxu0 0.0
    %516 = vmatpush1.msra.mxu0 0.0
    %517 = vmatprep.subr.mxu0 0.0
    %518 = vmatpush1.msra.mxu0 0.0
    %519 = vmatprep.subr.mxu0 0.0
    %520 = vmatpush1.msra.mxu0 0.0
    %521 = vmatprep.subr.mxu0 0.0
    %522 = vmatpush1.msra.mxu0 0.0
    %523 = vmatprep.subr.mxu0 0.0
    %524 = vmatpush1.msra.mxu0 0.0
    %525 = vmatprep.subr.mxu0 0.0
    %526 = vmatpush1.msra.mxu0 0.0
    %527 = vmatprep.subr.mxu0 0.0
    %528 = vmatpush1.msra.mxu0 0.0
    %529 = vmatprep.subr.mxu0 0.0
    %530 = vmatpush1.msra.mxu0 0.0
    %531 = vmatprep.subr.mxu0 0.0
    %532 = vmatpush1.msra.mxu0 0.0
    %533 = vmatprep.subr.mxu0 0.0
    %534 = vmatpush1.msra.mxu0 0.0
    %535 = vmatprep.subr.mxu0 0.0
    %536 = vmatpush1.msra.mxu0 0.0
    %537 = vmatprep.subr.mxu0 0.0
    %538 = vmatpush1.msra.mxu0 0.0
    %539 = vmatprep.subr.mxu0 0.0
    %540 = vmatpush1.msra.mxu0 0.0
    %541 = vmatprep.subr.mxu0 0.0
    %542 = vmatpush1.msra.mxu0 0.0
    %543 = vmatprep.subr.mxu0 0.0
    %544 = vmatpush1.msra.mxu0 0.0
    %545 = vmatprep.subr.mxu0 0.0
    %546 = vmatpush1.msra.mxu0 0.0
    %547 = vmatprep.subr.mxu0 0.0
    %548 = vmatpush1.msra.mxu0 0.0
    %549 = vmatprep.subr.mxu0 0.0
    %550 = vmatpush1.msra.mxu0 0.0
    %551 = vmatprep.subr.mxu0 0.0
    %552 = vmatpush1.msra.mxu0 0.0
    %553 = vmatprep.mubr.f32.mxu0 0.0
    %v554 = vand.u32 %v114, 4294901760
    %555 = vmatmul.mubr.f32.gmra.mrb[0].mxu0 %v554
    %v556 = vpop.f32.mrb[0].mxu0
    %v557 = vadd.f32 %v466, %v556
    %v558 = vpop.f32.mrb[0].mxu0
    %559 = vmatprep.mubr.f32.mxu0 0.0
    %v560 = vand.u32 %v117, 4294901760
    %561 = vmatmul.mubr.f32.gmra.mrb[0].mxu0 %v560
    %v562 = vpop.f32.mrb[0].mxu0
    %v563 = vadd.f32 %v474, %v562
    %v564 = vpop.f32.mrb[0].mxu0
    %565 = vdwg.mxu0
    %566 = vmatprep.subr.mxu0 0.0
    %v567 = vand.u32 %v101, 4294901760
    %568 = vmatpush1.msra.mxu0 %v567
    %569 = vmatprep.subr.mxu0 0.0
    %v570 = vand.u32 %v102, 4294901760
    %571 = vmatpush1.msra.mxu0 %v570
    %572 = vmatprep.subr.mxu0 0.0
    %v573 = vand.u32 %v103, 4294901760
    %574 = vmatpush1.msra.mxu0 %v573
    %575 = vmatprep.subr.mxu0 0.0
    %v576 = vand.u32 %v104, 4294901760
    %577 = vmatpush1.msra.mxu0 %v576
    %578 = vmatprep.subr.mxu0 0.0
    %579 = vmatpush1.msra.mxu0 0.0
    %580 = vmatprep.subr.mxu0 0.0
    %581 = vmatpush1.msra.mxu0 0.0
    %582 = vmatprep.subr.mxu0 0.0
    %583 = vmatpush1.msra.mxu0 0.0
    %584 = vmatprep.subr.mxu0 0.0
    %585 = vmatpush1.msra.mxu0 0.0
    %586 = vmatprep.subr.mxu0 0.0
    %587 = vmatpush1.msra.mxu0 0.0
    %588 = vmatprep.subr.mxu0 0.0
    %589 = vmatpush1.msra.mxu0 0.0
    %590 = vmatprep.subr.mxu0 0.0
    %591 = vmatpush1.msra.mxu0 0.0
    %592 = vmatprep.subr.mxu0 0.0
    %593 = vmatpush1.msra.mxu0 0.0
    %594 = vmatprep.subr.mxu0 0.0
    %595 = vmatpush1.msra.mxu0 0.0
    %596 = vmatprep.subr.mxu0 0.0
    %597 = vmatpush1.msra.mxu0 0.0
    %598 = vmatprep.subr.mxu0 0.0
    %599 = vmatpush1.msra.mxu0 0.0
    %600 = vmatprep.subr.mxu0 0.0
    %601 = vmatpush1.msra.mxu0 0.0
    %602 = vmatprep.subr.mxu0 0.0
    %603 = vmatpush1.msra.mxu0 0.0
    %604 = vmatprep.subr.mxu0 0.0
    %605 = vmatpush1.msra.mxu0 0.0
    %606 = vmatprep.subr.mxu0 0.0
    %607 = vmatpush1.msra.mxu0 0.0
    %608 = vmatprep.subr.mxu0 0.0
    %609 = vmatpush1.msra.mxu0 0.0
    %610 = vmatprep.subr.mxu0 0.0
    %611 = vmatpush1.msra.mxu0 0.0
    %612 = vmatprep.subr.mxu0 0.0
    %613 = vmatpush1.msra.mxu0 0.0
    %614 = vmatprep.subr.mxu0 0.0
    %615 = vmatpush1.msra.mxu0 0.0
    %616 = vmatprep.subr.mxu0 0.0
    %617 = vmatpush1.msra.mxu0 0.0
    %618 = vmatprep.subr.mxu0 0.0
    %619 = vmatpush1.msra.mxu0 0.0
    %620 = vmatprep.subr.mxu0 0.0
    %621 = vmatpush1.msra.mxu0 0.0
    %622 = vmatprep.subr.mxu0 0.0
    %623 = vmatpush1.msra.mxu0 0.0
    %624 = vmatprep.subr.mxu0 0.0
    %625 = vmatpush1.msra.mxu0 0.0
    %626 = vmatprep.subr.mxu0 0.0
    %627 = vmatpush1.msra.mxu0 0.0
    %628 = vmatprep.subr.mxu0 0.0
    %629 = vmatpush1.msra.mxu0 0.0
    %630 = vmatprep.subr.mxu0 0.0
    %631 = vmatpush1.msra.mxu0 0.0
    %632 = vmatprep.subr.mxu0 0.0
    %633 = vmatpush1.msra.mxu0 0.0
    %634 = vmatprep.mubr.f32.mxu0 0.0
    %v635 = vand.u32 %v114, 4294901760
    %636 = vmatmul.mubr.f32.gmra.mrb[0].mxu0 %v635
    %v637 = vpop.f32.mrb[0].mxu0
    %v638 = vadd.f32 %v557, %v637
    %v639 = vpop.f32.mrb[0].mxu0
    %640 = vmatprep.mubr.f32.mxu0 0.0
    %v641 = vand.u32 %v117, 4294901760
    %642 = vmatmul.mubr.f32.gmra.mrb[0].mxu0 %v641
    %v643 = vpop.f32.mrb[0].mxu0
    %v644 = vadd.f32 %v563, %v643
    %v645 = vpop.f32.mrb[0].mxu0
    %646 = vdwg.mxu0
    %v647 = vsel %vm98, %v638, 0.0
    %v648 = vsel %vm98, %v644, 0.0
    %vm649 = vcmask 523264
    %v650 = vsel %vm649, %v647, 0.0
    %651 = vadd.xlane.f32.xlu0 %v650
    %v652 = vpop.xlane.xlu0 %651
    %v653 = vsel %vm649, %v648, 0.0
    %654 = vadd.xlane.f32.xlu0 %v653
    %v655 = vpop.xlane.xlu0 %654
    %v656 = vsel %vm98, 0.0, %v638
    %v657 = vsel %vm98, 0.0, %v644
    %v658 = vsel %vm649, %v656, 0.0
    %659 = vadd.xlane.f32.xlu0 %v658
    %v660 = vpop.xlane.xlu0 %659
    %v661 = vsel %vm649, %v657, 0.0
    %662 = vadd.xlane.f32.xlu0 %v661
    %v663 = vpop.xlane.xlu0 %662
    %v664 = vsel %vm98, %v652, %v660
    %v665 = vsel %vm98, %v655, %v663
    %v666 = vmul.f32 %v664, 0.03125
    %v667 = vmul.f32 %v665, 0.03125
    %v668 = vsub.f32 %v638, %v666
    %v669 = vsub.f32 %v644, %v667
    %v670 = vmul.f32 %v668, %v668
    %v671 = vmul.f32 %v669, %v669
    %v672 = vsel %vm98, %v670, 0.0
    %v673 = vsel %vm98, %v671, 0.0
    %v674 = vsel %vm649, %v672, 0.0
    %675 = vadd.xlane.f32.xlu0 %v674
    %v676 = vpop.xlane.xlu0 %675
    %v677 = vsel %vm649, %v673, 0.0
    %678 = vadd.xlane.f32.xlu0 %v677
    %v679 = vpop.xlane.xlu0 %678
    %v680 = vsel %vm98, 0.0, %v670
    %v681 = vsel %vm98, 0.0, %v671
    %v682 = vsel %vm649, %v680, 0.0
    %683 = vadd.xlane.f32.xlu0 %v682
    %v684 = vpop.xlane.xlu0 %683
    %v685 = vsel %vm649, %v681, 0.0
    %686 = vadd.xlane.f32.xlu0 %v685
    %v687 = vpop.xlane.xlu0 %686
    %v688 = vsel %vm98, %v676, %v684
    %v689 = vsel %vm98, %v679, %v687
    %v690 = vmul.f32 %v688, 0.03125
    %v691 = vmul.f32 %v689, 0.03125
    %v692 = vadd.f32 %v690, 1e-05
    %v693 = vadd.f32 %v691, 1e-05
    %v694 = vrsqrt.pop %v692
    %v695 = vrsqrt.pop %v693
    %v696 = vmul.f32 %v668, %v694
    %v697 = vmul.f32 %v669, %v695
    %v699 = vlaneseq
    %v700 = vshrl.u32 %v699, 7
    %v701 = vsub.s32 0, %v700
    %v702 = vrot.slane %v99, %v701
    %v704 = vmul.f32 %v696, %v702
    %v705 = vmul.f32 %v697, %v702
    %v707 = vlaneseq
    %v708 = vshrl.u32 %v707, 7
    %v709 = vsub.s32 0, %v708
    %v710 = vrot.slane %v100, %v709
    %v712 = vadd.f32 %v704, %v710
    %v713 = vadd.f32 %v705, %v710
    %vm714 = vcmp.gt.f32.partialorder %v712, 0.0
    %vm715 = vcmp.gt.f32.partialorder %v713, 0.0
    %v716 = vmul.f32 %v712, 0.2
    %v717 = vmul.f32 %v713, 0.2
    %v718 = vsel %vm714, %v712, %v716
    %v719 = vsel %vm715, %v713, %v717
    %v720 = vld [vmem:[#allocation7] sm:$0xff]
    %v721 = vld [vmem:[#allocation7 + $0x8] sm:$0xff]
    %v722 = vld [vmem:[#allocation7 + $0x10] sm:$0xff]
    %v723 = vld [vmem:[#allocation7 + $0x18] sm:$0xff]
    %v724 = vld [vmem:[#allocation7 + $0x20] sm:$0xff]
    %v725 = vld [vmem:[#allocation7 + $0x28] sm:$0xff]
    %v726 = vld [vmem:[#allocation7 + $0x30] sm:$0xff]
    %v727 = vld [vmem:[#allocation7 + $0x38] sm:$0xff]
    %s728 = scalar_lea.vmem %s3, 1
    %v729 = vld [vmem:[%s728] sm:$0x1]
    %v731 = vlaneseq
    %v732 = vshrl.u32 %v731, 7
    %v733 = vsub.s32 0, %v732
    %v734 = vrot.slane %v729, %v733
    %v737 = vsel %vm649, %v718, 0
    %v740 = vsel %vm649, %v719, 0
    %742 = vmatprep.subr.mxu0 0.0
    %v743 = vand.u32 %v720, 4294901760
    %744 = vmatpush1.msra.mxu0 %v743
    %745 = vmatprep.subr.mxu0 0.0
    %v746 = vand.u32 %v721, 4294901760
    %747 = vmatpush1.msra.mxu0 %v746
    %748 = vmatprep.subr.mxu0 0.0
    %v749 = vand.u32 %v722, 4294901760
    %750 = vmatpush1.msra.mxu0 %v749
    %751 = vmatprep.subr.mxu0 0.0
    %v752 = vand.u32 %v723, 4294901760
    %753 = vmatpush1.msra.mxu0 %v752
    %754 = vmatprep.subr.mxu0 0.0
    %v755 = vand.u32 %v724, 4294901760
    %756 = vmatpush1.msra.mxu0 %v755
    %757 = vmatprep.subr.mxu0 0.0
    %v758 = vand.u32 %v725, 4294901760
    %759 = vmatpush1.msra.mxu0 %v758
    %760 = vmatprep.subr.mxu0 0.0
    %v761 = vand.u32 %v726, 4294901760
    %762 = vmatpush1.msra.mxu0 %v761
    %763 = vmatprep.subr.mxu0 0.0
    %v764 = vand.u32 %v727, 4294901760
    %765 = vmatpush1.msra.mxu0 %v764
    %766 = vmatprep.subr.mxu0 0.0
    %767 = vmatpush1.msra.mxu0 0.0
    %768 = vmatprep.subr.mxu0 0.0
    %769 = vmatpush1.msra.mxu0 0.0
    %770 = vmatprep.subr.mxu0 0.0
    %771 = vmatpush1.msra.mxu0 0.0
    %772 = vmatprep.subr.mxu0 0.0
    %773 = vmatpush1.msra.mxu0 0.0
    %774 = vmatprep.subr.mxu0 0.0
    %775 = vmatpush1.msra.mxu0 0.0
    %776 = vmatprep.subr.mxu0 0.0
    %777 = vmatpush1.msra.mxu0 0.0
    %778 = vmatprep.subr.mxu0 0.0
    %779 = vmatpush1.msra.mxu0 0.0
    %780 = vmatprep.subr.mxu0 0.0
    %781 = vmatpush1.msra.mxu0 0.0
    %782 = vmatprep.subr.mxu0 0.0
    %783 = vmatpush1.msra.mxu0 0.0
    %784 = vmatprep.subr.mxu0 0.0
    %785 = vmatpush1.msra.mxu0 0.0
    %786 = vmatprep.subr.mxu0 0.0
    %787 = vmatpush1.msra.mxu0 0.0
    %788 = vmatprep.subr.mxu0 0.0
    %789 = vmatpush1.msra.mxu0 0.0
    %790 = vmatprep.subr.mxu0 0.0
    %791 = vmatpush1.msra.mxu0 0.0
    %792 = vmatprep.subr.mxu0 0.0
    %793 = vmatpush1.msra.mxu0 0.0
    %794 = vmatprep.subr.mxu0 0.0
    %795 = vmatpush1.msra.mxu0 0.0
    %796 = vmatprep.subr.mxu0 0.0
    %797 = vmatpush1.msra.mxu0 0.0
    %798 = vmatprep.subr.mxu0 0.0
    %799 = vmatpush1.msra.mxu0 0.0
    %800 = vmatprep.subr.mxu0 0.0
    %801 = vmatpush1.msra.mxu0 0.0
    %802 = vmatprep.subr.mxu0 0.0
    %803 = vmatpush1.msra.mxu0 0.0
    %804 = vmatprep.subr.mxu0 0.0
    %805 = vmatpush1.msra.mxu0 0.0
    %806 = vmatprep.subr.mxu0 0.0
    %807 = vmatpush1.msra.mxu0 0.0
    %808 = vmatprep.subr.mxu0 0.0
    %809 = vmatpush1.msra.mxu0 0.0
    %810 = vmatprep.subr.mxu0 0.0
    %811 = vmatpush1.msra.mxu0 0.0
    %812 = vmatprep.subr.mxu0 0.0
    %813 = vmatpush1.msra.mxu0 0.0
    %814 = vmatprep.mubr.f32.mxu0 0.0
    %v815 = vand.u32 %v737, 4294901760
    %v816 = vsub.f32 %v737, %v815
    %v817 = vand.u32 %v816, 4294901760
    %v818 = vsub.f32 %v816, %v817
    %v819 = vand.u32 %v818, 4294901760
    %820 = vmatmul.mubr.f32.gmra.mrb[0].mxu0 %v819
    %v821 = vpop.f32.mrb[0].mxu0
    %v822 = vadd.f32 %v734, %v821
    %v823 = vpop.f32.mrb[0].mxu0
    %824 = vmatprep.mubr.f32.mxu0 0.0
    %v825 = vand.u32 %v740, 4294901760
    %v826 = vsub.f32 %v740, %v825
    %v827 = vand.u32 %v826, 4294901760
    %v828 = vsub.f32 %v826, %v827
    %v829 = vand.u32 %v828, 4294901760
    %830 = vmatmul.mubr.f32.gmra.mrb[0].mxu0 %v829
    %v831 = vpop.f32.mrb[0].mxu0
    %v832 = vadd.f32 %v734, %v831
    %v833 = vpop.f32.mrb[0].mxu0
    %834 = vdwg.mxu0
    %835 = vmatprep.subr.mxu0 0.0
    %v836 = vand.u32 %v720, 4294901760
    %v837 = vsub.f32 %v720, %v836
    %v838 = vand.u32 %v837, 4294901760
    %v839 = vsub.f32 %v837, %v838
    %v840 = vand.u32 %v839, 4294901760
    %841 = vmatpush1.msra.mxu0 %v840
    %842 = vmatprep.subr.mxu0 0.0
    %v843 = vand.u32 %v721, 4294901760
    %v844 = vsub.f32 %v721, %v843
    %v845 = vand.u32 %v844, 4294901760
    %v846 = vsub.f32 %v844, %v845
    %v847 = vand.u32 %v846, 4294901760
    %848 = vmatpush1.msra.mxu0 %v847
    %849 = vmatprep.subr.mxu0 0.0
    %v850 = vand.u32 %v722, 4294901760
    %v851 = vsub.f32 %v722, %v850
    %v852 = vand.u32 %v851, 4294901760
    %v853 = vsub.f32 %v851, %v852
    %v854 = vand.u32 %v853, 4294901760
    %855 = vmatpush1.msra.mxu0 %v854
    %856 = vmatprep.subr.mxu0 0.0
    %v857 = vand.u32 %v723, 4294901760
    %v858 = vsub.f32 %v723, %v857
    %v859 = vand.u32 %v858, 4294901760
    %v860 = vsub.f32 %v858, %v859
    %v861 = vand.u32 %v860, 4294901760
    %862 = vmatpush1.msra.mxu0 %v861
    %863 = vmatprep.subr.mxu0 0.0
    %v864 = vand.u32 %v724, 4294901760
    %v865 = vsub.f32 %v724, %v864
    %v866 = vand.u32 %v865, 4294901760
    %v867 = vsub.f32 %v865, %v866
    %v868 = vand.u32 %v867, 4294901760
    %869 = vmatpush1.msra.mxu0 %v868
    %870 = vmatprep.subr.mxu0 0.0
    %v871 = vand.u32 %v725, 4294901760
    %v872 = vsub.f32 %v725, %v871
    %v873 = vand.u32 %v872, 4294901760
    %v874 = vsub.f32 %v872, %v873
    %v875 = vand.u32 %v874, 4294901760
    %876 = vmatpush1.msra.mxu0 %v875
    %877 = vmatprep.subr.mxu0 0.0
    %v878 = vand.u32 %v726, 4294901760
    %v879 = vsub.f32 %v726, %v878
    %v880 = vand.u32 %v879, 4294901760
    %v881 = vsub.f32 %v879, %v880
    %v882 = vand.u32 %v881, 4294901760
    %883 = vmatpush1.msra.mxu0 %v882
    %884 = vmatprep.subr.mxu0 0.0
    %v885 = vand.u32 %v727, 4294901760
    %v886 = vsub.f32 %v727, %v885
    %v887 = vand.u32 %v886, 4294901760
    %v888 = vsub.f32 %v886, %v887
    %v889 = vand.u32 %v888, 4294901760
    %890 = vmatpush1.msra.mxu0 %v889
    %891 = vmatprep.subr.mxu0 0.0
    %892 = vmatpush1.msra.mxu0 0.0
    %893 = vmatprep.subr.mxu0 0.0
    %894 = vmatpush1.msra.mxu0 0.0
    %895 = vmatprep.subr.mxu0 0.0
    %896 = vmatpush1.msra.mxu0 0.0
    %897 = vmatprep.subr.mxu0 0.0
    %898 = vmatpush1.msra.mxu0 0.0
    %899 = vmatprep.subr.mxu0 0.0
    %900 = vmatpush1.msra.mxu0 0.0
    %901 = vmatprep.subr.mxu0 0.0
    %902 = vmatpush1.msra.mxu0 0.0
    %903 = vmatprep.subr.mxu0 0.0
    %904 = vmatpush1.msra.mxu0 0.0
    %905 = vmatprep.subr.mxu0 0.0
    %906 = vmatpush1.msra.mxu0 0.0
    %907 = vmatprep.subr.mxu0 0.0
    %908 = vmatpush1.msra.mxu0 0.0
    %909 = vmatprep.subr.mxu0 0.0
    %910 = vmatpush1.msra.mxu0 0.0
    %911 = vmatprep.subr.mxu0 0.0
    %912 = vmatpush1.msra.mxu0 0.0
    %913 = vmatprep.subr.mxu0 0.0
    %914 = vmatpush1.msra.mxu0 0.0
    %915 = vmatprep.subr.mxu0 0.0
    %916 = vmatpush1.msra.mxu0 0.0
    %917 = vmatprep.subr.mxu0 0.0
    %918 = vmatpush1.msra.mxu0 0.0
    %919 = vmatprep.subr.mxu0 0.0
    %920 = vmatpush1.msra.mxu0 0.0
    %921 = vmatprep.subr.mxu0 0.0
    %922 = vmatpush1.msra.mxu0 0.0
    %923 = vmatprep.subr.mxu0 0.0
    %924 = vmatpush1.msra.mxu0 0.0
    %925 = vmatprep.subr.mxu0 0.0
    %926 = vmatpush1.msra.mxu0 0.0
    %927 = vmatprep.subr.mxu0 0.0
    %928 = vmatpush1.msra.mxu0 0.0
    %929 = vmatprep.subr.mxu0 0.0
    %930 = vmatpush1.msra.mxu0 0.0
    %931 = vmatprep.subr.mxu0 0.0
    %932 = vmatpush1.msra.mxu0 0.0
    %933 = vmatprep.subr.mxu0 0.0
    %934 = vmatpush1.msra.mxu0 0.0
    %935 = vmatprep.subr.mxu0 0.0
    %936 = vmatpush1.msra.mxu0 0.0
    %937 = vmatprep.subr.mxu0 0.0
    %938 = vmatpush1.msra.mxu0 0.0
    %939 = vmatprep.mubr.f32.mxu0 0.0
    %v940 = vand.u32 %v737, 4294901760
    %941 = vmatmul.mubr.f32.gmra.mrb[0].mxu0 %v940
    %v942 = vpop.f32.mrb[0].mxu0
    %v943 = vadd.f32 %v822, %v942
    %v944 = vpop.f32.mrb[0].mxu0
    %945 = vmatprep.mubr.f32.mxu0 0.0
    %v946 = vand.u32 %v740, 4294901760
    %947 = vmatmul.mubr.f32.gmra.mrb[0].mxu0 %v946
    %v948 = vpop.f32.mrb[0].mxu0
    %v949 = vadd.f32 %v832, %v948
    %v950 = vpop.f32.mrb[0].mxu0
    %951 = vdwg.mxu0
    %952 = vmatprep.subr.mxu0 0.0
    %v953 = vand.u32 %v720, 4294901760
    %v954 = vsub.f32 %v720, %v953
    %955 = vmatpush1.msra.mxu0 %v954
    %956 = vmatprep.subr.mxu0 0.0
    %v957 = vand.u32 %v721, 4294901760
    %v958 = vsub.f32 %v721, %v957
    %959 = vmatpush1.msra.mxu0 %v958
    %960 = vmatprep.subr.mxu0 0.0
    %v961 = vand.u32 %v722, 4294901760
    %v962 = vsub.f32 %v722, %v961
    %963 = vmatpush1.msra.mxu0 %v962
    %964 = vmatprep.subr.mxu0 0.0
    %v965 = vand.u32 %v723, 4294901760
    %v966 = vsub.f32 %v723, %v965
    %967 = vmatpush1.msra.mxu0 %v966
    %968 = vmatprep.subr.mxu0 0.0
    %v969 = vand.u32 %v724, 4294901760
    %v970 = vsub.f32 %v724, %v969
    %971 = vmatpush1.msra.mxu0 %v970
    %972 = vmatprep.subr.mxu0 0.0
    %v973 = vand.u32 %v725, 4294901760
    %v974 = vsub.f32 %v725, %v973
    %975 = vmatpush1.msra.mxu0 %v974
    %976 = vmatprep.subr.mxu0 0.0
    %v977 = vand.u32 %v726, 4294901760
    %v978 = vsub.f32 %v726, %v977
    %979 = vmatpush1.msra.mxu0 %v978
    %980 = vmatprep.subr.mxu0 0.0
    %v981 = vand.u32 %v727, 4294901760
    %v982 = vsub.f32 %v727, %v981
    %983 = vmatpush1.msra.mxu0 %v982
    %984 = vmatprep.subr.mxu0 0.0
    %985 = vmatpush1.msra.mxu0 0.0
    %986 = vmatprep.subr.mxu0 0.0
    %987 = vmatpush1.msra.mxu0 0.0
    %988 = vmatprep.subr.mxu0 0.0
    %989 = vmatpush1.msra.mxu0 0.0
    %990 = vmatprep.subr.mxu0 0.0
    %991 = vmatpush1.msra.mxu0 0.0
    %992 = vmatprep.subr.mxu0 0.0
    %993 = vmatpush1.msra.mxu0 0.0
    %994 = vmatprep.subr.mxu0 0.0
    %995 = vmatpush1.msra.mxu0 0.0
    %996 = vmatprep.subr.mxu0 0.0
    %997 = vmatpush1.msra.mxu0 0.0
    %998 = vmatprep.subr.mxu0 0.0
    %999 = vmatpush1.msra.mxu0 0.0
    %1000 = vmatprep.subr.mxu0 0.0
    %1001 = vmatpush1.msra.mxu0 0.0
    %1002 = vmatprep.subr.mxu0 0.0
    %1003 = vmatpush1.msra.mxu0 0.0
    %1004 = vmatprep.subr.mxu0 0.0
    %1005 = vmatpush1.msra.mxu0 0.0
    %1006 = vmatprep.subr.mxu0 0.0
    %1007 = vmatpush1.msra.mxu0 0.0
    %1008 = vmatprep.subr.mxu0 0.0
    %1009 = vmatpush1.msra.mxu0 0.0
    %1010 = vmatprep.subr.mxu0 0.0
    %1011 = vmatpush1.msra.mxu0 0.0
    %1012 = vmatprep.subr.mxu0 0.0
    %1013 = vmatpush1.msra.mxu0 0.0
    %1014 = vmatprep.subr.mxu0 0.0
    %1015 = vmatpush1.msra.mxu0 0.0
    %1016 = vmatprep.subr.mxu0 0.0
    %1017 = vmatpush1.msra.mxu0 0.0
    %1018 = vmatprep.subr.mxu0 0.0
    %1019 = vmatpush1.msra.mxu0 0.0
    %1020 = vmatprep.subr.mxu0 0.0
    %1021 = vmatpush1.msra.mxu0 0.0
    %1022 = vmatprep.subr.mxu0 0.0
    %1023 = vmatpush1.msra.mxu0 0.0
    %1024 = vmatprep.subr.mxu0 0.0
    %1025 = vmatpush1.msra.mxu0 0.0
    %1026 = vmatprep.subr.mxu0 0.0
    %1027 = vmatpush1.msra.mxu0 0.0
    %1028 = vmatprep.subr.mxu0 0.0
    %1029 = vmatpush1.msra.mxu0 0.0
    %1030 = vmatprep.subr.mxu0 0.0
    %1031 = vmatpush1.msra.mxu0 0.0
    %1032 = vmatprep.mubr.f32.mxu0 0.0
    %v1033 = vand.u32 %v737, 4294901760
    %v1034 = vsub.f32 %v737, %v1033
    %1035 = vmatmul.mubr.f32.gmra.mrb[0].mxu0 %v1034
    %v1036 = vpop.f32.mrb[0].mxu0
    %v1037 = vadd.f32 %v943, %v1036
    %v1038 = vpop.f32.mrb[0].mxu0
    %1039 = vmatprep.mubr.f32.mxu0 0.0
    %v1040 = vand.u32 %v740, 4294901760
    %v1041 = vsub.f32 %v740, %v1040
    %1042 = vmatmul.mubr.f32.gmra.mrb[0].mxu0 %v1041
    %v1043 = vpop.f32.mrb[0].mxu0
    %v1044 = vadd.f32 %v949, %v1043
    %v1045 = vpop.f32.mrb[0].mxu0
    %1046 = vdwg.mxu0
    %1047 = vmatprep.subr.mxu0 0.0
    %v1048 = vand.u32 %v720, 4294901760
    %1049 = vmatpush1.msra.mxu0 %v1048
    %1050 = vmatprep.subr.mxu0 0.0
    %v1051 = vand.u32 %v721, 4294901760
    %1052 = vmatpush1.msra.mxu0 %v1051
    %1053 = vmatprep.subr.mxu0 0.0
    %v1054 = vand.u32 %v722, 4294901760
    %1055 = vmatpush1.msra.mxu0 %v1054
    %1056 = vmatprep.subr.mxu0 0.0
    %v1057 = vand.u32 %v723, 4294901760
    %1058 = vmatpush1.msra.mxu0 %v1057
    %1059 = vmatprep.subr.mxu0 0.0
    %v1060 = vand.u32 %v724, 4294901760
    %1061 = vmatpush1.msra.mxu0 %v1060
    %1062 = vmatprep.subr.mxu0 0.0
    %v1063 = vand.u32 %v725, 4294901760
    %1064 = vmatpush1.msra.mxu0 %v1063
    %1065 = vmatprep.subr.mxu0 0.0
    %v1066 = vand.u32 %v726, 4294901760
    %1067 = vmatpush1.msra.mxu0 %v1066
    %1068 = vmatprep.subr.mxu0 0.0
    %v1069 = vand.u32 %v727, 4294901760
    %1070 = vmatpush1.msra.mxu0 %v1069
    %1071 = vmatprep.subr.mxu0 0.0
    %1072 = vmatpush1.msra.mxu0 0.0
    %1073 = vmatprep.subr.mxu0 0.0
    %1074 = vmatpush1.msra.mxu0 0.0
    %1075 = vmatprep.subr.mxu0 0.0
    %1076 = vmatpush1.msra.mxu0 0.0
    %1077 = vmatprep.subr.mxu0 0.0
    %1078 = vmatpush1.msra.mxu0 0.0
    %1079 = vmatprep.subr.mxu0 0.0
    %1080 = vmatpush1.msra.mxu0 0.0
    %1081 = vmatprep.subr.mxu0 0.0
    %1082 = vmatpush1.msra.mxu0 0.0
    %1083 = vmatprep.subr.mxu0 0.0
    %1084 = vmatpush1.msra.mxu0 0.0
    %1085 = vmatprep.subr.mxu0 0.0
    %1086 = vmatpush1.msra.mxu0 0.0
    %1087 = vmatprep.subr.mxu0 0.0
    %1088 = vmatpush1.msra.mxu0 0.0
    %1089 = vmatprep.subr.mxu0 0.0
    %1090 = vmatpush1.msra.mxu0 0.0
    %1091 = vmatprep.subr.mxu0 0.0
    %1092 = vmatpush1.msra.mxu0 0.0
    %1093 = vmatprep.subr.mxu0 0.0
    %1094 = vmatpush1.msra.mxu0 0.0
    %1095 = vmatprep.subr.mxu0 0.0
    %1096 = vmatpush1.msra.mxu0 0.0
    %1097 = vmatprep.subr.mxu0 0.0
    %1098 = vmatpush1.msra.mxu0 0.0
    %1099 = vmatprep.subr.mxu0 0.0
    %1100 = vmatpush1.msra.mxu0 0.0
    %1101 = vmatprep.subr.mxu0 0.0
    %1102 = vmatpush1.msra.mxu0 0.0
    %1103 = vmatprep.subr.mxu0 0.0
    %1104 = vmatpush1.msra.mxu0 0.0
    %1105 = vmatprep.subr.mxu0 0.0
    %1106 = vmatpush1.msra.mxu0 0.0
    %1107 = vmatprep.subr.mxu0 0.0
    %1108 = vmatpush1.msra.mxu0 0.0
    %1109 = vmatprep.subr.mxu0 0.0
    %1110 = vmatpush1.msra.mxu0 0.0
    %1111 = vmatprep.subr.mxu0 0.0
    %1112 = vmatpush1.msra.mxu0 0.0
    %1113 = vmatprep.subr.mxu0 0.0
    %1114 = vmatpush1.msra.mxu0 0.0
    %1115 = vmatprep.subr.mxu0 0.0
    %1116 = vmatpush1.msra.mxu0 0.0
    %1117 = vmatprep.subr.mxu0 0.0
    %1118 = vmatpush1.msra.mxu0 0.0
    %1119 = vmatprep.mubr.f32.mxu0 0.0
    %v1120 = vand.u32 %v737, 4294901760
    %v1121 = vsub.f32 %v737, %v1120
    %v1122 = vand.u32 %v1121, 4294901760
    %1123 = vmatmul.mubr.f32.gmra.mrb[0].mxu0 %v1122
    %v1124 = vpop.f32.mrb[0].mxu0
    %v1125 = vadd.f32 %v1037, %v1124
    %v1126 = vpop.f32.mrb[0].mxu0
    %1127 = vmatprep.mubr.f32.mxu0 0.0
    %v1128 = vand.u32 %v740, 4294901760
    %v1129 = vsub.f32 %v740, %v1128
    %v1130 = vand.u32 %v1129, 4294901760
    %1131 = vmatmul.mubr.f32.gmra.mrb[0].mxu0 %v1130
    %v1132 = vpop.f32.mrb[0].mxu0
    %v1133 = vadd.f32 %v1044, %v1132
    %v1134 = vpop.f32.mrb[0].mxu0
    %1135 = vdwg.mxu0
    %1136 = vmatprep.subr.mxu0 0.0
    %v1137 = vand.u32 %v720, 4294901760
    %v1138 = vsub.f32 %v720, %v1137
    %v1139 = vand.u32 %v1138, 4294901760
    %1140 = vmatpush1.msra.mxu0 %v1139
    %1141 = vmatprep.subr.mxu0 0.0
    %v1142 = vand.u32 %v721, 4294901760
    %v1143 = vsub.f32 %v721, %v1142
    %v1144 = vand.u32 %v1143, 4294901760
    %1145 = vmatpush1.msra.mxu0 %v1144
    %1146 = vmatprep.subr.mxu0 0.0
    %v1147 = vand.u32 %v722, 4294901760
    %v1148 = vsub.f32 %v722, %v1147
    %v1149 = vand.u32 %v1148, 4294901760
    %1150 = vmatpush1.msra.mxu0 %v1149
    %1151 = vmatprep.subr.mxu0 0.0
    %v1152 = vand.u32 %v723, 4294901760
    %v1153 = vsub.f32 %v723, %v1152
    %v1154 = vand.u32 %v1153, 4294901760
    %1155 = vmatpush1.msra.mxu0 %v1154
    %1156 = vmatprep.subr.mxu0 0.0
    %v1157 = vand.u32 %v724, 4294901760
    %v1158 = vsub.f32 %v724, %v1157
    %v1159 = vand.u32 %v1158, 4294901760
    %1160 = vmatpush1.msra.mxu0 %v1159
    %1161 = vmatprep.subr.mxu0 0.0
    %v1162 = vand.u32 %v725, 4294901760
    %v1163 = vsub.f32 %v725, %v1162
    %v1164 = vand.u32 %v1163, 4294901760
    %1165 = vmatpush1.msra.mxu0 %v1164
    %1166 = vmatprep.subr.mxu0 0.0
    %v1167 = vand.u32 %v726, 4294901760
    %v1168 = vsub.f32 %v726, %v1167
    %v1169 = vand.u32 %v1168, 4294901760
    %1170 = vmatpush1.msra.mxu0 %v1169
    %1171 = vmatprep.subr.mxu0 0.0
    %v1172 = vand.u32 %v727, 4294901760
    %v1173 = vsub.f32 %v727, %v1172
    %v1174 = vand.u32 %v1173, 4294901760
    %1175 = vmatpush1.msra.mxu0 %v1174
    %1176 = vmatprep.subr.mxu0 0.0
    %1177 = vmatpush1.msra.mxu0 0.0
    %1178 = vmatprep.subr.mxu0 0.0
    %1179 = vmatpush1.msra.mxu0 0.0
    %1180 = vmatprep.subr.mxu0 0.0
    %1181 = vmatpush1.msra.mxu0 0.0
    %1182 = vmatprep.subr.mxu0 0.0
    %1183 = vmatpush1.msra.mxu0 0.0
    %1184 = vmatprep.subr.mxu0 0.0
    %1185 = vmatpush1.msra.mxu0 0.0
    %1186 = vmatprep.subr.mxu0 0.0
    %1187 = vmatpush1.msra.mxu0 0.0
    %1188 = vmatprep.subr.mxu0 0.0
    %1189 = vmatpush1.msra.mxu0 0.0
    %1190 = vmatprep.subr.mxu0 0.0
    %1191 = vmatpush1.msra.mxu0 0.0
    %1192 = vmatprep.subr.mxu0 0.0
    %1193 = vmatpush1.msra.mxu0 0.0
    %1194 = vmatprep.subr.mxu0 0.0
    %1195 = vmatpush1.msra.mxu0 0.0
    %1196 = vmatprep.subr.mxu0 0.0
    %1197 = vmatpush1.msra.mxu0 0.0
    %1198 = vmatprep.subr.mxu0 0.0
    %1199 = vmatpush1.msra.mxu0 0.0
    %1200 = vmatprep.subr.mxu0 0.0
    %1201 = vmatpush1.msra.mxu0 0.0
    %1202 = vmatprep.subr.mxu0 0.0
    %1203 = vmatpush1.msra.mxu0 0.0
    %1204 = vmatprep.subr.mxu0 0.0
    %1205 = vmatpush1.msra.mxu0 0.0
    %1206 = vmatprep.subr.mxu0 0.0
    %1207 = vmatpush1.msra.mxu0 0.0
    %1208 = vmatprep.subr.mxu0 0.0
    %1209 = vmatpush1.msra.mxu0 0.0
    %1210 = vmatprep.subr.mxu0 0.0
    %1211 = vmatpush1.msra.mxu0 0.0
    %1212 = vmatprep.subr.mxu0 0.0
    %1213 = vmatpush1.msra.mxu0 0.0
    %1214 = vmatprep.subr.mxu0 0.0
    %1215 = vmatpush1.msra.mxu0 0.0
    %1216 = vmatprep.subr.mxu0 0.0
    %1217 = vmatpush1.msra.mxu0 0.0
    %1218 = vmatprep.subr.mxu0 0.0
    %1219 = vmatpush1.msra.mxu0 0.0
    %1220 = vmatprep.subr.mxu0 0.0
    %1221 = vmatpush1.msra.mxu0 0.0
    %1222 = vmatprep.subr.mxu0 0.0
    %1223 = vmatpush1.msra.mxu0 0.0
    %1224 = vmatprep.mubr.f32.mxu0 0.0
    %v1225 = vand.u32 %v737, 4294901760
    %1226 = vmatmul.mubr.f32.gmra.mrb[0].mxu0 %v1225
    %v1227 = vpop.f32.mrb[0].mxu0
    %v1228 = vadd.f32 %v1125, %v1227
    %v1229 = vpop.f32.mrb[0].mxu0
    %1230 = vmatprep.mubr.f32.mxu0 0.0
    %v1231 = vand.u32 %v740, 4294901760
    %1232 = vmatmul.mubr.f32.gmra.mrb[0].mxu0 %v1231
    %v1233 = vpop.f32.mrb[0].mxu0
    %v1234 = vadd.f32 %v1133, %v1233
    %v1235 = vpop.f32.mrb[0].mxu0
    %1236 = vdwg.mxu0
    %1237 = vmatprep.subr.mxu0 0.0
    %v1238 = vand.u32 %v720, 4294901760
    %1239 = vmatpush1.msra.mxu0 %v1238
    %1240 = vmatprep.subr.mxu0 0.0
    %v1241 = vand.u32 %v721, 4294901760
    %1242 = vmatpush1.msra.mxu0 %v1241
    %1243 = vmatprep.subr.mxu0 0.0
    %v1244 = vand.u32 %v722, 4294901760
    %1245 = vmatpush1.msra.mxu0 %v1244
    %1246 = vmatprep.subr.mxu0 0.0
    %v1247 = vand.u32 %v723, 4294901760
    %1248 = vmatpush1.msra.mxu0 %v1247
    %1249 = vmatprep.subr.mxu0 0.0
    %v1250 = vand.u32 %v724, 4294901760
    %1251 = vmatpush1.msra.mxu0 %v1250
    %1252 = vmatprep.subr.mxu0 0.0
    %v1253 = vand.u32 %v725, 4294901760
    %1254 = vmatpush1.msra.mxu0 %v1253
    %1255 = vmatprep.subr.mxu0 0.0
    %v1256 = vand.u32 %v726, 4294901760
    %1257 = vmatpush1.msra.mxu0 %v1256
    %1258 = vmatprep.subr.mxu0 0.0
    %v1259 = vand.u32 %v727, 4294901760
    %1260 = vmatpush1.msra.mxu0 %v1259
    %1261 = vmatprep.subr.mxu0 0.0
    %1262 = vmatpush1.msra.mxu0 0.0
    %1263 = vmatprep.subr.mxu0 0.0
    %1264 = vmatpush1.msra.mxu0 0.0
    %1265 = vmatprep.subr.mxu0 0.0
    %1266 = vmatpush1.msra.mxu0 0.0
    %1267 = vmatprep.subr.mxu0 0.0
    %1268 = vmatpush1.msra.mxu0 0.0
    %1269 = vmatprep.subr.mxu0 0.0
    %1270 = vmatpush1.msra.mxu0 0.0
    %1271 = vmatprep.subr.mxu0 0.0
    %1272 = vmatpush1.msra.mxu0 0.0
    %1273 = vmatprep.subr.mxu0 0.0
    %1274 = vmatpush1.msra.mxu0 0.0
    %1275 = vmatprep.subr.mxu0 0.0
    %1276 = vmatpush1.msra.mxu0 0.0
    %1277 = vmatprep.subr.mxu0 0.0
    %1278 = vmatpush1.msra.mxu0 0.0
    %1279 = vmatprep.subr.mxu0 0.0
    %1280 = vmatpush1.msra.mxu0 0.0
    %1281 = vmatprep.subr.mxu0 0.0
    %1282 = vmatpush1.msra.mxu0 0.0
    %1283 = vmatprep.subr.mxu0 0.0
    %1284 = vmatpush1.msra.mxu0 0.0
    %1285 = vmatprep.subr.mxu0 0.0
    %1286 = vmatpush1.msra.mxu0 0.0
    %1287 = vmatprep.subr.mxu0 0.0
    %1288 = vmatpush1.msra.mxu0 0.0
    %1289 = vmatprep.subr.mxu0 0.0
    %1290 = vmatpush1.msra.mxu0 0.0
    %1291 = vmatprep.subr.mxu0 0.0
    %1292 = vmatpush1.msra.mxu0 0.0
    %1293 = vmatprep.subr.mxu0 0.0
    %1294 = vmatpush1.msra.mxu0 0.0
    %1295 = vmatprep.subr.mxu0 0.0
    %1296 = vmatpush1.msra.mxu0 0.0
    %1297 = vmatprep.subr.mxu0 0.0
    %1298 = vmatpush1.msra.mxu0 0.0
    %1299 = vmatprep.subr.mxu0 0.0
    %1300 = vmatpush1.msra.mxu0 0.0
    %1301 = vmatprep.subr.mxu0 0.0
    %1302 = vmatpush1.msra.mxu0 0.0
    %1303 = vmatprep.subr.mxu0 0.0
    %1304 = vmatpush1.msra.mxu0 0.0
    %1305 = vmatprep.subr.mxu0 0.0
    %1306 = vmatpush1.msra.mxu0 0.0
    %1307 = vmatprep.subr.mxu0 0.0
    %1308 = vmatpush1.msra.mxu0 0.0
    %1309 = vmatprep.mubr.f32.mxu0 0.0
    %v1310 = vand.u32 %v737, 4294901760
    %1311 = vmatmul.mubr.f32.gmra.mrb[0].mxu0 %v1310
    %v1312 = vpop.f32.mrb[0].mxu0
    %v1313 = vadd.f32 %v1228, %v1312
    %v1314 = vpop.f32.mrb[0].mxu0
    %1315 = vmatprep.mubr.f32.mxu0 0.0
    %v1316 = vand.u32 %v740, 4294901760
    %1317 = vmatmul.mubr.f32.gmra.mrb[0].mxu0 %v1316
    %v1318 = vpop.f32.mrb[0].mxu0
    %v1319 = vadd.f32 %v1234, %v1318
    %v1320 = vpop.f32.mrb[0].mxu0
    %1321 = vdwg.mxu0
    %v1322 = vsel %vm98, %v1313, 0.0
    %v1323 = vsel %vm98, %v1319, 0.0
    %v1324 = vsel %vm649, %v1322, 0.0
    %1325 = vadd.xlane.f32.xlu0 %v1324
    %v1326 = vpop.xlane.xlu0 %1325
    %v1327 = vsel %vm649, %v1323, 0.0
    %1328 = vadd.xlane.f32.xlu0 %v1327
    %v1329 = vpop.xlane.xlu0 %1328
    %v1330 = vsel %vm98, 0.0, %v1313
    %v1331 = vsel %vm98, 0.0, %v1319
    %v1332 = vsel %vm649, %v1330, 0.0
    %1333 = vadd.xlane.f32.xlu0 %v1332
    %v1334 = vpop.xlane.xlu0 %1333
    %v1335 = vsel %vm649, %v1331, 0.0
    %1336 = vadd.xlane.f32.xlu0 %v1335
    %v1337 = vpop.xlane.xlu0 %1336
    %v1338 = vsel %vm98, %v1326, %v1334
    %v1339 = vsel %vm98, %v1329, %v1337
    %v1340 = vmul.f32 %v1338, 0.03125
    %v1341 = vmul.f32 %v1339, 0.03125
    %v1342 = vsub.f32 %v1313, %v1340
    %v1343 = vsub.f32 %v1319, %v1341
    %v1344 = vmul.f32 %v1342, %v1342
    %v1345 = vmul.f32 %v1343, %v1343
    %v1346 = vsel %vm98, %v1344, 0.0
    %v1347 = vsel %vm98, %v1345, 0.0
    %v1348 = vsel %vm649, %v1346, 0.0
    %1349 = vadd.xlane.f32.xlu0 %v1348
    %v1350 = vpop.xlane.xlu0 %1349
    %v1351 = vsel %vm649, %v1347, 0.0
    %1352 = vadd.xlane.f32.xlu0 %v1351
    %v1353 = vpop.xlane.xlu0 %1352
    %v1354 = vsel %vm98, 0.0, %v1344
    %v1355 = vsel %vm98, 0.0, %v1345
    %v1356 = vsel %vm649, %v1354, 0.0
    %1357 = vadd.xlane.f32.xlu0 %v1356
    %v1358 = vpop.xlane.xlu0 %1357
    %v1359 = vsel %vm649, %v1355, 0.0
    %1360 = vadd.xlane.f32.xlu0 %v1359
    %v1361 = vpop.xlane.xlu0 %1360
    %v1362 = vsel %vm98, %v1350, %v1358
    %v1363 = vsel %vm98, %v1353, %v1361
    %v1364 = vmul.f32 %v1362, 0.03125
    %v1365 = vmul.f32 %v1363, 0.03125
    %v1366 = vadd.f32 %v1364, 1e-05
    %v1367 = vadd.f32 %v1365, 1e-05
    %v1368 = vrsqrt.pop %v1366
    %v1369 = vrsqrt.pop %v1367
    %v1370 = vmul.f32 %v1342, %v1368
    %v1371 = vmul.f32 %v1343, %v1369
    %v1372 = vmul.f32 %v1370, %v702
    %v1373 = vmul.f32 %v1371, %v702
    %v1374 = vadd.f32 %v1372, %v710
    %v1375 = vadd.f32 %v1373, %v710
    %vm1376 = vcmp.gt.f32.partialorder %v1374, 0.0
    %vm1377 = vcmp.gt.f32.partialorder %v1375, 0.0
    %v1378 = vmul.f32 %v1374, 0.2
    %v1379 = vmul.f32 %v1375, 0.2
    %v1380 = vsel %vm1376, %v1374, %v1378
    %v1381 = vsel %vm1377, %v1375, %v1379
    %s1382 = scalar_lea.vmem [#allocation7], 64
    %v1383 = vld [vmem:[%s1382] sm:$0xff]
    %v1384 = vld [vmem:[%s1382 + $0x8] sm:$0xff]
    %v1385 = vld [vmem:[%s1382 + $0x10] sm:$0xff]
    %v1386 = vld [vmem:[%s1382 + $0x18] sm:$0xff]
    %v1387 = vld [vmem:[%s1382 + $0x20] sm:$0xff]
    %v1388 = vld [vmem:[%s1382 + $0x28] sm:$0xff]
    %v1389 = vld [vmem:[%s1382 + $0x30] sm:$0xff]
    %v1390 = vld [vmem:[%s1382 + $0x38] sm:$0xff]
    %s1391 = scalar_lea.vmem %s3, 2
    %v1392 = vld [vmem:[%s1391] sm:$0x1]
    %v1394 = vlaneseq
    %v1395 = vshrl.u32 %v1394, 7
    %v1396 = vsub.s32 0, %v1395
    %v1397 = vrot.slane %v1392, %v1396
    %v1400 = vsel %vm649, %v1380, 0
    %v1403 = vsel %vm649, %v1381, 0
    %1405 = vmatprep.subr.mxu0 0.0
    %v1406 = vand.u32 %v1383, 4294901760
    %1407 = vmatpush1.msra.mxu0 %v1406
    %1408 = vmatprep.subr.mxu0 0.0
    %v1409 = vand.u32 %v1384, 4294901760
    %1410 = vmatpush1.msra.mxu0 %v1409
    %1411 = vmatprep.subr.mxu0 0.0
    %v1412 = vand.u32 %v1385, 4294901760
    %1413 = vmatpush1.msra.mxu0 %v1412
    %1414 = vmatprep.subr.mxu0 0.0
    %v1415 = vand.u32 %v1386, 4294901760
    %1416 = vmatpush1.msra.mxu0 %v1415
    %1417 = vmatprep.subr.mxu0 0.0
    %v1418 = vand.u32 %v1387, 4294901760
    %1419 = vmatpush1.msra.mxu0 %v1418
    %1420 = vmatprep.subr.mxu0 0.0
    %v1421 = vand.u32 %v1388, 4294901760
    %1422 = vmatpush1.msra.mxu0 %v1421
    %1423 = vmatprep.subr.mxu0 0.0
    %v1424 = vand.u32 %v1389, 4294901760
    %1425 = vmatpush1.msra.mxu0 %v1424
    %1426 = vmatprep.subr.mxu0 0.0
    %v1427 = vand.u32 %v1390, 4294901760
    %1428 = vmatpush1.msra.mxu0 %v1427
    %1429 = vmatprep.subr.mxu0 0.0
    %1430 = vmatpush1.msra.mxu0 0.0
    %1431 = vmatprep.subr.mxu0 0.0
    %1432 = vmatpush1.msra.mxu0 0.0
    %1433 = vmatprep.subr.mxu0 0.0
    %1434 = vmatpush1.msra.mxu0 0.0
    %1435 = vmatprep.subr.mxu0 0.0
    %1436 = vmatpush1.msra.mxu0 0.0
    %1437 = vmatprep.subr.mxu0 0.0
    %1438 = vmatpush1.msra.mxu0 0.0
    %1439 = vmatprep.subr.mxu0 0.0
    %1440 = vmatpush1.msra.mxu0 0.0
    %1441 = vmatprep.subr.mxu0 0.0
    %1442 = vmatpush1.msra.mxu0 0.0
    %1443 = vmatprep.subr.mxu0 0.0
    %1444 = vmatpush1.msra.mxu0 0.0
    %1445 = vmatprep.subr.mxu0 0.0
    %1446 = vmatpush1.msra.mxu0 0.0
    %1447 = vmatprep.subr.mxu0 0.0
    %1448 = vmatpush1.msra.mxu0 0.0
    %1449 = vmatprep.subr.mxu0 0.0
    %1450 = vmatpush1.msra.mxu0 0.0
    %1451 = vmatprep.subr.mxu0 0.0
    %1452 = vmatpush1.msra.mxu0 0.0
    %1453 = vmatprep.subr.mxu0 0.0
    %1454 = vmatpush1.msra.mxu0 0.0
    %1455 = vmatprep.subr.mxu0 0.0
    %1456 = vmatpush1.msra.mxu0 0.0
    %1457 = vmatprep.subr.mxu0 0.0
    %1458 = vmatpush1.msra.mxu0 0.0
    %1459 = vmatprep.subr.mxu0 0.0
    %1460 = vmatpush1.msra.mxu0 0.0
    %1461 = vmatprep.subr.mxu0 0.0
    %1462 = vmatpush1.msra.mxu0 0.0
    %1463 = vmatprep.subr.mxu0 0.0
    %1464 = vmatpush1.msra.mxu0 0.0
    %1465 = vmatprep.subr.mxu0 0.0
    %1466 = vmatpush1.msra.mxu0 0.0
    %1467 = vmatprep.subr.mxu0 0.0
    %1468 = vmatpush1.msra.mxu0 0.0
    %1469 = vmatprep.subr.mxu0 0.0
    %1470 = vmatpush1.msra.mxu0 0.0
    %1471 = vmatprep.subr.mxu0 0.0
    %1472 = vmatpush1.msra.mxu0 0.0
    %1473 = vmatprep.subr.mxu0 0.0
    %1474 = vmatpush1.msra.mxu0 0.0
    %1475 = vmatprep.subr.mxu0 0.0
    %1476 = vmatpush1.msra.mxu0 0.0
    %1477 = vmatprep.mubr.f32.mxu0 0.0
    %v1478 = vand.u32 %v1400, 4294901760
    %v1479 = vsub.f32 %v1400, %v1478
    %v1480 = vand.u32 %v1479, 4294901760
    %v1481 = vsub.f32 %v1479, %v1480
    %v1482 = vand.u32 %v1481, 4294901760
    %1483 = vmatmul.mubr.f32.gmra.mrb[0].mxu0 %v1482
    %v1484 = vpop.f32.mrb[0].mxu0
    %v1485 = vadd.f32 %v1397, %v1484
    %v1486 = vpop.f32.mrb[0].mxu0
    %1487 = vmatprep.mubr.f32.mxu0 0.0
    %v1488 = vand.u32 %v1403, 4294901760
    %v1489 = vsub.f32 %v1403, %v1488
    %v1490 = vand.u32 %v1489, 4294901760
    %v1491 = vsub.f32 %v1489, %v1490
    %v1492 = vand.u32 %v1491, 4294901760
    %1493 = vmatmul.mubr.f32.gmra.mrb[0].mxu0 %v1492
    %v1494 = vpop.f32.mrb[0].mxu0
    %v1495 = vadd.f32 %v1397, %v1494
    %v1496 = vpop.f32.mrb[0].mxu0
    %1497 = vdwg.mxu0
    %1498 = vmatprep.subr.mxu0 0.0
    %v1499 = vand.u32 %v1383, 4294901760
    %v1500 = vsub.f32 %v1383, %v1499
    %v1501 = vand.u32 %v1500, 4294901760
    %v1502 = vsub.f32 %v1500, %v1501
    %v1503 = vand.u32 %v1502, 4294901760
    %1504 = vmatpush1.msra.mxu0 %v1503
    %1505 = vmatprep.subr.mxu0 0.0
    %v1506 = vand.u32 %v1384, 4294901760
    %v1507 = vsub.f32 %v1384, %v1506
    %v1508 = vand.u32 %v1507, 4294901760
    %v1509 = vsub.f32 %v1507, %v1508
    %v1510 = vand.u32 %v1509, 4294901760
    %1511 = vmatpush1.msra.mxu0 %v1510
    %1512 = vmatprep.subr.mxu0 0.0
    %v1513 = vand.u32 %v1385, 4294901760
    %v1514 = vsub.f32 %v1385, %v1513
    %v1515 = vand.u32 %v1514, 4294901760
    %v1516 = vsub.f32 %v1514, %v1515
    %v1517 = vand.u32 %v1516, 4294901760
    %1518 = vmatpush1.msra.mxu0 %v1517
    %1519 = vmatprep.subr.mxu0 0.0
    %v1520 = vand.u32 %v1386, 4294901760
    %v1521 = vsub.f32 %v1386, %v1520
    %v1522 = vand.u32 %v1521, 4294901760
    %v1523 = vsub.f32 %v1521, %v1522
    %v1524 = vand.u32 %v1523, 4294901760
    %1525 = vmatpush1.msra.mxu0 %v1524
    %1526 = vmatprep.subr.mxu0 0.0
    %v1527 = vand.u32 %v1387, 4294901760
    %v1528 = vsub.f32 %v1387, %v1527
    %v1529 = vand.u32 %v1528, 4294901760
    %v1530 = vsub.f32 %v1528, %v1529
    %v1531 = vand.u32 %v1530, 4294901760
    %1532 = vmatpush1.msra.mxu0 %v1531
    %1533 = vmatprep.subr.mxu0 0.0
    %v1534 = vand.u32 %v1388, 4294901760
    %v1535 = vsub.f32 %v1388, %v1534
    %v1536 = vand.u32 %v1535, 4294901760
    %v1537 = vsub.f32 %v1535, %v1536
    %v1538 = vand.u32 %v1537, 4294901760
    %1539 = vmatpush1.msra.mxu0 %v1538
    %1540 = vmatprep.subr.mxu0 0.0
    %v1541 = vand.u32 %v1389, 4294901760
    %v1542 = vsub.f32 %v1389, %v1541
    %v1543 = vand.u32 %v1542, 4294901760
    %v1544 = vsub.f32 %v1542, %v1543
    %v1545 = vand.u32 %v1544, 4294901760
    %1546 = vmatpush1.msra.mxu0 %v1545
    %1547 = vmatprep.subr.mxu0 0.0
    %v1548 = vand.u32 %v1390, 4294901760
    %v1549 = vsub.f32 %v1390, %v1548
    %v1550 = vand.u32 %v1549, 4294901760
    %v1551 = vsub.f32 %v1549, %v1550
    %v1552 = vand.u32 %v1551, 4294901760
    %1553 = vmatpush1.msra.mxu0 %v1552
    %1554 = vmatprep.subr.mxu0 0.0
    %1555 = vmatpush1.msra.mxu0 0.0
    %1556 = vmatprep.subr.mxu0 0.0
    %1557 = vmatpush1.msra.mxu0 0.0
    %1558 = vmatprep.subr.mxu0 0.0
    %1559 = vmatpush1.msra.mxu0 0.0
    %1560 = vmatprep.subr.mxu0 0.0
    %1561 = vmatpush1.msra.mxu0 0.0
    %1562 = vmatprep.subr.mxu0 0.0
    %1563 = vmatpush1.msra.mxu0 0.0
    %1564 = vmatprep.subr.mxu0 0.0
    %1565 = vmatpush1.msra.mxu0 0.0
    %1566 = vmatprep.subr.mxu0 0.0
    %1567 = vmatpush1.msra.mxu0 0.0
    %1568 = vmatprep.subr.mxu0 0.0
    %1569 = vmatpush1.msra.mxu0 0.0
    %1570 = vmatprep.subr.mxu0 0.0
    %1571 = vmatpush1.msra.mxu0 0.0
    %1572 = vmatprep.subr.mxu0 0.0
    %1573 = vmatpush1.msra.mxu0 0.0
    %1574 = vmatprep.subr.mxu0 0.0
    %1575 = vmatpush1.msra.mxu0 0.0
    %1576 = vmatprep.subr.mxu0 0.0
    %1577 = vmatpush1.msra.mxu0 0.0
    %1578 = vmatprep.subr.mxu0 0.0
    %1579 = vmatpush1.msra.mxu0 0.0
    %1580 = vmatprep.subr.mxu0 0.0
    %1581 = vmatpush1.msra.mxu0 0.0
    %1582 = vmatprep.subr.mxu0 0.0
    %1583 = vmatpush1.msra.mxu0 0.0
    %1584 = vmatprep.subr.mxu0 0.0
    %1585 = vmatpush1.msra.mxu0 0.0
    %1586 = vmatprep.subr.mxu0 0.0
    %1587 = vmatpush1.msra.mxu0 0.0
    %1588 = vmatprep.subr.mxu0 0.0
    %1589 = vmatpush1.msra.mxu0 0.0
    %1590 = vmatprep.subr.mxu0 0.0
    %1591 = vmatpush1.msra.mxu0 0.0
    %1592 = vmatprep.subr.mxu0 0.0
    %1593 = vmatpush1.msra.mxu0 0.0
    %1594 = vmatprep.subr.mxu0 0.0
    %1595 = vmatpush1.msra.mxu0 0.0
    %1596 = vmatprep.subr.mxu0 0.0
    %1597 = vmatpush1.msra.mxu0 0.0
    %1598 = vmatprep.subr.mxu0 0.0
    %1599 = vmatpush1.msra.mxu0 0.0
    %1600 = vmatprep.subr.mxu0 0.0
    %1601 = vmatpush1.msra.mxu0 0.0
    %1602 = vmatprep.mubr.f32.mxu0 0.0
    %v1603 = vand.u32 %v1400, 4294901760
    %1604 = vmatmul.mubr.f32.gmra.mrb[0].mxu0 %v1603
    %v1605 = vpop.f32.mrb[0].mxu0
    %v1606 = vadd.f32 %v1485, %v1605
    %v1607 = vpop.f32.mrb[0].mxu0
    %1608 = vmatprep.mubr.f32.mxu0 0.0
    %v1609 = vand.u32 %v1403, 4294901760
    %1610 = vmatmul.mubr.f32.gmra.mrb[0].mxu0 %v1609
    %v1611 = vpop.f32.mrb[0].mxu0
    %v1612 = vadd.f32 %v1495, %v1611
    %v1613 = vpop.f32.mrb[0].mxu0
    %1614 = vdwg.mxu0
    %1615 = vmatprep.subr.mxu0 0.0
    %v1616 = vand.u32 %v1383, 4294901760
    %v1617 = vsub.f32 %v1383, %v1616
    %1618 = vmatpush1.msra.mxu0 %v1617
    %1619 = vmatprep.subr.mxu0 0.0
    %v1620 = vand.u32 %v1384, 4294901760
    %v1621 = vsub.f32 %v1384, %v1620
    %1622 = vmatpush1.msra.mxu0 %v1621
    %1623 = vmatprep.subr.mxu0 0.0
    %v1624 = vand.u32 %v1385, 4294901760
    %v1625 = vsub.f32 %v1385, %v1624
    %1626 = vmatpush1.msra.mxu0 %v1625
    %1627 = vmatprep.subr.mxu0 0.0
    %v1628 = vand.u32 %v1386, 4294901760
    %v1629 = vsub.f32 %v1386, %v1628
    %1630 = vmatpush1.msra.mxu0 %v1629
    %1631 = vmatprep.subr.mxu0 0.0
    %v1632 = vand.u32 %v1387, 4294901760
    %v1633 = vsub.f32 %v1387, %v1632
    %1634 = vmatpush1.msra.mxu0 %v1633
    %1635 = vmatprep.subr.mxu0 0.0
    %v1636 = vand.u32 %v1388, 4294901760
    %v1637 = vsub.f32 %v1388, %v1636
    %1638 = vmatpush1.msra.mxu0 %v1637
    %1639 = vmatprep.subr.mxu0 0.0
    %v1640 = vand.u32 %v1389, 4294901760
    %v1641 = vsub.f32 %v1389, %v1640
    %1642 = vmatpush1.msra.mxu0 %v1641
    %1643 = vmatprep.subr.mxu0 0.0
    %v1644 = vand.u32 %v1390, 4294901760
    %v1645 = vsub.f32 %v1390, %v1644
    %1646 = vmatpush1.msra.mxu0 %v1645
    %1647 = vmatprep.subr.mxu0 0.0
    %1648 = vmatpush1.msra.mxu0 0.0
    %1649 = vmatprep.subr.mxu0 0.0
    %1650 = vmatpush1.msra.mxu0 0.0
    %1651 = vmatprep.subr.mxu0 0.0
    %1652 = vmatpush1.msra.mxu0 0.0
    %1653 = vmatprep.subr.mxu0 0.0
    %1654 = vmatpush1.msra.mxu0 0.0
    %1655 = vmatprep.subr.mxu0 0.0
    %1656 = vmatpush1.msra.mxu0 0.0
    %1657 = vmatprep.subr.mxu0 0.0
    %1658 = vmatpush1.msra.mxu0 0.0
    %1659 = vmatprep.subr.mxu0 0.0
    %1660 = vmatpush1.msra.mxu0 0.0
    %1661 = vmatprep.subr.mxu0 0.0
    %1662 = vmatpush1.msra.mxu0 0.0
    %1663 = vmatprep.subr.mxu0 0.0
    %1664 = vmatpush1.msra.mxu0 0.0
    %1665 = vmatprep.subr.mxu0 0.0
    %1666 = vmatpush1.msra.mxu0 0.0
    %1667 = vmatprep.subr.mxu0 0.0
    %1668 = vmatpush1.msra.mxu0 0.0
    %1669 = vmatprep.subr.mxu0 0.0
    %1670 = vmatpush1.msra.mxu0 0.0
    %1671 = vmatprep.subr.mxu0 0.0
    %1672 = vmatpush1.msra.mxu0 0.0
    %1673 = vmatprep.subr.mxu0 0.0
    %1674 = vmatpush1.msra.mxu0 0.0
    %1675 = vmatprep.subr.mxu0 0.0
    %1676 = vmatpush1.msra.mxu0 0.0
    %1677 = vmatprep.subr.mxu0 0.0
    %1678 = vmatpush1.msra.mxu0 0.0
    %1679 = vmatprep.subr.mxu0 0.0
    %1680 = vmatpush1.msra.mxu0 0.0
    %1681 = vmatprep.subr.mxu0 0.0
    %1682 = vmatpush1.msra.mxu0 0.0
    %1683 = vmatprep.subr.mxu0 0.0
    %1684 = vmatpush1.msra.mxu0 0.0
    %1685 = vmatprep.subr.mxu0 0.0
    %1686 = vmatpush1.msra.mxu0 0.0
    %1687 = vmatprep.subr.mxu0 0.0
    %1688 = vmatpush1.msra.mxu0 0.0
    %1689 = vmatprep.subr.mxu0 0.0
    %1690 = vmatpush1.msra.mxu0 0.0
    %1691 = vmatprep.subr.mxu0 0.0
    %1692 = vmatpush1.msra.mxu0 0.0
    %1693 = vmatprep.subr.mxu0 0.0
    %1694 = vmatpush1.msra.mxu0 0.0
    %1695 = vmatprep.mubr.f32.mxu0 0.0
    %v1696 = vand.u32 %v1400, 4294901760
    %v1697 = vsub.f32 %v1400, %v1696
    %1698 = vmatmul.mubr.f32.gmra.mrb[0].mxu0 %v1697
    %v1699 = vpop.f32.mrb[0].mxu0
    %v1700 = vadd.f32 %v1606, %v1699
    %v1701 = vpop.f32.mrb[0].mxu0
    %1702 = vmatprep.mubr.f32.mxu0 0.0
    %v1703 = vand.u32 %v1403, 4294901760
    %v1704 = vsub.f32 %v1403, %v1703
    %1705 = vmatmul.mubr.f32.gmra.mrb[0].mxu0 %v1704
    %v1706 = vpop.f32.mrb[0].mxu0
    %v1707 = vadd.f32 %v1612, %v1706
    %v1708 = vpop.f32.mrb[0].mxu0
    %1709 = vdwg.mxu0
    %1710 = vmatprep.subr.mxu0 0.0
    %v1711 = vand.u32 %v1383, 4294901760
    %1712 = vmatpush1.msra.mxu0 %v1711
    %1713 = vmatprep.subr.mxu0 0.0
    %v1714 = vand.u32 %v1384, 4294901760
    %1715 = vmatpush1.msra.mxu0 %v1714
    %1716 = vmatprep.subr.mxu0 0.0
    %v1717 = vand.u32 %v1385, 4294901760
    %1718 = vmatpush1.msra.mxu0 %v1717
    %1719 = vmatprep.subr.mxu0 0.0
    %v1720 = vand.u32 %v1386, 4294901760
    %1721 = vmatpush1.msra.mxu0 %v1720
    %1722 = vmatprep.subr.mxu0 0.0
    %v1723 = vand.u32 %v1387, 4294901760
    %1724 = vmatpush1.msra.mxu0 %v1723
    %1725 = vmatprep.subr.mxu0 0.0
    %v1726 = vand.u32 %v1388, 4294901760
    %1727 = vmatpush1.msra.mxu0 %v1726
    %1728 = vmatprep.subr.mxu0 0.0
    %v1729 = vand.u32 %v1389, 4294901760
    %1730 = vmatpush1.msra.mxu0 %v1729
    %1731 = vmatprep.subr.mxu0 0.0
    %v1732 = vand.u32 %v1390, 4294901760
    %1733 = vmatpush1.msra.mxu0 %v1732
    %1734 = vmatprep.subr.mxu0 0.0
    %1735 = vmatpush1.msra.mxu0 0.0
    %1736 = vmatprep.subr.mxu0 0.0
    %1737 = vmatpush1.msra.mxu0 0.0
    %1738 = vmatprep.subr.mxu0 0.0
    %1739 = vmatpush1.msra.mxu0 0.0
    %1740 = vmatprep.subr.mxu0 0.0
    %1741 = vmatpush1.msra.mxu0 0.0
    %1742 = vmatprep.subr.mxu0 0.0
    %1743 = vmatpush1.msra.mxu0 0.0
    %1744 = vmatprep.subr.mxu0 0.0
    %1745 = vmatpush1.msra.mxu0 0.0
    %1746 = vmatprep.subr.mxu0 0.0
    %1747 = vmatpush1.msra.mxu0 0.0
    %1748 = vmatprep.subr.mxu0 0.0
    %1749 = vmatpush1.msra.mxu0 0.0
    %1750 = vmatprep.subr.mxu0 0.0
    %1751 = vmatpush1.msra.mxu0 0.0
    %1752 = vmatprep.subr.mxu0 0.0
    %1753 = vmatpush1.msra.mxu0 0.0
    %1754 = vmatprep.subr.mxu0 0.0
    %1755 = vmatpush1.msra.mxu0 0.0
    %1756 = vmatprep.subr.mxu0 0.0
    %1757 = vmatpush1.msra.mxu0 0.0
    %1758 = vmatprep.subr.mxu0 0.0
    %1759 = vmatpush1.msra.mxu0 0.0
    %1760 = vmatprep.subr.mxu0 0.0
    %1761 = vmatpush1.msra.mxu0 0.0
    %1762 = vmatprep.subr.mxu0 0.0
    %1763 = vmatpush1.msra.mxu0 0.0
    %1764 = vmatprep.subr.mxu0 0.0
    %1765 = vmatpush1.msra.mxu0 0.0
    %1766 = vmatprep.subr.mxu0 0.0
    %1767 = vmatpush1.msra.mxu0 0.0
    %1768 = vmatprep.subr.mxu0 0.0
    %1769 = vmatpush1.msra.mxu0 0.0
    %1770 = vmatprep.subr.mxu0 0.0
    %1771 = vmatpush1.msra.mxu0 0.0
    %1772 = vmatprep.subr.mxu0 0.0
    %1773 = vmatpush1.msra.mxu0 0.0
    %1774 = vmatprep.subr.mxu0 0.0
    %1775 = vmatpush1.msra.mxu0 0.0
    %1776 = vmatprep.subr.mxu0 0.0
    %1777 = vmatpush1.msra.mxu0 0.0
    %1778 = vmatprep.subr.mxu0 0.0
    %1779 = vmatpush1.msra.mxu0 0.0
    %1780 = vmatprep.subr.mxu0 0.0
    %1781 = vmatpush1.msra.mxu0 0.0
    %1782 = vmatprep.mubr.f32.mxu0 0.0
    %v1783 = vand.u32 %v1400, 4294901760
    %v1784 = vsub.f32 %v1400, %v1783
    %v1785 = vand.u32 %v1784, 4294901760
    %1786 = vmatmul.mubr.f32.gmra.mrb[0].mxu0 %v1785
    %v1787 = vpop.f32.mrb[0].mxu0
    %v1788 = vadd.f32 %v1700, %v1787
    %v1789 = vpop.f32.mrb[0].mxu0
    %1790 = vmatprep.mubr.f32.mxu0 0.0
    %v1791 = vand.u32 %v1403, 4294901760
    %v1792 = vsub.f32 %v1403, %v1791
    %v1793 = vand.u32 %v1792, 4294901760
    %1794 = vmatmul.mubr.f32.gmra.mrb[0].mxu0 %v1793
    %v1795 = vpop.f32.mrb[0].mxu0
    %v1796 = vadd.f32 %v1707, %v1795
    %v1797 = vpop.f32.mrb[0].mxu0
    %1798 = vdwg.mxu0
    %1799 = vmatprep.subr.mxu0 0.0
    %v1800 = vand.u32 %v1383, 4294901760
    %v1801 = vsub.f32 %v1383, %v1800
    %v1802 = vand.u32 %v1801, 4294901760
    %1803 = vmatpush1.msra.mxu0 %v1802
    %1804 = vmatprep.subr.mxu0 0.0
    %v1805 = vand.u32 %v1384, 4294901760
    %v1806 = vsub.f32 %v1384, %v1805
    %v1807 = vand.u32 %v1806, 4294901760
    %1808 = vmatpush1.msra.mxu0 %v1807
    %1809 = vmatprep.subr.mxu0 0.0
    %v1810 = vand.u32 %v1385, 4294901760
    %v1811 = vsub.f32 %v1385, %v1810
    %v1812 = vand.u32 %v1811, 4294901760
    %1813 = vmatpush1.msra.mxu0 %v1812
    %1814 = vmatprep.subr.mxu0 0.0
    %v1815 = vand.u32 %v1386, 4294901760
    %v1816 = vsub.f32 %v1386, %v1815
    %v1817 = vand.u32 %v1816, 4294901760
    %1818 = vmatpush1.msra.mxu0 %v1817
    %1819 = vmatprep.subr.mxu0 0.0
    %v1820 = vand.u32 %v1387, 4294901760
    %v1821 = vsub.f32 %v1387, %v1820
    %v1822 = vand.u32 %v1821, 4294901760
    %1823 = vmatpush1.msra.mxu0 %v1822
    %1824 = vmatprep.subr.mxu0 0.0
    %v1825 = vand.u32 %v1388, 4294901760
    %v1826 = vsub.f32 %v1388, %v1825
    %v1827 = vand.u32 %v1826, 4294901760
    %1828 = vmatpush1.msra.mxu0 %v1827
    %1829 = vmatprep.subr.mxu0 0.0
    %v1830 = vand.u32 %v1389, 4294901760
    %v1831 = vsub.f32 %v1389, %v1830
    %v1832 = vand.u32 %v1831, 4294901760
    %1833 = vmatpush1.msra.mxu0 %v1832
    %1834 = vmatprep.subr.mxu0 0.0
    %v1835 = vand.u32 %v1390, 4294901760
    %v1836 = vsub.f32 %v1390, %v1835
    %v1837 = vand.u32 %v1836, 4294901760
    %1838 = vmatpush1.msra.mxu0 %v1837
    %1839 = vmatprep.subr.mxu0 0.0
    %1840 = vmatpush1.msra.mxu0 0.0
    %1841 = vmatprep.subr.mxu0 0.0
    %1842 = vmatpush1.msra.mxu0 0.0
    %1843 = vmatprep.subr.mxu0 0.0
    %1844 = vmatpush1.msra.mxu0 0.0
    %1845 = vmatprep.subr.mxu0 0.0
    %1846 = vmatpush1.msra.mxu0 0.0
    %1847 = vmatprep.subr.mxu0 0.0
    %1848 = vmatpush1.msra.mxu0 0.0
    %1849 = vmatprep.subr.mxu0 0.0
    %1850 = vmatpush1.msra.mxu0 0.0
    %1851 = vmatprep.subr.mxu0 0.0
    %1852 = vmatpush1.msra.mxu0 0.0
    %1853 = vmatprep.subr.mxu0 0.0
    %1854 = vmatpush1.msra.mxu0 0.0
    %1855 = vmatprep.subr.mxu0 0.0
    %1856 = vmatpush1.msra.mxu0 0.0
    %1857 = vmatprep.subr.mxu0 0.0
    %1858 = vmatpush1.msra.mxu0 0.0
    %1859 = vmatprep.subr.mxu0 0.0
    %1860 = vmatpush1.msra.mxu0 0.0
    %1861 = vmatprep.subr.mxu0 0.0
    %1862 = vmatpush1.msra.mxu0 0.0
    %1863 = vmatprep.subr.mxu0 0.0
    %1864 = vmatpush1.msra.mxu0 0.0
    %1865 = vmatprep.subr.mxu0 0.0
    %1866 = vmatpush1.msra.mxu0 0.0
    %1867 = vmatprep.subr.mxu0 0.0
    %1868 = vmatpush1.msra.mxu0 0.0
    %1869 = vmatprep.subr.mxu0 0.0
    %1870 = vmatpush1.msra.mxu0 0.0
    %1871 = vmatprep.subr.mxu0 0.0
    %1872 = vmatpush1.msra.mxu0 0.0
    %1873 = vmatprep.subr.mxu0 0.0
    %1874 = vmatpush1.msra.mxu0 0.0
    %1875 = vmatprep.subr.mxu0 0.0
    %1876 = vmatpush1.msra.mxu0 0.0
    %1877 = vmatprep.subr.mxu0 0.0
    %1878 = vmatpush1.msra.mxu0 0.0
    %1879 = vmatprep.subr.mxu0 0.0
    %1880 = vmatpush1.msra.mxu0 0.0
    %1881 = vmatprep.subr.mxu0 0.0
    %1882 = vmatpush1.msra.mxu0 0.0
    %1883 = vmatprep.subr.mxu0 0.0
    %1884 = vmatpush1.msra.mxu0 0.0
    %1885 = vmatprep.subr.mxu0 0.0
    %1886 = vmatpush1.msra.mxu0 0.0
    %1887 = vmatprep.mubr.f32.mxu0 0.0
    %v1888 = vand.u32 %v1400, 4294901760
    %1889 = vmatmul.mubr.f32.gmra.mrb[0].mxu0 %v1888
    %v1890 = vpop.f32.mrb[0].mxu0
    %v1891 = vadd.f32 %v1788, %v1890
    %v1892 = vpop.f32.mrb[0].mxu0
    %1893 = vmatprep.mubr.f32.mxu0 0.0
    %v1894 = vand.u32 %v1403, 4294901760
    %1895 = vmatmul.mubr.f32.gmra.mrb[0].mxu0 %v1894
    %v1896 = vpop.f32.mrb[0].mxu0
    %v1897 = vadd.f32 %v1796, %v1896
    %v1898 = vpop.f32.mrb[0].mxu0
    %1899 = vdwg.mxu0
    %1900 = vmatprep.subr.mxu0 0.0
    %v1901 = vand.u32 %v1383, 4294901760
    %1902 = vmatpush1.msra.mxu0 %v1901
    %1903 = vmatprep.subr.mxu0 0.0
    %v1904 = vand.u32 %v1384, 4294901760
    %1905 = vmatpush1.msra.mxu0 %v1904
    %1906 = vmatprep.subr.mxu0 0.0
    %v1907 = vand.u32 %v1385, 4294901760
    %1908 = vmatpush1.msra.mxu0 %v1907
    %1909 = vmatprep.subr.mxu0 0.0
    %v1910 = vand.u32 %v1386, 4294901760
    %1911 = vmatpush1.msra.mxu0 %v1910
    %1912 = vmatprep.subr.mxu0 0.0
    %v1913 = vand.u32 %v1387, 4294901760
    %1914 = vmatpush1.msra.mxu0 %v1913
    %1915 = vmatprep.subr.mxu0 0.0
    %v1916 = vand.u32 %v1388, 4294901760
    %1917 = vmatpush1.msra.mxu0 %v1916
    %1918 = vmatprep.subr.mxu0 0.0
    %v1919 = vand.u32 %v1389, 4294901760
    %1920 = vmatpush1.msra.mxu0 %v1919
    %1921 = vmatprep.subr.mxu0 0.0
    %v1922 = vand.u32 %v1390, 4294901760
    %1923 = vmatpush1.msra.mxu0 %v1922
    %1924 = vmatprep.subr.mxu0 0.0
    %1925 = vmatpush1.msra.mxu0 0.0
    %1926 = vmatprep.subr.mxu0 0.0
    %1927 = vmatpush1.msra.mxu0 0.0
    %1928 = vmatprep.subr.mxu0 0.0
    %1929 = vmatpush1.msra.mxu0 0.0
    %1930 = vmatprep.subr.mxu0 0.0
    %1931 = vmatpush1.msra.mxu0 0.0
    %1932 = vmatprep.subr.mxu0 0.0
    %1933 = vmatpush1.msra.mxu0 0.0
    %1934 = vmatprep.subr.mxu0 0.0
    %1935 = vmatpush1.msra.mxu0 0.0
    %1936 = vmatprep.subr.mxu0 0.0
    %1937 = vmatpush1.msra.mxu0 0.0
    %1938 = vmatprep.subr.mxu0 0.0
    %1939 = vmatpush1.msra.mxu0 0.0
    %1940 = vmatprep.subr.mxu0 0.0
    %1941 = vmatpush1.msra.mxu0 0.0
    %1942 = vmatprep.subr.mxu0 0.0
    %1943 = vmatpush1.msra.mxu0 0.0
    %1944 = vmatprep.subr.mxu0 0.0
    %1945 = vmatpush1.msra.mxu0 0.0
    %1946 = vmatprep.subr.mxu0 0.0
    %1947 = vmatpush1.msra.mxu0 0.0
    %1948 = vmatprep.subr.mxu0 0.0
    %1949 = vmatpush1.msra.mxu0 0.0
    %1950 = vmatprep.subr.mxu0 0.0
    %1951 = vmatpush1.msra.mxu0 0.0
    %1952 = vmatprep.subr.mxu0 0.0
    %1953 = vmatpush1.msra.mxu0 0.0
    %1954 = vmatprep.subr.mxu0 0.0
    %1955 = vmatpush1.msra.mxu0 0.0
    %1956 = vmatprep.subr.mxu0 0.0
    %1957 = vmatpush1.msra.mxu0 0.0
    %1958 = vmatprep.subr.mxu0 0.0
    %1959 = vmatpush1.msra.mxu0 0.0
    %1960 = vmatprep.subr.mxu0 0.0
    %1961 = vmatpush1.msra.mxu0 0.0
    %1962 = vmatprep.subr.mxu0 0.0
    %1963 = vmatpush1.msra.mxu0 0.0
    %1964 = vmatprep.subr.mxu0 0.0
    %1965 = vmatpush1.msra.mxu0 0.0
    %1966 = vmatprep.subr.mxu0 0.0
    %1967 = vmatpush1.msra.mxu0 0.0
    %1968 = vmatprep.subr.mxu0 0.0
    %1969 = vmatpush1.msra.mxu0 0.0
    %1970 = vmatprep.subr.mxu0 0.0
    %1971 = vmatpush1.msra.mxu0 0.0
    %1972 = vmatprep.mubr.f32.mxu0 0.0
    %v1973 = vand.u32 %v1400, 4294901760
    %1974 = vmatmul.mubr.f32.gmra.mrb[0].mxu0 %v1973
    %v1975 = vpop.f32.mrb[0].mxu0
    %v1976 = vadd.f32 %v1891, %v1975
    %v1977 = vpop.f32.mrb[0].mxu0
    %1978 = vmatprep.mubr.f32.mxu0 0.0
    %v1979 = vand.u32 %v1403, 4294901760
    %1980 = vmatmul.mubr.f32.gmra.mrb[0].mxu0 %v1979
    %v1981 = vpop.f32.mrb[0].mxu0
    %v1982 = vadd.f32 %v1897, %v1981
    %v1983 = vpop.f32.mrb[0].mxu0
    %1984 = vdwg.mxu0
    %v1985 = vsel %vm98, %v1976, 0.0
    %v1986 = vsel %vm98, %v1982, 0.0
    %v1987 = vsel %vm649, %v1985, 0.0
    %1988 = vadd.xlane.f32.xlu0 %v1987
    %v1989 = vpop.xlane.xlu0 %1988
    %v1990 = vsel %vm649, %v1986, 0.0
    %1991 = vadd.xlane.f32.xlu0 %v1990
    %v1992 = vpop.xlane.xlu0 %1991
    %v1993 = vsel %vm98, 0.0, %v1976
    %v1994 = vsel %vm98, 0.0, %v1982
    %v1995 = vsel %vm649, %v1993, 0.0
    %1996 = vadd.xlane.f32.xlu0 %v1995
    %v1997 = vpop.xlane.xlu0 %1996
    %v1998 = vsel %vm649, %v1994, 0.0
    %1999 = vadd.xlane.f32.xlu0 %v1998
    %v2000 = vpop.xlane.xlu0 %1999
    %v2001 = vsel %vm98, %v1989, %v1997
    %v2002 = vsel %vm98, %v1992, %v2000
    %v2003 = vmul.f32 %v2001, 0.03125
    %v2004 = vmul.f32 %v2002, 0.03125
    %v2005 = vsub.f32 %v1976, %v2003
    %v2006 = vsub.f32 %v1982, %v2004
    %v2007 = vmul.f32 %v2005, %v2005
    %v2008 = vmul.f32 %v2006, %v2006
    %v2009 = vsel %vm98, %v2007, 0.0
    %v2010 = vsel %vm98, %v2008, 0.0
    %v2011 = vsel %vm649, %v2009, 0.0
    %2012 = vadd.xlane.f32.xlu0 %v2011
    %v2013 = vpop.xlane.xlu0 %2012
    %v2014 = vsel %vm649, %v2010, 0.0
    %2015 = vadd.xlane.f32.xlu0 %v2014
    %v2016 = vpop.xlane.xlu0 %2015
    %v2017 = vsel %vm98, 0.0, %v2007
    %v2018 = vsel %vm98, 0.0, %v2008
    %v2019 = vsel %vm649, %v2017, 0.0
    %2020 = vadd.xlane.f32.xlu0 %v2019
    %v2021 = vpop.xlane.xlu0 %2020
    %v2022 = vsel %vm649, %v2018, 0.0
    %2023 = vadd.xlane.f32.xlu0 %v2022
    %v2024 = vpop.xlane.xlu0 %2023
    %v2025 = vsel %vm98, %v2013, %v2021
    %v2026 = vsel %vm98, %v2016, %v2024
    %v2027 = vmul.f32 %v2025, 0.03125
    %v2028 = vmul.f32 %v2026, 0.03125
    %v2029 = vadd.f32 %v2027, 1e-05
    %v2030 = vadd.f32 %v2028, 1e-05
    %v2031 = vrsqrt.pop %v2029
    %v2032 = vrsqrt.pop %v2030
    %v2033 = vmul.f32 %v2005, %v2031
    %v2034 = vmul.f32 %v2006, %v2032
    %v2035 = vmul.f32 %v2033, %v702
    %v2036 = vmul.f32 %v2034, %v702
    %v2037 = vadd.f32 %v2035, %v710
    %v2038 = vadd.f32 %v2036, %v710
    %vm2039 = vcmp.gt.f32.partialorder %v2037, 0.0
    %vm2040 = vcmp.gt.f32.partialorder %v2038, 0.0
    %v2041 = vmul.f32 %v2037, 0.2
    %v2042 = vmul.f32 %v2038, 0.2
    %v2043 = vsel %vm2039, %v2037, %v2041
    %v2044 = vsel %vm2040, %v2038, %v2042
    %v2045 = vld [vmem:[%s8] sm:$0x1]
    %v2047 = vlaneseq
    %v2048 = vshrl.u32 %v2047, 7
    %v2049 = vsub.s32 0, %v2048
    %v2050 = vrot.slane %v2045, %v2049
    %v2052 = vmul.f32 %v2043, %v2050
    %v2053 = vmul.f32 %v2044, %v2050
    %v2054 = vsel %vm649, %v2052, 0.0
    %2055 = vadd.xlane.f32.xlu0 %v2054
    %v2056 = vpop.xlane.xlu0 %2055
    %v2057 = vsel %vm649, %v2053, 0.0
    %2058 = vadd.xlane.f32.xlu0 %v2057
    %v2059 = vpop.xlane.xlu0 %2058
    %v2060 = vld [vmem:[#allocation2] sm:$0x1]
    %v2062 = vlaneseq
    %v2063 = vshrl.u32 %v2062, 7
    %v2064 = vsub.s32 0, %v2063
    %v2065 = vrot.slane %v2060, %v2064
    %v2067 = vadd.f32 %v2056, %v2065
    %v2068 = vadd.f32 %v2059, %v2065
    %v2069 = vadd.s32 %v97, 128
    %v2070 = vld [vmem:[#allocation8] sm:$0xff]
    %v2071 = vld [vmem:[#allocation8 + $0x8] sm:$0xff]
    %v2072 = vld [vmem:[#allocation8 + $0x40] sm:$0xff]
    %v2073 = vld [vmem:[#allocation8 + $0x48] sm:$0xff]
    %v2074 = vld [vmem:[#allocation8 + $0x80] sm:$0xff]
    %v2075 = vld [vmem:[#allocation8 + $0x88] sm:$0xff]
    %v2076 = vld [vmem:[#allocation8 + $0xc0] sm:$0xff]
    %v2077 = vld [vmem:[#allocation8 + $0xc8] sm:$0xff]
    %v2078 = vld [vmem:[#allocation8 + $0x100] sm:$0xff]
    %v2079 = vld [vmem:[#allocation8 + $0x108] sm:$0xff]
    %v2080 = vld [vmem:[#allocation8 + $0x140] sm:$0xff]
    %v2081 = vld [vmem:[#allocation8 + $0x148] sm:$0xff]
    %v2082 = vld [vmem:[#allocation8 + $0x180] sm:$0xff]
    %v2083 = vld [vmem:[#allocation8 + $0x188] sm:$0xff]
    %v2084 = vld [vmem:[#allocation8 + $0x1c0] sm:$0xff]
    %v2085 = vld [vmem:[#allocation8 + $0x1c8] sm:$0xff]
    %v2086 = vld [vmem:[%s7] sm:$0x3]
    %v2088 = vlaneseq
    %v2089 = vshrl.u32 %v2088, 7
    %v2090 = vsub.s32 0, %v2089
    %v2091 = vrot.slane %v2086, %v2090
    %v2092 = vlaneseq
    %v2093 = vshrl.u32 %v2092, 7
    %v2094 = vsub.s32 1, %v2093
    %v2095 = vrot.slane %v2086, %v2094
    %v2099 = vsel %vm649, %v2043, 0
    %v2102 = vsel %vm649, %v2044, 0
    %v2104 = vand.u32 %v2071, 4294901760
    %2105 = vmatprep.subr.mxu0 %v2104
    %v2106 = vand.u32 %v2070, 4294901760
    %2107 = vmatpush1.msra.mxu0 %v2106
    %v2108 = vand.u32 %v2073, 4294901760
    %2109 = vmatprep.subr.mxu0 %v2108
    %v2110 = vand.u32 %v2072, 4294901760
    %2111 = vmatpush1.msra.mxu0 %v2110
    %v2112 = vand.u32 %v2075, 4294901760
    %2113 = vmatprep.subr.mxu0 %v2112
    %v2114 = vand.u32 %v2074, 4294901760
    %2115 = vmatpush1.msra.mxu0 %v2114
    %v2116 = vand.u32 %v2077, 4294901760
    %2117 = vmatprep.subr.mxu0 %v2116
    %v2118 = vand.u32 %v2076, 4294901760
    %2119 = vmatpush1.msra.mxu0 %v2118
    %v2120 = vand.u32 %v2079, 4294901760
    %2121 = vmatprep.subr.mxu0 %v2120
    %v2122 = vand.u32 %v2078, 4294901760
    %2123 = vmatpush1.msra.mxu0 %v2122
    %v2124 = vand.u32 %v2081, 4294901760
    %2125 = vmatprep.subr.mxu0 %v2124
    %v2126 = vand.u32 %v2080, 4294901760
    %2127 = vmatpush1.msra.mxu0 %v2126
    %v2128 = vand.u32 %v2083, 4294901760
    %2129 = vmatprep.subr.mxu0 %v2128
    %v2130 = vand.u32 %v2082, 4294901760
    %2131 = vmatpush1.msra.mxu0 %v2130
    %v2132 = vand.u32 %v2085, 4294901760
    %2133 = vmatprep.subr.mxu0 %v2132
    %v2134 = vand.u32 %v2084, 4294901760
    %2135 = vmatpush1.msra.mxu0 %v2134
    %2136 = vmatprep.subr.mxu0 0.0
    %2137 = vmatpush1.msra.mxu0 0.0
    %2138 = vmatprep.subr.mxu0 0.0
    %2139 = vmatpush1.msra.mxu0 0.0
    %2140 = vmatprep.subr.mxu0 0.0
    %2141 = vmatpush1.msra.mxu0 0.0
    %2142 = vmatprep.subr.mxu0 0.0
    %2143 = vmatpush1.msra.mxu0 0.0
    %2144 = vmatprep.subr.mxu0 0.0
    %2145 = vmatpush1.msra.mxu0 0.0
    %2146 = vmatprep.subr.mxu0 0.0
    %2147 = vmatpush1.msra.mxu0 0.0
    %2148 = vmatprep.subr.mxu0 0.0
    %2149 = vmatpush1.msra.mxu0 0.0
    %2150 = vmatprep.subr.mxu0 0.0
    %2151 = vmatpush1.msra.mxu0 0.0
    %2152 = vmatprep.subr.mxu0 0.0
    %2153 = vmatpush1.msra.mxu0 0.0
    %2154 = vmatprep.subr.mxu0 0.0
    %2155 = vmatpush1.msra.mxu0 0.0
    %2156 = vmatprep.subr.mxu0 0.0
    %2157 = vmatpush1.msra.mxu0 0.0
    %2158 = vmatprep.subr.mxu0 0.0
    %2159 = vmatpush1.msra.mxu0 0.0
    %2160 = vmatprep.subr.mxu0 0.0
    %2161 = vmatpush1.msra.mxu0 0.0
    %2162 = vmatprep.subr.mxu0 0.0
    %2163 = vmatpush1.msra.mxu0 0.0
    %2164 = vmatprep.subr.mxu0 0.0
    %2165 = vmatpush1.msra.mxu0 0.0
    %2166 = vmatprep.subr.mxu0 0.0
    %2167 = vmatpush1.msra.mxu0 0.0
    %2168 = vmatprep.subr.mxu0 0.0
    %2169 = vmatpush1.msra.mxu0 0.0
    %2170 = vmatprep.subr.mxu0 0.0
    %2171 = vmatpush1.msra.mxu0 0.0
    %2172 = vmatprep.subr.mxu0 0.0
    %2173 = vmatpush1.msra.mxu0 0.0
    %2174 = vmatprep.subr.mxu0 0.0
    %2175 = vmatpush1.msra.mxu0 0.0
    %2176 = vmatprep.subr.mxu0 0.0
    %2177 = vmatpush1.msra.mxu0 0.0
    %2178 = vmatprep.subr.mxu0 0.0
    %2179 = vmatpush1.msra.mxu0 0.0
    %2180 = vmatprep.subr.mxu0 0.0
    %2181 = vmatpush1.msra.mxu0 0.0
    %2182 = vmatprep.subr.mxu0 0.0
    %2183 = vmatpush1.msra.mxu0 0.0
    %2184 = vmatprep.mubr.f32.mxu0 0.0
    %v2185 = vand.u32 %v2099, 4294901760
    %v2186 = vsub.f32 %v2099, %v2185
    %v2187 = vand.u32 %v2186, 4294901760
    %v2188 = vsub.f32 %v2186, %v2187
    %v2189 = vand.u32 %v2188, 4294901760
    %2190 = vmatmul.mubr.f32.gmra.mrb[0].mxu0 %v2189
    %v2191 = vpop.f32.mrb[0].mxu0
    %v2192 = vadd.f32 %v2091, %v2191
    %v2193 = vpop.f32.mrb[0].mxu0
    %v2194 = vadd.f32 %v2095, %v2193
    %2195 = vmatprep.mubr.f32.mxu0 0.0
    %v2196 = vand.u32 %v2102, 4294901760
    %v2197 = vsub.f32 %v2102, %v2196
    %v2198 = vand.u32 %v2197, 4294901760
    %v2199 = vsub.f32 %v2197, %v2198
    %v2200 = vand.u32 %v2199, 4294901760
    %2201 = vmatmul.mubr.f32.gmra.mrb[0].mxu0 %v2200
    %v2202 = vpop.f32.mrb[0].mxu0
    %v2203 = vadd.f32 %v2091, %v2202
    %v2204 = vpop.f32.mrb[0].mxu0
    %v2205 = vadd.f32 %v2095, %v2204
    %2206 = vdwg.mxu0
    %v2207 = vand.u32 %v2071, 4294901760
    %v2208 = vsub.f32 %v2071, %v2207
    %v2209 = vand.u32 %v2208, 4294901760
    %v2210 = vsub.f32 %v2208, %v2209
    %v2211 = vand.u32 %v2210, 4294901760
    %2212 = vmatprep.subr.mxu0 %v2211
    %v2213 = vand.u32 %v2070, 4294901760
    %v2214 = vsub.f32 %v2070, %v2213
    %v2215 = vand.u32 %v2214, 4294901760
    %v2216 = vsub.f32 %v2214, %v2215
    %v2217 = vand.u32 %v2216, 4294901760
    %2218 = vmatpush1.msra.mxu0 %v2217
    %v2219 = vand.u32 %v2073, 4294901760
    %v2220 = vsub.f32 %v2073, %v2219
    %v2221 = vand.u32 %v2220, 4294901760
    %v2222 = vsub.f32 %v2220, %v2221
    %v2223 = vand.u32 %v2222, 4294901760
    %2224 = vmatprep.subr.mxu0 %v2223
    %v2225 = vand.u32 %v2072, 4294901760
    %v2226 = vsub.f32 %v2072, %v2225
    %v2227 = vand.u32 %v2226, 4294901760
    %v2228 = vsub.f32 %v2226, %v2227
    %v2229 = vand.u32 %v2228, 4294901760
    %2230 = vmatpush1.msra.mxu0 %v2229
    %v2231 = vand.u32 %v2075, 4294901760
    %v2232 = vsub.f32 %v2075, %v2231
    %v2233 = vand.u32 %v2232, 4294901760
    %v2234 = vsub.f32 %v2232, %v2233
    %v2235 = vand.u32 %v2234, 4294901760
    %2236 = vmatprep.subr.mxu0 %v2235
    %v2237 = vand.u32 %v2074, 4294901760
    %v2238 = vsub.f32 %v2074, %v2237
    %v2239 = vand.u32 %v2238, 4294901760
    %v2240 = vsub.f32 %v2238, %v2239
    %v2241 = vand.u32 %v2240, 4294901760
    %2242 = vmatpush1.msra.mxu0 %v2241
    %v2243 = vand.u32 %v2077, 4294901760
    %v2244 = vsub.f32 %v2077, %v2243
    %v2245 = vand.u32 %v2244, 4294901760
    %v2246 = vsub.f32 %v2244, %v2245
    %v2247 = vand.u32 %v2246, 4294901760
    %2248 = vmatprep.subr.mxu0 %v2247
    %v2249 = vand.u32 %v2076, 4294901760
    %v2250 = vsub.f32 %v2076, %v2249
    %v2251 = vand.u32 %v2250, 4294901760
    %v2252 = vsub.f32 %v2250, %v2251
    %v2253 = vand.u32 %v2252, 4294901760
    %2254 = vmatpush1.msra.mxu0 %v2253
    %v2255 = vand.u32 %v2079, 4294901760
    %v2256 = vsub.f32 %v2079, %v2255
    %v2257 = vand.u32 %v2256, 4294901760
    %v2258 = vsub.f32 %v2256, %v2257
    %v2259 = vand.u32 %v2258, 4294901760
    %2260 = vmatprep.subr.mxu0 %v2259
    %v2261 = vand.u32 %v2078, 4294901760
    %v2262 = vsub.f32 %v2078, %v2261
    %v2263 = vand.u32 %v2262, 4294901760
    %v2264 = vsub.f32 %v2262, %v2263
    %v2265 = vand.u32 %v2264, 4294901760
    %2266 = vmatpush1.msra.mxu0 %v2265
    %v2267 = vand.u32 %v2081, 4294901760
    %v2268 = vsub.f32 %v2081, %v2267
    %v2269 = vand.u32 %v2268, 4294901760
    %v2270 = vsub.f32 %v2268, %v2269
    %v2271 = vand.u32 %v2270, 4294901760
    %2272 = vmatprep.subr.mxu0 %v2271
    %v2273 = vand.u32 %v2080, 4294901760
    %v2274 = vsub.f32 %v2080, %v2273
    %v2275 = vand.u32 %v2274, 4294901760
    %v2276 = vsub.f32 %v2274, %v2275
    %v2277 = vand.u32 %v2276, 4294901760
    %2278 = vmatpush1.msra.mxu0 %v2277
    %v2279 = vand.u32 %v2083, 4294901760
    %v2280 = vsub.f32 %v2083, %v2279
    %v2281 = vand.u32 %v2280, 4294901760
    %v2282 = vsub.f32 %v2280, %v2281
    %v2283 = vand.u32 %v2282, 4294901760
    %2284 = vmatprep.subr.mxu0 %v2283
    %v2285 = vand.u32 %v2082, 4294901760
    %v2286 = vsub.f32 %v2082, %v2285
    %v2287 = vand.u32 %v2286, 4294901760
    %v2288 = vsub.f32 %v2286, %v2287
    %v2289 = vand.u32 %v2288, 4294901760
    %2290 = vmatpush1.msra.mxu0 %v2289
    %v2291 = vand.u32 %v2085, 4294901760
    %v2292 = vsub.f32 %v2085, %v2291
    %v2293 = vand.u32 %v2292, 4294901760
    %v2294 = vsub.f32 %v2292, %v2293
    %v2295 = vand.u32 %v2294, 4294901760
    %2296 = vmatprep.subr.mxu0 %v2295
    %v2297 = vand.u32 %v2084, 4294901760
    %v2298 = vsub.f32 %v2084, %v2297
    %v2299 = vand.u32 %v2298, 4294901760
    %v2300 = vsub.f32 %v2298, %v2299
    %v2301 = vand.u32 %v2300, 4294901760
    %2302 = vmatpush1.msra.mxu0 %v2301
    %2303 = vmatprep.subr.mxu0 0.0
    %2304 = vmatpush1.msra.mxu0 0.0
    %2305 = vmatprep.subr.mxu0 0.0
    %2306 = vmatpush1.msra.mxu0 0.0
    %2307 = vmatprep.subr.mxu0 0.0
    %2308 = vmatpush1.msra.mxu0 0.0
    %2309 = vmatprep.subr.mxu0 0.0
    %2310 = vmatpush1.msra.mxu0 0.0
    %2311 = vmatprep.subr.mxu0 0.0
    %2312 = vmatpush1.msra.mxu0 0.0
    %2313 = vmatprep.subr.mxu0 0.0
    %2314 = vmatpush1.msra.mxu0 0.0
    %2315 = vmatprep.subr.mxu0 0.0
    %2316 = vmatpush1.msra.mxu0 0.0
    %2317 = vmatprep.subr.mxu0 0.0
    %2318 = vmatpush1.msra.mxu0 0.0
    %2319 = vmatprep.subr.mxu0 0.0
    %2320 = vmatpush1.msra.mxu0 0.0
    %2321 = vmatprep.subr.mxu0 0.0
    %2322 = vmatpush1.msra.mxu0 0.0
    %2323 = vmatprep.subr.mxu0 0.0
    %2324 = vmatpush1.msra.mxu0 0.0
    %2325 = vmatprep.subr.mxu0 0.0
    %2326 = vmatpush1.msra.mxu0 0.0
    %2327 = vmatprep.subr.mxu0 0.0
    %2328 = vmatpush1.msra.mxu0 0.0
    %2329 = vmatprep.subr.mxu0 0.0
    %2330 = vmatpush1.msra.mxu0 0.0
    %2331 = vmatprep.subr.mxu0 0.0
    %2332 = vmatpush1.msra.mxu0 0.0
    %2333 = vmatprep.subr.mxu0 0.0
    %2334 = vmatpush1.msra.mxu0 0.0
    %2335 = vmatprep.subr.mxu0 0.0
    %2336 = vmatpush1.msra.mxu0 0.0
    %2337 = vmatprep.subr.mxu0 0.0
    %2338 = vmatpush1.msra.mxu0 0.0
    %2339 = vmatprep.subr.mxu0 0.0
    %2340 = vmatpush1.msra.mxu0 0.0
    %2341 = vmatprep.subr.mxu0 0.0
    %2342 = vmatpush1.msra.mxu0 0.0
    %2343 = vmatprep.subr.mxu0 0.0
    %2344 = vmatpush1.msra.mxu0 0.0
    %2345 = vmatprep.subr.mxu0 0.0
    %2346 = vmatpush1.msra.mxu0 0.0
    %2347 = vmatprep.subr.mxu0 0.0
    %2348 = vmatpush1.msra.mxu0 0.0
    %2349 = vmatprep.subr.mxu0 0.0
    %2350 = vmatpush1.msra.mxu0 0.0
    %2351 = vmatprep.mubr.f32.mxu0 0.0
    %v2352 = vand.u32 %v2099, 4294901760
    %2353 = vmatmul.mubr.f32.gmra.mrb[0].mxu0 %v2352
    %v2354 = vpop.f32.mrb[0].mxu0
    %v2355 = vadd.f32 %v2192, %v2354
    %v2356 = vpop.f32.mrb[0].mxu0
    %v2357 = vadd.f32 %v2194, %v2356
    %2358 = vmatprep.mubr.f32.mxu0 0.0
    %v2359 = vand.u32 %v2102, 4294901760
    %2360 = vmatmul.mubr.f32.gmra.mrb[0].mxu0 %v2359
    %v2361 = vpop.f32.mrb[0].mxu0
    %v2362 = vadd.f32 %v2203, %v2361
    %v2363 = vpop.f32.mrb[0].mxu0
    %v2364 = vadd.f32 %v2205, %v2363
    %2365 = vdwg.mxu0
    %v2366 = vand.u32 %v2071, 4294901760
    %v2367 = vsub.f32 %v2071, %v2366
    %2368 = vmatprep.subr.mxu0 %v2367
    %v2369 = vand.u32 %v2070, 4294901760
    %v2370 = vsub.f32 %v2070, %v2369
    %2371 = vmatpush1.msra.mxu0 %v2370
    %v2372 = vand.u32 %v2073, 4294901760
    %v2373 = vsub.f32 %v2073, %v2372
    %2374 = vmatprep.subr.mxu0 %v2373
    %v2375 = vand.u32 %v2072, 4294901760
    %v2376 = vsub.f32 %v2072, %v2375
    %2377 = vmatpush1.msra.mxu0 %v2376
    %v2378 = vand.u32 %v2075, 4294901760
    %v2379 = vsub.f32 %v2075, %v2378
    %2380 = vmatprep.subr.mxu0 %v2379
    %v2381 = vand.u32 %v2074, 4294901760
    %v2382 = vsub.f32 %v2074, %v2381
    %2383 = vmatpush1.msra.mxu0 %v2382
    %v2384 = vand.u32 %v2077, 4294901760
    %v2385 = vsub.f32 %v2077, %v2384
    %2386 = vmatprep.subr.mxu0 %v2385
    %v2387 = vand.u32 %v2076, 4294901760
    %v2388 = vsub.f32 %v2076, %v2387
    %2389 = vmatpush1.msra.mxu0 %v2388
    %v2390 = vand.u32 %v2079, 4294901760
    %v2391 = vsub.f32 %v2079, %v2390
    %2392 = vmatprep.subr.mxu0 %v2391
    %v2393 = vand.u32 %v2078, 4294901760
    %v2394 = vsub.f32 %v2078, %v2393
    %2395 = vmatpush1.msra.mxu0 %v2394
    %v2396 = vand.u32 %v2081, 4294901760
    %v2397 = vsub.f32 %v2081, %v2396
    %2398 = vmatprep.subr.mxu0 %v2397
    %v2399 = vand.u32 %v2080, 4294901760
    %v2400 = vsub.f32 %v2080, %v2399
    %2401 = vmatpush1.msra.mxu0 %v2400
    %v2402 = vand.u32 %v2083, 4294901760
    %v2403 = vsub.f32 %v2083, %v2402
    %2404 = vmatprep.subr.mxu0 %v2403
    %v2405 = vand.u32 %v2082, 4294901760
    %v2406 = vsub.f32 %v2082, %v2405
    %2407 = vmatpush1.msra.mxu0 %v2406
    %v2408 = vand.u32 %v2085, 4294901760
    %v2409 = vsub.f32 %v2085, %v2408
    %2410 = vmatprep.subr.mxu0 %v2409
    %v2411 = vand.u32 %v2084, 4294901760
    %v2412 = vsub.f32 %v2084, %v2411
    %2413 = vmatpush1.msra.mxu0 %v2412
    %2414 = vmatprep.subr.mxu0 0.0
    %2415 = vmatpush1.msra.mxu0 0.0
    %2416 = vmatprep.subr.mxu0 0.0
    %2417 = vmatpush1.msra.mxu0 0.0
    %2418 = vmatprep.subr.mxu0 0.0
    %2419 = vmatpush1.msra.mxu0 0.0
    %2420 = vmatprep.subr.mxu0 0.0
    %2421 = vmatpush1.msra.mxu0 0.0
    %2422 = vmatprep.subr.mxu0 0.0
    %2423 = vmatpush1.msra.mxu0 0.0
    %2424 = vmatprep.subr.mxu0 0.0
    %2425 = vmatpush1.msra.mxu0 0.0
    %2426 = vmatprep.subr.mxu0 0.0
    %2427 = vmatpush1.msra.mxu0 0.0
    %2428 = vmatprep.subr.mxu0 0.0
    %2429 = vmatpush1.msra.mxu0 0.0
    %2430 = vmatprep.subr.mxu0 0.0
    %2431 = vmatpush1.msra.mxu0 0.0
    %2432 = vmatprep.subr.mxu0 0.0
    %2433 = vmatpush1.msra.mxu0 0.0
    %2434 = vmatprep.subr.mxu0 0.0
    %2435 = vmatpush1.msra.mxu0 0.0
    %2436 = vmatprep.subr.mxu0 0.0
    %2437 = vmatpush1.msra.mxu0 0.0
    %2438 = vmatprep.subr.mxu0 0.0
    %2439 = vmatpush1.msra.mxu0 0.0
    %2440 = vmatprep.subr.mxu0 0.0
    %2441 = vmatpush1.msra.mxu0 0.0
    %2442 = vmatprep.subr.mxu0 0.0
    %2443 = vmatpush1.msra.mxu0 0.0
    %2444 = vmatprep.subr.mxu0 0.0
    %2445 = vmatpush1.msra.mxu0 0.0
    %2446 = vmatprep.subr.mxu0 0.0
    %2447 = vmatpush1.msra.mxu0 0.0
    %2448 = vmatprep.subr.mxu0 0.0
    %2449 = vmatpush1.msra.mxu0 0.0
    %2450 = vmatprep.subr.mxu0 0.0
    %2451 = vmatpush1.msra.mxu0 0.0
    %2452 = vmatprep.subr.mxu0 0.0
    %2453 = vmatpush1.msra.mxu0 0.0
    %2454 = vmatprep.subr.mxu0 0.0
    %2455 = vmatpush1.msra.mxu0 0.0
    %2456 = vmatprep.subr.mxu0 0.0
    %2457 = vmatpush1.msra.mxu0 0.0
    %2458 = vmatprep.subr.mxu0 0.0
    %2459 = vmatpush1.msra.mxu0 0.0
    %2460 = vmatprep.subr.mxu0 0.0
    %2461 = vmatpush1.msra.mxu0 0.0
    %2462 = vmatprep.mubr.f32.mxu0 0.0
    %v2463 = vand.u32 %v2099, 4294901760
    %v2464 = vsub.f32 %v2099, %v2463
    %2465 = vmatmul.mubr.f32.gmra.mrb[0].mxu0 %v2464
    %v2466 = vpop.f32.mrb[0].mxu0
    %v2467 = vadd.f32 %v2355, %v2466
    %v2468 = vpop.f32.mrb[0].mxu0
    %v2469 = vadd.f32 %v2357, %v2468
    %2470 = vmatprep.mubr.f32.mxu0 0.0
    %v2471 = vand.u32 %v2102, 4294901760
    %v2472 = vsub.f32 %v2102, %v2471
    %2473 = vmatmul.mubr.f32.gmra.mrb[0].mxu0 %v2472
    %v2474 = vpop.f32.mrb[0].mxu0
    %v2475 = vadd.f32 %v2362, %v2474
    %v2476 = vpop.f32.mrb[0].mxu0
    %v2477 = vadd.f32 %v2364, %v2476
    %2478 = vdwg.mxu0
    %v2479 = vand.u32 %v2071, 4294901760
    %2480 = vmatprep.subr.mxu0 %v2479
    %v2481 = vand.u32 %v2070, 4294901760
    %2482 = vmatpush1.msra.mxu0 %v2481
    %v2483 = vand.u32 %v2073, 4294901760
    %2484 = vmatprep.subr.mxu0 %v2483
    %v2485 = vand.u32 %v2072, 4294901760
    %2486 = vmatpush1.msra.mxu0 %v2485
    %v2487 = vand.u32 %v2075, 4294901760
    %2488 = vmatprep.subr.mxu0 %v2487
    %v2489 = vand.u32 %v2074, 4294901760
    %2490 = vmatpush1.msra.mxu0 %v2489
    %v2491 = vand.u32 %v2077, 4294901760
    %2492 = vmatprep.subr.mxu0 %v2491
    %v2493 = vand.u32 %v2076, 4294901760
    %2494 = vmatpush1.msra.mxu0 %v2493
    %v2495 = vand.u32 %v2079, 4294901760
    %2496 = vmatprep.subr.mxu0 %v2495
    %v2497 = vand.u32 %v2078, 4294901760
    %2498 = vmatpush1.msra.mxu0 %v2497
    %v2499 = vand.u32 %v2081, 4294901760
    %2500 = vmatprep.subr.mxu0 %v2499
    %v2501 = vand.u32 %v2080, 4294901760
    %2502 = vmatpush1.msra.mxu0 %v2501
    %v2503 = vand.u32 %v2083, 4294901760
    %2504 = vmatprep.subr.mxu0 %v2503
    %v2505 = vand.u32 %v2082, 4294901760
    %2506 = vmatpush1.msra.mxu0 %v2505
    %v2507 = vand.u32 %v2085, 4294901760
    %2508 = vmatprep.subr.mxu0 %v2507
    %v2509 = vand.u32 %v2084, 4294901760
    %2510 = vmatpush1.msra.mxu0 %v2509
    %2511 = vmatprep.subr.mxu0 0.0
    %2512 = vmatpush1.msra.mxu0 0.0
    %2513 = vmatprep.subr.mxu0 0.0
    %2514 = vmatpush1.msra.mxu0 0.0
    %2515 = vmatprep.subr.mxu0 0.0
    %2516 = vmatpush1.msra.mxu0 0.0
    %2517 = vmatprep.subr.mxu0 0.0
    %2518 = vmatpush1.msra.mxu0 0.0
    %2519 = vmatprep.subr.mxu0 0.0
    %2520 = vmatpush1.msra.mxu0 0.0
    %2521 = vmatprep.subr.mxu0 0.0
    %2522 = vmatpush1.msra.mxu0 0.0
    %2523 = vmatprep.subr.mxu0 0.0
    %2524 = vmatpush1.msra.mxu0 0.0
    %2525 = vmatprep.subr.mxu0 0.0
    %2526 = vmatpush1.msra.mxu0 0.0
    %2527 = vmatprep.subr.mxu0 0.0
    %2528 = vmatpush1.msra.mxu0 0.0
    %2529 = vmatprep.subr.mxu0 0.0
    %2530 = vmatpush1.msra.mxu0 0.0
    %2531 = vmatprep.subr.mxu0 0.0
    %2532 = vmatpush1.msra.mxu0 0.0
    %2533 = vmatprep.subr.mxu0 0.0
    %2534 = vmatpush1.msra.mxu0 0.0
    %2535 = vmatprep.subr.mxu0 0.0
    %2536 = vmatpush1.msra.mxu0 0.0
    %2537 = vmatprep.subr.mxu0 0.0
    %2538 = vmatpush1.msra.mxu0 0.0
    %2539 = vmatprep.subr.mxu0 0.0
    %2540 = vmatpush1.msra.mxu0 0.0
    %2541 = vmatprep.subr.mxu0 0.0
    %2542 = vmatpush1.msra.mxu0 0.0
    %2543 = vmatprep.subr.mxu0 0.0
    %2544 = vmatpush1.msra.mxu0 0.0
    %2545 = vmatprep.subr.mxu0 0.0
    %2546 = vmatpush1.msra.mxu0 0.0
    %2547 = vmatprep.subr.mxu0 0.0
    %2548 = vmatpush1.msra.mxu0 0.0
    %2549 = vmatprep.subr.mxu0 0.0
    %2550 = vmatpush1.msra.mxu0 0.0
    %2551 = vmatprep.subr.mxu0 0.0
    %2552 = vmatpush1.msra.mxu0 0.0
    %2553 = vmatprep.subr.mxu0 0.0
    %2554 = vmatpush1.msra.mxu0 0.0
    %2555 = vmatprep.subr.mxu0 0.0
    %2556 = vmatpush1.msra.mxu0 0.0
    %2557 = vmatprep.subr.mxu0 0.0
    %2558 = vmatpush1.msra.mxu0 0.0
    %2559 = vmatprep.mubr.f32.mxu0 0.0
    %v2560 = vand.u32 %v2099, 4294901760
    %v2561 = vsub.f32 %v2099, %v2560
    %v2562 = vand.u32 %v2561, 4294901760
    %2563 = vmatmul.mubr.f32.gmra.mrb[0].mxu0 %v2562
    %v2564 = vpop.f32.mrb[0].mxu0
    %v2565 = vadd.f32 %v2467, %v2564
    %v2566 = vpop.f32.mrb[0].mxu0
    %v2567 = vadd.f32 %v2469, %v2566
    %2568 = vmatprep.mubr.f32.mxu0 0.0
    %v2569 = vand.u32 %v2102, 4294901760
    %v2570 = vsub.f32 %v2102, %v2569
    %v2571 = vand.u32 %v2570, 4294901760
    %2572 = vmatmul.mubr.f32.gmra.mrb[0].mxu0 %v2571
    %v2573 = vpop.f32.mrb[0].mxu0
    %v2574 = vadd.f32 %v2475, %v2573
    %v2575 = vpop.f32.mrb[0].mxu0
    %v2576 = vadd.f32 %v2477, %v2575
    %2577 = vdwg.mxu0
    %v2578 = vand.u32 %v2071, 4294901760
    %v2579 = vsub.f32 %v2071, %v2578
    %v2580 = vand.u32 %v2579, 4294901760
    %2581 = vmatprep.subr.mxu0 %v2580
    %v2582 = vand.u32 %v2070, 4294901760
    %v2583 = vsub.f32 %v2070, %v2582
    %v2584 = vand.u32 %v2583, 4294901760
    %2585 = vmatpush1.msra.mxu0 %v2584
    %v2586 = vand.u32 %v2073, 4294901760
    %v2587 = vsub.f32 %v2073, %v2586
    %v2588 = vand.u32 %v2587, 4294901760
    %2589 = vmatprep.subr.mxu0 %v2588
    %v2590 = vand.u32 %v2072, 4294901760
    %v2591 = vsub.f32 %v2072, %v2590
    %v2592 = vand.u32 %v2591, 4294901760
    %2593 = vmatpush1.msra.mxu0 %v2592
    %v2594 = vand.u32 %v2075, 4294901760
    %v2595 = vsub.f32 %v2075, %v2594
    %v2596 = vand.u32 %v2595, 4294901760
    %2597 = vmatprep.subr.mxu0 %v2596
    %v2598 = vand.u32 %v2074, 4294901760
    %v2599 = vsub.f32 %v2074, %v2598
    %v2600 = vand.u32 %v2599, 4294901760
    %2601 = vmatpush1.msra.mxu0 %v2600
    %v2602 = vand.u32 %v2077, 4294901760
    %v2603 = vsub.f32 %v2077, %v2602
    %v2604 = vand.u32 %v2603, 4294901760
    %2605 = vmatprep.subr.mxu0 %v2604
    %v2606 = vand.u32 %v2076, 4294901760
    %v2607 = vsub.f32 %v2076, %v2606
    %v2608 = vand.u32 %v2607, 4294901760
    %2609 = vmatpush1.msra.mxu0 %v2608
    %v2610 = vand.u32 %v2079, 4294901760
    %v2611 = vsub.f32 %v2079, %v2610
    %v2612 = vand.u32 %v2611, 4294901760
    %2613 = vmatprep.subr.mxu0 %v2612
    %v2614 = vand.u32 %v2078, 4294901760
    %v2615 = vsub.f32 %v2078, %v2614
    %v2616 = vand.u32 %v2615, 4294901760
    %2617 = vmatpush1.msra.mxu0 %v2616
    %v2618 = vand.u32 %v2081, 4294901760
    %v2619 = vsub.f32 %v2081, %v2618
    %v2620 = vand.u32 %v2619, 4294901760
    %2621 = vmatprep.subr.mxu0 %v2620
    %v2622 = vand.u32 %v2080, 4294901760
    %v2623 = vsub.f32 %v2080, %v2622
    %v2624 = vand.u32 %v2623, 4294901760
    %2625 = vmatpush1.msra.mxu0 %v2624
    %v2626 = vand.u32 %v2083, 4294901760
    %v2627 = vsub.f32 %v2083, %v2626
    %v2628 = vand.u32 %v2627, 4294901760
    %2629 = vmatprep.subr.mxu0 %v2628
    %v2630 = vand.u32 %v2082, 4294901760
    %v2631 = vsub.f32 %v2082, %v2630
    %v2632 = vand.u32 %v2631, 4294901760
    %2633 = vmatpush1.msra.mxu0 %v2632
    %v2634 = vand.u32 %v2085, 4294901760
    %v2635 = vsub.f32 %v2085, %v2634
    %v2636 = vand.u32 %v2635, 4294901760
    %2637 = vmatprep.subr.mxu0 %v2636
    %v2638 = vand.u32 %v2084, 4294901760
    %v2639 = vsub.f32 %v2084, %v2638
    %v2640 = vand.u32 %v2639, 4294901760
    %2641 = vmatpush1.msra.mxu0 %v2640
    %2642 = vmatprep.subr.mxu0 0.0
    %2643 = vmatpush1.msra.mxu0 0.0
    %2644 = vmatprep.subr.mxu0 0.0
    %2645 = vmatpush1.msra.mxu0 0.0
    %2646 = vmatprep.subr.mxu0 0.0
    %2647 = vmatpush1.msra.mxu0 0.0
    %2648 = vmatprep.subr.mxu0 0.0
    %2649 = vmatpush1.msra.mxu0 0.0
    %2650 = vmatprep.subr.mxu0 0.0
    %2651 = vmatpush1.msra.mxu0 0.0
    %2652 = vmatprep.subr.mxu0 0.0
    %2653 = vmatpush1.msra.mxu0 0.0
    %2654 = vmatprep.subr.mxu0 0.0
    %2655 = vmatpush1.msra.mxu0 0.0
    %2656 = vmatprep.subr.mxu0 0.0
    %2657 = vmatpush1.msra.mxu0 0.0
    %2658 = vmatprep.subr.mxu0 0.0
    %2659 = vmatpush1.msra.mxu0 0.0
    %2660 = vmatprep.subr.mxu0 0.0
    %2661 = vmatpush1.msra.mxu0 0.0
    %2662 = vmatprep.subr.mxu0 0.0
    %2663 = vmatpush1.msra.mxu0 0.0
    %2664 = vmatprep.subr.mxu0 0.0
    %2665 = vmatpush1.msra.mxu0 0.0
    %2666 = vmatprep.subr.mxu0 0.0
    %2667 = vmatpush1.msra.mxu0 0.0
    %2668 = vmatprep.subr.mxu0 0.0
    %2669 = vmatpush1.msra.mxu0 0.0
    %2670 = vmatprep.subr.mxu0 0.0
    %2671 = vmatpush1.msra.mxu0 0.0
    %2672 = vmatprep.subr.mxu0 0.0
    %2673 = vmatpush1.msra.mxu0 0.0
    %2674 = vmatprep.subr.mxu0 0.0
    %2675 = vmatpush1.msra.mxu0 0.0
    %2676 = vmatprep.subr.mxu0 0.0
    %2677 = vmatpush1.msra.mxu0 0.0
    %2678 = vmatprep.subr.mxu0 0.0
    %2679 = vmatpush1.msra.mxu0 0.0
    %2680 = vmatprep.subr.mxu0 0.0
    %2681 = vmatpush1.msra.mxu0 0.0
    %2682 = vmatprep.subr.mxu0 0.0
    %2683 = vmatpush1.msra.mxu0 0.0
    %2684 = vmatprep.subr.mxu0 0.0
    %2685 = vmatpush1.msra.mxu0 0.0
    %2686 = vmatprep.subr.mxu0 0.0
    %2687 = vmatpush1.msra.mxu0 0.0
    %2688 = vmatprep.subr.mxu0 0.0
    %2689 = vmatpush1.msra.mxu0 0.0
    %2690 = vmatprep.mubr.f32.mxu0 0.0
    %v2691 = vand.u32 %v2099, 4294901760
    %2692 = vmatmul.mubr.f32.gmra.mrb[0].mxu0 %v2691
    %v2693 = vpop.f32.mrb[0].mxu0
    %v2694 = vadd.f32 %v2565, %v2693
    %v2695 = vpop.f32.mrb[0].mxu0
    %v2696 = vadd.f32 %v2567, %v2695
    %2697 = vmatprep.mubr.f32.mxu0 0.0
    %v2698 = vand.u32 %v2102, 4294901760
    %2699 = vmatmul.mubr.f32.gmra.mrb[0].mxu0 %v2698
    %v2700 = vpop.f32.mrb[0].mxu0
    %v2701 = vadd.f32 %v2574, %v2700
    %v2702 = vpop.f32.mrb[0].mxu0
    %v2703 = vadd.f32 %v2576, %v2702
    %2704 = vdwg.mxu0
    %v2705 = vand.u32 %v2071, 4294901760
    %2706 = vmatprep.subr.mxu0 %v2705
    %v2707 = vand.u32 %v2070, 4294901760
    %2708 = vmatpush1.msra.mxu0 %v2707
    %v2709 = vand.u32 %v2073, 4294901760
    %2710 = vmatprep.subr.mxu0 %v2709
    %v2711 = vand.u32 %v2072, 4294901760
    %2712 = vmatpush1.msra.mxu0 %v2711
    %v2713 = vand.u32 %v2075, 4294901760
    %2714 = vmatprep.subr.mxu0 %v2713
    %v2715 = vand.u32 %v2074, 4294901760
    %2716 = vmatpush1.msra.mxu0 %v2715
    %v2717 = vand.u32 %v2077, 4294901760
    %2718 = vmatprep.subr.mxu0 %v2717
    %v2719 = vand.u32 %v2076, 4294901760
    %2720 = vmatpush1.msra.mxu0 %v2719
    %v2721 = vand.u32 %v2079, 4294901760
    %2722 = vmatprep.subr.mxu0 %v2721
    %v2723 = vand.u32 %v2078, 4294901760
    %2724 = vmatpush1.msra.mxu0 %v2723
    %v2725 = vand.u32 %v2081, 4294901760
    %2726 = vmatprep.subr.mxu0 %v2725
    %v2727 = vand.u32 %v2080, 4294901760
    %2728 = vmatpush1.msra.mxu0 %v2727
    %v2729 = vand.u32 %v2083, 4294901760
    %2730 = vmatprep.subr.mxu0 %v2729
    %v2731 = vand.u32 %v2082, 4294901760
    %2732 = vmatpush1.msra.mxu0 %v2731
    %v2733 = vand.u32 %v2085, 4294901760
    %2734 = vmatprep.subr.mxu0 %v2733
    %v2735 = vand.u32 %v2084, 4294901760
    %2736 = vmatpush1.msra.mxu0 %v2735
    %2737 = vmatprep.subr.mxu0 0.0
    %2738 = vmatpush1.msra.mxu0 0.0
    %2739 = vmatprep.subr.mxu0 0.0
    %2740 = vmatpush1.msra.mxu0 0.0
    %2741 = vmatprep.subr.mxu0 0.0
    %2742 = vmatpush1.msra.mxu0 0.0
    %2743 = vmatprep.subr.mxu0 0.0
    %2744 = vmatpush1.msra.mxu0 0.0
    %2745 = vmatprep.subr.mxu0 0.0
    %2746 = vmatpush1.msra.mxu0 0.0
    %2747 = vmatprep.subr.mxu0 0.0
    %2748 = vmatpush1.msra.mxu0 0.0
    %2749 = vmatprep.subr.mxu0 0.0
    %2750 = vmatpush1.msra.mxu0 0.0
    %2751 = vmatprep.subr.mxu0 0.0
    %2752 = vmatpush1.msra.mxu0 0.0
    %2753 = vmatprep.subr.mxu0 0.0
    %2754 = vmatpush1.msra.mxu0 0.0
    %2755 = vmatprep.subr.mxu0 0.0
    %2756 = vmatpush1.msra.mxu0 0.0
    %2757 = vmatprep.subr.mxu0 0.0
    %2758 = vmatpush1.msra.mxu0 0.0
    %2759 = vmatprep.subr.mxu0 0.0
    %2760 = vmatpush1.msra.mxu0 0.0
    %2761 = vmatprep.subr.mxu0 0.0
    %2762 = vmatpush1.msra.mxu0 0.0
    %2763 = vmatprep.subr.mxu0 0.0
    %2764 = vmatpush1.msra.mxu0 0.0
    %2765 = vmatprep.subr.mxu0 0.0
    %2766 = vmatpush1.msra.mxu0 0.0
    %2767 = vmatprep.subr.mxu0 0.0
    %2768 = vmatpush1.msra.mxu0 0.0
    %2769 = vmatprep.subr.mxu0 0.0
    %2770 = vmatpush1.msra.mxu0 0.0
    %2771 = vmatprep.subr.mxu0 0.0
    %2772 = vmatpush1.msra.mxu0 0.0
    %2773 = vmatprep.subr.mxu0 0.0
    %2774 = vmatpush1.msra.mxu0 0.0
    %2775 = vmatprep.subr.mxu0 0.0
    %2776 = vmatpush1.msra.mxu0 0.0
    %2777 = vmatprep.subr.mxu0 0.0
    %2778 = vmatpush1.msra.mxu0 0.0
    %2779 = vmatprep.subr.mxu0 0.0
    %2780 = vmatpush1.msra.mxu0 0.0
    %2781 = vmatprep.subr.mxu0 0.0
    %2782 = vmatpush1.msra.mxu0 0.0
    %2783 = vmatprep.subr.mxu0 0.0
    %2784 = vmatpush1.msra.mxu0 0.0
    %2785 = vmatprep.mubr.f32.mxu0 0.0
    %v2786 = vand.u32 %v2099, 4294901760
    %2787 = vmatmul.mubr.f32.gmra.mrb[0].mxu0 %v2786
    %v2788 = vpop.f32.mrb[0].mxu0
    %v2789 = vadd.f32 %v2694, %v2788
    %v2790 = vpop.f32.mrb[0].mxu0
    %v2791 = vadd.f32 %v2696, %v2790
    %2792 = vmatprep.mubr.f32.mxu0 0.0
    %v2793 = vand.u32 %v2102, 4294901760
    %2794 = vmatmul.mubr.f32.gmra.mrb[0].mxu0 %v2793
    %v2795 = vpop.f32.mrb[0].mxu0
    %v2796 = vadd.f32 %v2701, %v2795
    %v2797 = vpop.f32.mrb[0].mxu0
    %v2798 = vadd.f32 %v2703, %v2797
    %2799 = vdwg.mxu0
    %v2800 = vmax.f32 %v2789, %v2791
    %2801 = vmax.xlane.f32.xlu0 %v2800
    %v2802 = vpop.xlane.xlu0 %2801
    %v2803 = vmax.f32 %v2796, %v2798
    %2804 = vmax.xlane.f32.xlu0 %v2803
    %v2805 = vpop.xlane.xlu0 %2804
    %vm2806 = vcmp.eq.f32.partialorder %v2789, %v2802
    %vm2807 = vcmp.eq.f32.partialorder %v2791, %v2802
    %vm2808 = vcmp.eq.f32.partialorder %v2796, %v2805
    %vm2809 = vcmp.eq.f32.partialorder %v2798, %v2805
    %v2810 = vsel %vm2806, %v97, 1024
    %v2811 = vsel %vm2807, %v2069, 1024
    %v2812 = vsel %vm2808, %v97, 1024
    %v2813 = vsel %vm2809, %v2069, 1024
    %vm2814 = vcmp.lt.s32.totalorder %v2810, %v2811
    %v2815 = vsel %vm2814, %v2810, %v2811
    %v2816 = vand.u32 %v2815, 65535
    %v2817 = vshra.s32 %v2815, 16
    %v2818 = vcvt.s32.f32 %v2816
    %v2819 = vcvt.s32.f32 %v2817
    %2820 = vmin.xlane.f32.xlu0 %v2819
    %v2821 = vpop.xlane.xlu0 %2820
    %vm2822 = vcmp.eq.f32.partialorder %v2819, %v2821
    %v2823 = vsel %vm2822, %v2818, inf
    %2824 = vmin.xlane.f32.xlu0 %v2823
    %v2825 = vpop.xlane.xlu0 %2824
    %v2826 = vcvt.f32.s32 %v2825
    %v2827 = vcvt.f32.s32 %v2821
    %v2828 = vshll.u32 %v2827, 16
    %v2829 = vadd.s32 %v2828, %v2826
    %vm2830 = vcmp.lt.s32.totalorder %v2812, %v2813
    %v2831 = vsel %vm2830, %v2812, %v2813
    %v2832 = vand.u32 %v2831, 65535
    %v2833 = vshra.s32 %v2831, 16
    %v2834 = vcvt.s32.f32 %v2832
    %v2835 = vcvt.s32.f32 %v2833
    %2836 = vmin.xlane.f32.xlu0 %v2835
    %v2837 = vpop.xlane.xlu0 %2836
    %vm2838 = vcmp.eq.f32.partialorder %v2835, %v2837
    %v2839 = vsel %vm2838, %v2834, inf
    %2840 = vmin.xlane.f32.xlu0 %v2839
    %v2841 = vpop.xlane.xlu0 %2840
    %v2842 = vcvt.f32.s32 %v2841
    %v2843 = vcvt.f32.s32 %v2837
    %v2844 = vshll.u32 %v2843, 16
    %v2845 = vadd.s32 %v2844, %v2842
    %vm2846 = vcmp.gt.f32.partialorder %v2802, -inf
    %vm2847 = vcmp.gt.f32.partialorder %v2805, -inf
    %v2848 = vsel %vm2846, %v2829, 0
    %v2849 = vsel %vm2847, %v2845, 0
    %v2850 = vsel %vm2846, %v2802, -inf
    %v2851 = vsel %vm2847, %v2805, -inf
    %v2852 = vld [vmem:[#allocation8 + $0x10] sm:$0xff]
    %v2853 = vld [vmem:[#allocation8 + $0x18] sm:$0xff]
    %v2854 = vld [vmem:[#allocation8 + $0x50] sm:$0xff]
    %v2855 = vld [vmem:[#allocation8 + $0x58] sm:$0xff]
    %v2856 = vld [vmem:[#allocation8 + $0x90] sm:$0xff]
    %v2857 = vld [vmem:[#allocation8 + $0x98] sm:$0xff]
    %v2858 = vld [vmem:[#allocation8 + $0xd0] sm:$0xff]
    %v2859 = vld [vmem:[#allocation8 + $0xd8] sm:$0xff]
    %v2860 = vld [vmem:[#allocation8 + $0x110] sm:$0xff]
    %v2861 = vld [vmem:[#allocation8 + $0x118] sm:$0xff]
    %v2862 = vld [vmem:[#allocation8 + $0x150] sm:$0xff]
    %v2863 = vld [vmem:[#allocation8 + $0x158] sm:$0xff]
    %v2864 = vld [vmem:[#allocation8 + $0x190] sm:$0xff]
    %v2865 = vld [vmem:[#allocation8 + $0x198] sm:$0xff]
    %v2866 = vld [vmem:[#allocation8 + $0x1d0] sm:$0xff]
    %v2867 = vld [vmem:[#allocation8 + $0x1d8] sm:$0xff]
    %v2868 = vld [vmem:[%s7 + $0x2] sm:$0x3]
    %v2870 = vlaneseq
    %v2871 = vshrl.u32 %v2870, 7
    %v2872 = vsub.s32 0, %v2871
    %v2873 = vrot.slane %v2868, %v2872
    %v2874 = vlaneseq
    %v2875 = vshrl.u32 %v2874, 7
    %v2876 = vsub.s32 1, %v2875
    %v2877 = vrot.slane %v2868, %v2876
    %v2880 = vand.u32 %v2853, 4294901760
    %2881 = vmatprep.subr.mxu0 %v2880
    %v2882 = vand.u32 %v2852, 4294901760
    %2883 = vmatpush1.msra.mxu0 %v2882
    %v2884 = vand.u32 %v2855, 4294901760
    %2885 = vmatprep.subr.mxu0 %v2884
    %v2886 = vand.u32 %v2854, 4294901760
    %2887 = vmatpush1.msra.mxu0 %v2886
    %v2888 = vand.u32 %v2857, 4294901760
    %2889 = vmatprep.subr.mxu0 %v2888
    %v2890 = vand.u32 %v2856, 4294901760
    %2891 = vmatpush1.msra.mxu0 %v2890
    %v2892 = vand.u32 %v2859, 4294901760
    %2893 = vmatprep.subr.mxu0 %v2892
    %v2894 = vand.u32 %v2858, 4294901760
    %2895 = vmatpush1.msra.mxu0 %v2894
    %v2896 = vand.u32 %v2861, 4294901760
    %2897 = vmatprep.subr.mxu0 %v2896
    %v2898 = vand.u32 %v2860, 4294901760
    %2899 = vmatpush1.msra.mxu0 %v2898
    %v2900 = vand.u32 %v2863, 4294901760
    %2901 = vmatprep.subr.mxu0 %v2900
    %v2902 = vand.u32 %v2862, 4294901760
    %2903 = vmatpush1.msra.mxu0 %v2902
    %v2904 = vand.u32 %v2865, 4294901760
    %2905 = vmatprep.subr.mxu0 %v2904
    %v2906 = vand.u32 %v2864, 4294901760
    %2907 = vmatpush1.msra.mxu0 %v2906
    %v2908 = vand.u32 %v2867, 4294901760
    %2909 = vmatprep.subr.mxu0 %v2908
    %v2910 = vand.u32 %v2866, 4294901760
    %2911 = vmatpush1.msra.mxu0 %v2910
    %2912 = vmatprep.subr.mxu0 0.0
    %2913 = vmatpush1.msra.mxu0 0.0
    %2914 = vmatprep.subr.mxu0 0.0
    %2915 = vmatpush1.msra.mxu0 0.0
    %2916 = vmatprep.subr.mxu0 0.0
    %2917 = vmatpush1.msra.mxu0 0.0
    %2918 = vmatprep.subr.mxu0 0.0
    %2919 = vmatpush1.msra.mxu0 0.0
    %2920 = vmatprep.subr.mxu0 0.0
    %2921 = vmatpush1.msra.mxu0 0.0
    %2922 = vmatprep.subr.mxu0 0.0
    %2923 = vmatpush1.msra.mxu0 0.0
    %2924 = vmatprep.subr.mxu0 0.0
    %2925 = vmatpush1.msra.mxu0 0.0
    %2926 = vmatprep.subr.mxu0 0.0
    %2927 = vmatpush1.msra.mxu0 0.0
    %2928 = vmatprep.subr.mxu0 0.0
    %2929 = vmatpush1.msra.mxu0 0.0
    %2930 = vmatprep.subr.mxu0 0.0
    %2931 = vmatpush1.msra.mxu0 0.0
    %2932 = vmatprep.subr.mxu0 0.0
    %2933 = vmatpush1.msra.mxu0 0.0
    %2934 = vmatprep.subr.mxu0 0.0
    %2935 = vmatpush1.msra.mxu0 0.0
    %2936 = vmatprep.subr.mxu0 0.0
    %2937 = vmatpush1.msra.mxu0 0.0
    %2938 = vmatprep.subr.mxu0 0.0
    %2939 = vmatpush1.msra.mxu0 0.0
    %2940 = vmatprep.subr.mxu0 0.0
    %2941 = vmatpush1.msra.mxu0 0.0
    %2942 = vmatprep.subr.mxu0 0.0
    %2943 = vmatpush1.msra.mxu0 0.0
    %2944 = vmatprep.subr.mxu0 0.0
    %2945 = vmatpush1.msra.mxu0 0.0
    %2946 = vmatprep.subr.mxu0 0.0
    %2947 = vmatpush1.msra.mxu0 0.0
    %2948 = vmatprep.subr.mxu0 0.0
    %2949 = vmatpush1.msra.mxu0 0.0
    %2950 = vmatprep.subr.mxu0 0.0
    %2951 = vmatpush1.msra.mxu0 0.0
    %2952 = vmatprep.subr.mxu0 0.0
    %2953 = vmatpush1.msra.mxu0 0.0
    %2954 = vmatprep.subr.mxu0 0.0
    %2955 = vmatpush1.msra.mxu0 0.0
    %2956 = vmatprep.subr.mxu0 0.0
    %2957 = vmatpush1.msra.mxu0 0.0
    %2958 = vmatprep.subr.mxu0 0.0
    %2959 = vmatpush1.msra.mxu0 0.0
    %2960 = vmatprep.mubr.f32.mxu0 0.0
    %v2961 = vand.u32 %v2099, 4294901760
    %v2962 = vsub.f32 %v2099, %v2961
    %v2963 = vand.u32 %v2962, 4294901760
    %v2964 = vsub.f32 %v2962, %v2963
    %v2965 = vand.u32 %v2964, 4294901760
    %2966 = vmatmul.mubr.f32.gmra.mrb[0].mxu0 %v2965
    %v2967 = vpop.f32.mrb[0].mxu0
    %v2968 = vadd.f32 %v2873, %v2967
    %v2969 = vpop.f32.mrb[0].mxu0
    %v2970 = vadd.f32 %v2877, %v2969
    %2971 = vmatprep.mubr.f32.mxu0 0.0
    %v2972 = vand.u32 %v2102, 4294901760
    %v2973 = vsub.f32 %v2102, %v2972
    %v2974 = vand.u32 %v2973, 4294901760
    %v2975 = vsub.f32 %v2973, %v2974
    %v2976 = vand.u32 %v2975, 4294901760
    %2977 = vmatmul.mubr.f32.gmra.mrb[0].mxu0 %v2976
    %v2978 = vpop.f32.mrb[0].mxu0
    %v2979 = vadd.f32 %v2873, %v2978
    %v2980 = vpop.f32.mrb[0].mxu0
    %v2981 = vadd.f32 %v2877, %v2980
    %2982 = vdwg.mxu0
    %v2983 = vand.u32 %v2853, 4294901760
    %v2984 = vsub.f32 %v2853, %v2983
    %v2985 = vand.u32 %v2984, 4294901760
    %v2986 = vsub.f32 %v2984, %v2985
    %v2987 = vand.u32 %v2986, 4294901760
    %2988 = vmatprep.subr.mxu0 %v2987
    %v2989 = vand.u32 %v2852, 4294901760
    %v2990 = vsub.f32 %v2852, %v2989
    %v2991 = vand.u32 %v2990, 4294901760
    %v2992 = vsub.f32 %v2990, %v2991
    %v2993 = vand.u32 %v2992, 4294901760
    %2994 = vmatpush1.msra.mxu0 %v2993
    %v2995 = vand.u32 %v2855, 4294901760
    %v2996 = vsub.f32 %v2855, %v2995
    %v2997 = vand.u32 %v2996, 4294901760
    %v2998 = vsub.f32 %v2996, %v2997
    %v2999 = vand.u32 %v2998, 4294901760
    %3000 = vmatprep.subr.mxu0 %v2999
    %v3001 = vand.u32 %v2854, 4294901760
    %v3002 = vsub.f32 %v2854, %v3001
    %v3003 = vand.u32 %v3002, 4294901760
    %v3004 = vsub.f32 %v3002, %v3003
    %v3005 = vand.u32 %v3004, 4294901760
    %3006 = vmatpush1.msra.mxu0 %v3005
    %v3007 = vand.u32 %v2857, 4294901760
    %v3008 = vsub.f32 %v2857, %v3007
    %v3009 = vand.u32 %v3008, 4294901760
    %v3010 = vsub.f32 %v3008, %v3009
    %v3011 = vand.u32 %v3010, 4294901760
    %3012 = vmatprep.subr.mxu0 %v3011
    %v3013 = vand.u32 %v2856, 4294901760
    %v3014 = vsub.f32 %v2856, %v3013
    %v3015 = vand.u32 %v3014, 4294901760
    %v3016 = vsub.f32 %v3014, %v3015
    %v3017 = vand.u32 %v3016, 4294901760
    %3018 = vmatpush1.msra.mxu0 %v3017
    %v3019 = vand.u32 %v2859, 4294901760
    %v3020 = vsub.f32 %v2859, %v3019
    %v3021 = vand.u32 %v3020, 4294901760
    %v3022 = vsub.f32 %v3020, %v3021
    %v3023 = vand.u32 %v3022, 4294901760
    %3024 = vmatprep.subr.mxu0 %v3023
    %v3025 = vand.u32 %v2858, 4294901760
    %v3026 = vsub.f32 %v2858, %v3025
    %v3027 = vand.u32 %v3026, 4294901760
    %v3028 = vsub.f32 %v3026, %v3027
    %v3029 = vand.u32 %v3028, 4294901760
    %3030 = vmatpush1.msra.mxu0 %v3029
    %v3031 = vand.u32 %v2861, 4294901760
    %v3032 = vsub.f32 %v2861, %v3031
    %v3033 = vand.u32 %v3032, 4294901760
    %v3034 = vsub.f32 %v3032, %v3033
    %v3035 = vand.u32 %v3034, 4294901760
    %3036 = vmatprep.subr.mxu0 %v3035
    %v3037 = vand.u32 %v2860, 4294901760
    %v3038 = vsub.f32 %v2860, %v3037
    %v3039 = vand.u32 %v3038, 4294901760
    %v3040 = vsub.f32 %v3038, %v3039
    %v3041 = vand.u32 %v3040, 4294901760
    %3042 = vmatpush1.msra.mxu0 %v3041
    %v3043 = vand.u32 %v2863, 4294901760
    %v3044 = vsub.f32 %v2863, %v3043
    %v3045 = vand.u32 %v3044, 4294901760
    %v3046 = vsub.f32 %v3044, %v3045
    %v3047 = vand.u32 %v3046, 4294901760
    %3048 = vmatprep.subr.mxu0 %v3047
    %v3049 = vand.u32 %v2862, 4294901760
    %v3050 = vsub.f32 %v2862, %v3049
    %v3051 = vand.u32 %v3050, 4294901760
    %v3052 = vsub.f32 %v3050, %v3051
    %v3053 = vand.u32 %v3052, 4294901760
    %3054 = vmatpush1.msra.mxu0 %v3053
    %v3055 = vand.u32 %v2865, 4294901760
    %v3056 = vsub.f32 %v2865, %v3055
    %v3057 = vand.u32 %v3056, 4294901760
    %v3058 = vsub.f32 %v3056, %v3057
    %v3059 = vand.u32 %v3058, 4294901760
    %3060 = vmatprep.subr.mxu0 %v3059
    %v3061 = vand.u32 %v2864, 4294901760
    %v3062 = vsub.f32 %v2864, %v3061
    %v3063 = vand.u32 %v3062, 4294901760
    %v3064 = vsub.f32 %v3062, %v3063
    %v3065 = vand.u32 %v3064, 4294901760
    %3066 = vmatpush1.msra.mxu0 %v3065
    %v3067 = vand.u32 %v2867, 4294901760
    %v3068 = vsub.f32 %v2867, %v3067
    %v3069 = vand.u32 %v3068, 4294901760
    %v3070 = vsub.f32 %v3068, %v3069
    %v3071 = vand.u32 %v3070, 4294901760
    %3072 = vmatprep.subr.mxu0 %v3071
    %v3073 = vand.u32 %v2866, 4294901760
    %v3074 = vsub.f32 %v2866, %v3073
    %v3075 = vand.u32 %v3074, 4294901760
    %v3076 = vsub.f32 %v3074, %v3075
    %v3077 = vand.u32 %v3076, 4294901760
    %3078 = vmatpush1.msra.mxu0 %v3077
    %3079 = vmatprep.subr.mxu0 0.0
    %3080 = vmatpush1.msra.mxu0 0.0
    %3081 = vmatprep.subr.mxu0 0.0
    %3082 = vmatpush1.msra.mxu0 0.0
    %3083 = vmatprep.subr.mxu0 0.0
    %3084 = vmatpush1.msra.mxu0 0.0
    %3085 = vmatprep.subr.mxu0 0.0
    %3086 = vmatpush1.msra.mxu0 0.0
    %3087 = vmatprep.subr.mxu0 0.0
    %3088 = vmatpush1.msra.mxu0 0.0
    %3089 = vmatprep.subr.mxu0 0.0
    %3090 = vmatpush1.msra.mxu0 0.0
    %3091 = vmatprep.subr.mxu0 0.0
    %3092 = vmatpush1.msra.mxu0 0.0
    %3093 = vmatprep.subr.mxu0 0.0
    %3094 = vmatpush1.msra.mxu0 0.0
    %3095 = vmatprep.subr.mxu0 0.0
    %3096 = vmatpush1.msra.mxu0 0.0
    %3097 = vmatprep.subr.mxu0 0.0
    %3098 = vmatpush1.msra.mxu0 0.0
    %3099 = vmatprep.subr.mxu0 0.0
    %3100 = vmatpush1.msra.mxu0 0.0
    %3101 = vmatprep.subr.mxu0 0.0
    %3102 = vmatpush1.msra.mxu0 0.0
    %3103 = vmatprep.subr.mxu0 0.0
    %3104 = vmatpush1.msra.mxu0 0.0
    %3105 = vmatprep.subr.mxu0 0.0
    %3106 = vmatpush1.msra.mxu0 0.0
    %3107 = vmatprep.subr.mxu0 0.0
    %3108 = vmatpush1.msra.mxu0 0.0
    %3109 = vmatprep.subr.mxu0 0.0
    %3110 = vmatpush1.msra.mxu0 0.0
    %3111 = vmatprep.subr.mxu0 0.0
    %3112 = vmatpush1.msra.mxu0 0.0
    %3113 = vmatprep.subr.mxu0 0.0
    %3114 = vmatpush1.msra.mxu0 0.0
    %3115 = vmatprep.subr.mxu0 0.0
    %3116 = vmatpush1.msra.mxu0 0.0
    %3117 = vmatprep.subr.mxu0 0.0
    %3118 = vmatpush1.msra.mxu0 0.0
    %3119 = vmatprep.subr.mxu0 0.0
    %3120 = vmatpush1.msra.mxu0 0.0
    %3121 = vmatprep.subr.mxu0 0.0
    %3122 = vmatpush1.msra.mxu0 0.0
    %3123 = vmatprep.subr.mxu0 0.0
    %3124 = vmatpush1.msra.mxu0 0.0
    %3125 = vmatprep.subr.mxu0 0.0
    %3126 = vmatpush1.msra.mxu0 0.0
    %3127 = vmatprep.mubr.f32.mxu0 0.0
    %v3128 = vand.u32 %v2099, 4294901760
    %3129 = vmatmul.mubr.f32.gmra.mrb[0].mxu0 %v3128
    %v3130 = vpop.f32.mrb[0].mxu0
    %v3131 = vadd.f32 %v2968, %v3130
    %v3132 = vpop.f32.mrb[0].mxu0
    %v3133 = vadd.f32 %v2970, %v3132
    %3134 = vmatprep.mubr.f32.mxu0 0.0
    %v3135 = vand.u32 %v2102, 4294901760
    %3136 = vmatmul.mubr.f32.gmra.mrb[0].mxu0 %v3135
    %v3137 = vpop.f32.mrb[0].mxu0
    %v3138 = vadd.f32 %v2979, %v3137
    %v3139 = vpop.f32.mrb[0].mxu0
    %v3140 = vadd.f32 %v2981, %v3139
    %3141 = vdwg.mxu0
    %v3142 = vand.u32 %v2853, 4294901760
    %v3143 = vsub.f32 %v2853, %v3142
    %3144 = vmatprep.subr.mxu0 %v3143
    %v3145 = vand.u32 %v2852, 4294901760
    %v3146 = vsub.f32 %v2852, %v3145
    %3147 = vmatpush1.msra.mxu0 %v3146
    %v3148 = vand.u32 %v2855, 4294901760
    %v3149 = vsub.f32 %v2855, %v3148
    %3150 = vmatprep.subr.mxu0 %v3149
    %v3151 = vand.u32 %v2854, 4294901760
    %v3152 = vsub.f32 %v2854, %v3151
    %3153 = vmatpush1.msra.mxu0 %v3152
    %v3154 = vand.u32 %v2857, 4294901760
    %v3155 = vsub.f32 %v2857, %v3154
    %3156 = vmatprep.subr.mxu0 %v3155
    %v3157 = vand.u32 %v2856, 4294901760
    %v3158 = vsub.f32 %v2856, %v3157
    %3159 = vmatpush1.msra.mxu0 %v3158
    %v3160 = vand.u32 %v2859, 4294901760
    %v3161 = vsub.f32 %v2859, %v3160
    %3162 = vmatprep.subr.mxu0 %v3161
    %v3163 = vand.u32 %v2858, 4294901760
    %v3164 = vsub.f32 %v2858, %v3163
    %3165 = vmatpush1.msra.mxu0 %v3164
    %v3166 = vand.u32 %v2861, 4294901760
    %v3167 = vsub.f32 %v2861, %v3166
    %3168 = vmatprep.subr.mxu0 %v3167
    %v3169 = vand.u32 %v2860, 4294901760
    %v3170 = vsub.f32 %v2860, %v3169
    %3171 = vmatpush1.msra.mxu0 %v3170
    %v3172 = vand.u32 %v2863, 4294901760
    %v3173 = vsub.f32 %v2863, %v3172
    %3174 = vmatprep.subr.mxu0 %v3173
    %v3175 = vand.u32 %v2862, 4294901760
    %v3176 = vsub.f32 %v2862, %v3175
    %3177 = vmatpush1.msra.mxu0 %v3176
    %v3178 = vand.u32 %v2865, 4294901760
    %v3179 = vsub.f32 %v2865, %v3178
    %3180 = vmatprep.subr.mxu0 %v3179
    %v3181 = vand.u32 %v2864, 4294901760
    %v3182 = vsub.f32 %v2864, %v3181
    %3183 = vmatpush1.msra.mxu0 %v3182
    %v3184 = vand.u32 %v2867, 4294901760
    %v3185 = vsub.f32 %v2867, %v3184
    %3186 = vmatprep.subr.mxu0 %v3185
    %v3187 = vand.u32 %v2866, 4294901760
    %v3188 = vsub.f32 %v2866, %v3187
    %3189 = vmatpush1.msra.mxu0 %v3188
    %3190 = vmatprep.subr.mxu0 0.0
    %3191 = vmatpush1.msra.mxu0 0.0
    %3192 = vmatprep.subr.mxu0 0.0
    %3193 = vmatpush1.msra.mxu0 0.0
    %3194 = vmatprep.subr.mxu0 0.0
    %3195 = vmatpush1.msra.mxu0 0.0
    %3196 = vmatprep.subr.mxu0 0.0
    %3197 = vmatpush1.msra.mxu0 0.0
    %3198 = vmatprep.subr.mxu0 0.0
    %3199 = vmatpush1.msra.mxu0 0.0
    %3200 = vmatprep.subr.mxu0 0.0
    %3201 = vmatpush1.msra.mxu0 0.0
    %3202 = vmatprep.subr.mxu0 0.0
    %3203 = vmatpush1.msra.mxu0 0.0
    %3204 = vmatprep.subr.mxu0 0.0
    %3205 = vmatpush1.msra.mxu0 0.0
    %3206 = vmatprep.subr.mxu0 0.0
    %3207 = vmatpush1.msra.mxu0 0.0
    %3208 = vmatprep.subr.mxu0 0.0
    %3209 = vmatpush1.msra.mxu0 0.0
    %3210 = vmatprep.subr.mxu0 0.0
    %3211 = vmatpush1.msra.mxu0 0.0
    %3212 = vmatprep.subr.mxu0 0.0
    %3213 = vmatpush1.msra.mxu0 0.0
    %3214 = vmatprep.subr.mxu0 0.0
    %3215 = vmatpush1.msra.mxu0 0.0
    %3216 = vmatprep.subr.mxu0 0.0
    %3217 = vmatpush1.msra.mxu0 0.0
    %3218 = vmatprep.subr.mxu0 0.0
    %3219 = vmatpush1.msra.mxu0 0.0
    %3220 = vmatprep.subr.mxu0 0.0
    %3221 = vmatpush1.msra.mxu0 0.0
    %3222 = vmatprep.subr.mxu0 0.0
    %3223 = vmatpush1.msra.mxu0 0.0
    %3224 = vmatprep.subr.mxu0 0.0
    %3225 = vmatpush1.msra.mxu0 0.0
    %3226 = vmatprep.subr.mxu0 0.0
    %3227 = vmatpush1.msra.mxu0 0.0
    %3228 = vmatprep.subr.mxu0 0.0
    %3229 = vmatpush1.msra.mxu0 0.0
    %3230 = vmatprep.subr.mxu0 0.0
    %3231 = vmatpush1.msra.mxu0 0.0
    %3232 = vmatprep.subr.mxu0 0.0
    %3233 = vmatpush1.msra.mxu0 0.0
    %3234 = vmatprep.subr.mxu0 0.0
    %3235 = vmatpush1.msra.mxu0 0.0
    %3236 = vmatprep.subr.mxu0 0.0
    %3237 = vmatpush1.msra.mxu0 0.0
    %3238 = vmatprep.mubr.f32.mxu0 0.0
    %v3239 = vand.u32 %v2099, 4294901760
    %v3240 = vsub.f32 %v2099, %v3239
    %3241 = vmatmul.mubr.f32.gmra.mrb[0].mxu0 %v3240
    %v3242 = vpop.f32.mrb[0].mxu0
    %v3243 = vadd.f32 %v3131, %v3242
    %v3244 = vpop.f32.mrb[0].mxu0
    %v3245 = vadd.f32 %v3133, %v3244
    %3246 = vmatprep.mubr.f32.mxu0 0.0
    %v3247 = vand.u32 %v2102, 4294901760
    %v3248 = vsub.f32 %v2102, %v3247
    %3249 = vmatmul.mubr.f32.gmra.mrb[0].mxu0 %v3248
    %v3250 = vpop.f32.mrb[0].mxu0
    %v3251 = vadd.f32 %v3138, %v3250
    %v3252 = vpop.f32.mrb[0].mxu0
    %v3253 = vadd.f32 %v3140, %v3252
    %3254 = vdwg.mxu0
    %v3255 = vand.u32 %v2853, 4294901760
    %3256 = vmatprep.subr.mxu0 %v3255
    %v3257 = vand.u32 %v2852, 4294901760
    %3258 = vmatpush1.msra.mxu0 %v3257
    %v3259 = vand.u32 %v2855, 4294901760
    %3260 = vmatprep.subr.mxu0 %v3259
    %v3261 = vand.u32 %v2854, 4294901760
    %3262 = vmatpush1.msra.mxu0 %v3261
    %v3263 = vand.u32 %v2857, 4294901760
    %3264 = vmatprep.subr.mxu0 %v3263
    %v3265 = vand.u32 %v2856, 4294901760
    %3266 = vmatpush1.msra.mxu0 %v3265
    %v3267 = vand.u32 %v2859, 4294901760
    %3268 = vmatprep.subr.mxu0 %v3267
    %v3269 = vand.u32 %v2858, 4294901760
    %3270 = vmatpush1.msra.mxu0 %v3269
    %v3271 = vand.u32 %v2861, 4294901760
    %3272 = vmatprep.subr.mxu0 %v3271
    %v3273 = vand.u32 %v2860, 4294901760
    %3274 = vmatpush1.msra.mxu0 %v3273
    %v3275 = vand.u32 %v2863, 4294901760
    %3276 = vmatprep.subr.mxu0 %v3275
    %v3277 = vand.u32 %v2862, 4294901760
    %3278 = vmatpush1.msra.mxu0 %v3277
    %v3279 = vand.u32 %v2865, 4294901760
    %3280 = vmatprep.subr.mxu0 %v3279
    %v3281 = vand.u32 %v2864, 4294901760
    %3282 = vmatpush1.msra.mxu0 %v3281
    %v3283 = vand.u32 %v2867, 4294901760
    %3284 = vmatprep.subr.mxu0 %v3283
    %v3285 = vand.u32 %v2866, 4294901760
    %3286 = vmatpush1.msra.mxu0 %v3285
    %3287 = vmatprep.subr.mxu0 0.0
    %3288 = vmatpush1.msra.mxu0 0.0
    %3289 = vmatprep.subr.mxu0 0.0
    %3290 = vmatpush1.msra.mxu0 0.0
    %3291 = vmatprep.subr.mxu0 0.0
    %3292 = vmatpush1.msra.mxu0 0.0
    %3293 = vmatprep.subr.mxu0 0.0
    %3294 = vmatpush1.msra.mxu0 0.0
    %3295 = vmatprep.subr.mxu0 0.0
    %3296 = vmatpush1.msra.mxu0 0.0
    %3297 = vmatprep.subr.mxu0 0.0
    %3298 = vmatpush1.msra.mxu0 0.0
    %3299 = vmatprep.subr.mxu0 0.0
    %3300 = vmatpush1.msra.mxu0 0.0
    %3301 = vmatprep.subr.mxu0 0.0
    %3302 = vmatpush1.msra.mxu0 0.0
    %3303 = vmatprep.subr.mxu0 0.0
    %3304 = vmatpush1.msra.mxu0 0.0
    %3305 = vmatprep.subr.mxu0 0.0
    %3306 = vmatpush1.msra.mxu0 0.0
    %3307 = vmatprep.subr.mxu0 0.0
    %3308 = vmatpush1.msra.mxu0 0.0
    %3309 = vmatprep.subr.mxu0 0.0
    %3310 = vmatpush1.msra.mxu0 0.0
    %3311 = vmatprep.subr.mxu0 0.0
    %3312 = vmatpush1.msra.mxu0 0.0
    %3313 = vmatprep.subr.mxu0 0.0
    %3314 = vmatpush1.msra.mxu0 0.0
    %3315 = vmatprep.subr.mxu0 0.0
    %3316 = vmatpush1.msra.mxu0 0.0
    %3317 = vmatprep.subr.mxu0 0.0
    %3318 = vmatpush1.msra.mxu0 0.0
    %3319 = vmatprep.subr.mxu0 0.0
    %3320 = vmatpush1.msra.mxu0 0.0
    %3321 = vmatprep.subr.mxu0 0.0
    %3322 = vmatpush1.msra.mxu0 0.0
    %3323 = vmatprep.subr.mxu0 0.0
    %3324 = vmatpush1.msra.mxu0 0.0
    %3325 = vmatprep.subr.mxu0 0.0
    %3326 = vmatpush1.msra.mxu0 0.0
    %3327 = vmatprep.subr.mxu0 0.0
    %3328 = vmatpush1.msra.mxu0 0.0
    %3329 = vmatprep.subr.mxu0 0.0
    %3330 = vmatpush1.msra.mxu0 0.0
    %3331 = vmatprep.subr.mxu0 0.0
    %3332 = vmatpush1.msra.mxu0 0.0
    %3333 = vmatprep.subr.mxu0 0.0
    %3334 = vmatpush1.msra.mxu0 0.0
    %3335 = vmatprep.mubr.f32.mxu0 0.0
    %v3336 = vand.u32 %v2099, 4294901760
    %v3337 = vsub.f32 %v2099, %v3336
    %v3338 = vand.u32 %v3337, 4294901760
    %3339 = vmatmul.mubr.f32.gmra.mrb[0].mxu0 %v3338
    %v3340 = vpop.f32.mrb[0].mxu0
    %v3341 = vadd.f32 %v3243, %v3340
    %v3342 = vpop.f32.mrb[0].mxu0
    %v3343 = vadd.f32 %v3245, %v3342
    %3344 = vmatprep.mubr.f32.mxu0 0.0
    %v3345 = vand.u32 %v2102, 4294901760
    %v3346 = vsub.f32 %v2102, %v3345
    %v3347 = vand.u32 %v3346, 4294901760
    %3348 = vmatmul.mubr.f32.gmra.mrb[0].mxu0 %v3347
    %v3349 = vpop.f32.mrb[0].mxu0
    %v3350 = vadd.f32 %v3251, %v3349
    %v3351 = vpop.f32.mrb[0].mxu0
    %v3352 = vadd.f32 %v3253, %v3351
    %3353 = vdwg.mxu0
    %v3354 = vand.u32 %v2853, 4294901760
    %v3355 = vsub.f32 %v2853, %v3354
    %v3356 = vand.u32 %v3355, 4294901760
    %3357 = vmatprep.subr.mxu0 %v3356
    %v3358 = vand.u32 %v2852, 4294901760
    %v3359 = vsub.f32 %v2852, %v3358
    %v3360 = vand.u32 %v3359, 4294901760
    %3361 = vmatpush1.msra.mxu0 %v3360
    %v3362 = vand.u32 %v2855, 4294901760
    %v3363 = vsub.f32 %v2855, %v3362
    %v3364 = vand.u32 %v3363, 4294901760
    %3365 = vmatprep.subr.mxu0 %v3364
    %v3366 = vand.u32 %v2854, 4294901760
    %v3367 = vsub.f32 %v2854, %v3366
    %v3368 = vand.u32 %v3367, 4294901760
    %3369 = vmatpush1.msra.mxu0 %v3368
    %v3370 = vand.u32 %v2857, 4294901760
    %v3371 = vsub.f32 %v2857, %v3370
    %v3372 = vand.u32 %v3371, 4294901760
    %3373 = vmatprep.subr.mxu0 %v3372
    %v3374 = vand.u32 %v2856, 4294901760
    %v3375 = vsub.f32 %v2856, %v3374
    %v3376 = vand.u32 %v3375, 4294901760
    %3377 = vmatpush1.msra.mxu0 %v3376
    %v3378 = vand.u32 %v2859, 4294901760
    %v3379 = vsub.f32 %v2859, %v3378
    %v3380 = vand.u32 %v3379, 4294901760
    %3381 = vmatprep.subr.mxu0 %v3380
    %v3382 = vand.u32 %v2858, 4294901760
    %v3383 = vsub.f32 %v2858, %v3382
    %v3384 = vand.u32 %v3383, 4294901760
    %3385 = vmatpush1.msra.mxu0 %v3384
    %v3386 = vand.u32 %v2861, 4294901760
    %v3387 = vsub.f32 %v2861, %v3386
    %v3388 = vand.u32 %v3387, 4294901760
    %3389 = vmatprep.subr.mxu0 %v3388
    %v3390 = vand.u32 %v2860, 4294901760
    %v3391 = vsub.f32 %v2860, %v3390
    %v3392 = vand.u32 %v3391, 4294901760
    %3393 = vmatpush1.msra.mxu0 %v3392
    %v3394 = vand.u32 %v2863, 4294901760
    %v3395 = vsub.f32 %v2863, %v3394
    %v3396 = vand.u32 %v3395, 4294901760
    %3397 = vmatprep.subr.mxu0 %v3396
    %v3398 = vand.u32 %v2862, 4294901760
    %v3399 = vsub.f32 %v2862, %v3398
    %v3400 = vand.u32 %v3399, 4294901760
    %3401 = vmatpush1.msra.mxu0 %v3400
    %v3402 = vand.u32 %v2865, 4294901760
    %v3403 = vsub.f32 %v2865, %v3402
    %v3404 = vand.u32 %v3403, 4294901760
    %3405 = vmatprep.subr.mxu0 %v3404
    %v3406 = vand.u32 %v2864, 4294901760
    %v3407 = vsub.f32 %v2864, %v3406
    %v3408 = vand.u32 %v3407, 4294901760
    %3409 = vmatpush1.msra.mxu0 %v3408
    %v3410 = vand.u32 %v2867, 4294901760
    %v3411 = vsub.f32 %v2867, %v3410
    %v3412 = vand.u32 %v3411, 4294901760
    %3413 = vmatprep.subr.mxu0 %v3412
    %v3414 = vand.u32 %v2866, 4294901760
    %v3415 = vsub.f32 %v2866, %v3414
    %v3416 = vand.u32 %v3415, 4294901760
    %3417 = vmatpush1.msra.mxu0 %v3416
    %3418 = vmatprep.subr.mxu0 0.0
    %3419 = vmatpush1.msra.mxu0 0.0
    %3420 = vmatprep.subr.mxu0 0.0
    %3421 = vmatpush1.msra.mxu0 0.0
    %3422 = vmatprep.subr.mxu0 0.0
    %3423 = vmatpush1.msra.mxu0 0.0
    %3424 = vmatprep.subr.mxu0 0.0
    %3425 = vmatpush1.msra.mxu0 0.0
    %3426 = vmatprep.subr.mxu0 0.0
    %3427 = vmatpush1.msra.mxu0 0.0
    %3428 = vmatprep.subr.mxu0 0.0
    %3429 = vmatpush1.msra.mxu0 0.0
    %3430 = vmatprep.subr.mxu0 0.0
    %3431 = vmatpush1.msra.mxu0 0.0
    %3432 = vmatprep.subr.mxu0 0.0
    %3433 = vmatpush1.msra.mxu0 0.0
    %3434 = vmatprep.subr.mxu0 0.0
    %3435 = vmatpush1.msra.mxu0 0.0
    %3436 = vmatprep.subr.mxu0 0.0
    %3437 = vmatpush1.msra.mxu0 0.0
    %3438 = vmatprep.subr.mxu0 0.0
    %3439 = vmatpush1.msra.mxu0 0.0
    %3440 = vmatprep.subr.mxu0 0.0
    %3441 = vmatpush1.msra.mxu0 0.0
    %3442 = vmatprep.subr.mxu0 0.0
    %3443 = vmatpush1.msra.mxu0 0.0
    %3444 = vmatprep.subr.mxu0 0.0
    %3445 = vmatpush1.msra.mxu0 0.0
    %3446 = vmatprep.subr.mxu0 0.0
    %3447 = vmatpush1.msra.mxu0 0.0
    %3448 = vmatprep.subr.mxu0 0.0
    %3449 = vmatpush1.msra.mxu0 0.0
    %3450 = vmatprep.subr.mxu0 0.0
    %3451 = vmatpush1.msra.mxu0 0.0
    %3452 = vmatprep.subr.mxu0 0.0
    %3453 = vmatpush1.msra.mxu0 0.0
    %3454 = vmatprep.subr.mxu0 0.0
    %3455 = vmatpush1.msra.mxu0 0.0
    %3456 = vmatprep.subr.mxu0 0.0
    %3457 = vmatpush1.msra.mxu0 0.0
    %3458 = vmatprep.subr.mxu0 0.0
    %3459 = vmatpush1.msra.mxu0 0.0
    %3460 = vmatprep.subr.mxu0 0.0
    %3461 = vmatpush1.msra.mxu0 0.0
    %3462 = vmatprep.subr.mxu0 0.0
    %3463 = vmatpush1.msra.mxu0 0.0
    %3464 = vmatprep.subr.mxu0 0.0
    %3465 = vmatpush1.msra.mxu0 0.0
    %3466 = vmatprep.mubr.f32.mxu0 0.0
    %v3467 = vand.u32 %v2099, 4294901760
    %3468 = vmatmul.mubr.f32.gmra.mrb[0].mxu0 %v3467
    %v3469 = vpop.f32.mrb[0].mxu0
    %v3470 = vadd.f32 %v3341, %v3469
    %v3471 = vpop.f32.mrb[0].mxu0
    %v3472 = vadd.f32 %v3343, %v3471
    %3473 = vmatprep.mubr.f32.mxu0 0.0
    %v3474 = vand.u32 %v2102, 4294901760
    %3475 = vmatmul.mubr.f32.gmra.mrb[0].mxu0 %v3474
    %v3476 = vpop.f32.mrb[0].mxu0
    %v3477 = vadd.f32 %v3350, %v3476
    %v3478 = vpop.f32.mrb[0].mxu0
    %v3479 = vadd.f32 %v3352, %v3478
    %3480 = vdwg.mxu0
    %v3481 = vand.u32 %v2853, 4294901760
    %3482 = vmatprep.subr.mxu0 %v3481
    %v3483 = vand.u32 %v2852, 4294901760
    %3484 = vmatpush1.msra.mxu0 %v3483
    %v3485 = vand.u32 %v2855, 4294901760
    %3486 = vmatprep.subr.mxu0 %v3485
    %v3487 = vand.u32 %v2854, 4294901760
    %3488 = vmatpush1.msra.mxu0 %v3487
    %v3489 = vand.u32 %v2857, 4294901760
    %3490 = vmatprep.subr.mxu0 %v3489
    %v3491 = vand.u32 %v2856, 4294901760
    %3492 = vmatpush1.msra.mxu0 %v3491
    %v3493 = vand.u32 %v2859, 4294901760
    %3494 = vmatprep.subr.mxu0 %v3493
    %v3495 = vand.u32 %v2858, 4294901760
    %3496 = vmatpush1.msra.mxu0 %v3495
    %v3497 = vand.u32 %v2861, 4294901760
    %3498 = vmatprep.subr.mxu0 %v3497
    %v3499 = vand.u32 %v2860, 4294901760
    %3500 = vmatpush1.msra.mxu0 %v3499
    %v3501 = vand.u32 %v2863, 4294901760
    %3502 = vmatprep.subr.mxu0 %v3501
    %v3503 = vand.u32 %v2862, 4294901760
    %3504 = vmatpush1.msra.mxu0 %v3503
    %v3505 = vand.u32 %v2865, 4294901760
    %3506 = vmatprep.subr.mxu0 %v3505
    %v3507 = vand.u32 %v2864, 4294901760
    %3508 = vmatpush1.msra.mxu0 %v3507
    %v3509 = vand.u32 %v2867, 4294901760
    %3510 = vmatprep.subr.mxu0 %v3509
    %v3511 = vand.u32 %v2866, 4294901760
    %3512 = vmatpush1.msra.mxu0 %v3511
    %3513 = vmatprep.subr.mxu0 0.0
    %3514 = vmatpush1.msra.mxu0 0.0
    %3515 = vmatprep.subr.mxu0 0.0
    %3516 = vmatpush1.msra.mxu0 0.0
    %3517 = vmatprep.subr.mxu0 0.0
    %3518 = vmatpush1.msra.mxu0 0.0
    %3519 = vmatprep.subr.mxu0 0.0
    %3520 = vmatpush1.msra.mxu0 0.0
    %3521 = vmatprep.subr.mxu0 0.0
    %3522 = vmatpush1.msra.mxu0 0.0
    %3523 = vmatprep.subr.mxu0 0.0
    %3524 = vmatpush1.msra.mxu0 0.0
    %3525 = vmatprep.subr.mxu0 0.0
    %3526 = vmatpush1.msra.mxu0 0.0
    %3527 = vmatprep.subr.mxu0 0.0
    %3528 = vmatpush1.msra.mxu0 0.0
    %3529 = vmatprep.subr.mxu0 0.0
    %3530 = vmatpush1.msra.mxu0 0.0
    %3531 = vmatprep.subr.mxu0 0.0
    %3532 = vmatpush1.msra.mxu0 0.0
    %3533 = vmatprep.subr.mxu0 0.0
    %3534 = vmatpush1.msra.mxu0 0.0
    %3535 = vmatprep.subr.mxu0 0.0
    %3536 = vmatpush1.msra.mxu0 0.0
    %3537 = vmatprep.subr.mxu0 0.0
    %3538 = vmatpush1.msra.mxu0 0.0
    %3539 = vmatprep.subr.mxu0 0.0
    %3540 = vmatpush1.msra.mxu0 0.0
    %3541 = vmatprep.subr.mxu0 0.0
    %3542 = vmatpush1.msra.mxu0 0.0
    %3543 = vmatprep.subr.mxu0 0.0
    %3544 = vmatpush1.msra.mxu0 0.0
    %3545 = vmatprep.subr.mxu0 0.0
    %3546 = vmatpush1.msra.mxu0 0.0
    %3547 = vmatprep.subr.mxu0 0.0
    %3548 = vmatpush1.msra.mxu0 0.0
    %3549 = vmatprep.subr.mxu0 0.0
    %3550 = vmatpush1.msra.mxu0 0.0
    %3551 = vmatprep.subr.mxu0 0.0
    %3552 = vmatpush1.msra.mxu0 0.0
    %3553 = vmatprep.subr.mxu0 0.0
    %3554 = vmatpush1.msra.mxu0 0.0
    %3555 = vmatprep.subr.mxu0 0.0
    %3556 = vmatpush1.msra.mxu0 0.0
    %3557 = vmatprep.subr.mxu0 0.0
    %3558 = vmatpush1.msra.mxu0 0.0
    %3559 = vmatprep.subr.mxu0 0.0
    %3560 = vmatpush1.msra.mxu0 0.0
    %3561 = vmatprep.mubr.f32.mxu0 0.0
    %v3562 = vand.u32 %v2099, 4294901760
    %3563 = vmatmul.mubr.f32.gmra.mrb[0].mxu0 %v3562
    %v3564 = vpop.f32.mrb[0].mxu0
    %v3565 = vadd.f32 %v3470, %v3564
    %v3566 = vpop.f32.mrb[0].mxu0
    %v3567 = vadd.f32 %v3472, %v3566
    %3568 = vmatprep.mubr.f32.mxu0 0.0
    %v3569 = vand.u32 %v2102, 4294901760
    %3570 = vmatmul.mubr.f32.gmra.mrb[0].mxu0 %v3569
    %v3571 = vpop.f32.mrb[0].mxu0
    %v3572 = vadd.f32 %v3477, %v3571
    %v3573 = vpop.f32.mrb[0].mxu0
    %v3574 = vadd.f32 %v3479, %v3573
    %3575 = vdwg.mxu0
    %v3576 = vmax.f32 %v3565, %v3567
    %3577 = vmax.xlane.f32.xlu0 %v3576
    %v3578 = vpop.xlane.xlu0 %3577
    %v3579 = vmax.f32 %v3572, %v3574
    %3580 = vmax.xlane.f32.xlu0 %v3579
    %v3581 = vpop.xlane.xlu0 %3580
    %vm3582 = vcmp.eq.f32.partialorder %v3565, %v3578
    %vm3583 = vcmp.eq.f32.partialorder %v3567, %v3578
    %vm3584 = vcmp.eq.f32.partialorder %v3572, %v3581
    %vm3585 = vcmp.eq.f32.partialorder %v3574, %v3581
    %v3586 = vadd.s32 %v97, 256
    %v3587 = vadd.s32 %v2069, 256
    %v3588 = vsel %vm3582, %v3586, 1024
    %v3589 = vsel %vm3583, %v3587, 1024
    %v3590 = vsel %vm3584, %v3586, 1024
    %v3591 = vsel %vm3585, %v3587, 1024
    %vm3592 = vcmp.lt.s32.totalorder %v3588, %v3589
    %v3593 = vsel %vm3592, %v3588, %v3589
    %v3594 = vand.u32 %v3593, 65535
    %v3595 = vshra.s32 %v3593, 16
    %v3596 = vcvt.s32.f32 %v3594
    %v3597 = vcvt.s32.f32 %v3595
    %3598 = vmin.xlane.f32.xlu0 %v3597
    %v3599 = vpop.xlane.xlu0 %3598
    %vm3600 = vcmp.eq.f32.partialorder %v3597, %v3599
    %v3601 = vsel %vm3600, %v3596, inf
    %3602 = vmin.xlane.f32.xlu0 %v3601
    %v3603 = vpop.xlane.xlu0 %3602
    %v3604 = vcvt.f32.s32 %v3603
    %v3605 = vcvt.f32.s32 %v3599
    %v3606 = vshll.u32 %v3605, 16
    %v3607 = vadd.s32 %v3606, %v3604
    %vm3608 = vcmp.lt.s32.totalorder %v3590, %v3591
    %v3609 = vsel %vm3608, %v3590, %v3591
    %v3610 = vand.u32 %v3609, 65535
    %v3611 = vshra.s32 %v3609, 16
    %v3612 = vcvt.s32.f32 %v3610
    %v3613 = vcvt.s32.f32 %v3611
    %3614 = vmin.xlane.f32.xlu0 %v3613
    %v3615 = vpop.xlane.xlu0 %3614
    %vm3616 = vcmp.eq.f32.partialorder %v3613, %v3615
    %v3617 = vsel %vm3616, %v3612, inf
    %3618 = vmin.xlane.f32.xlu0 %v3617
    %v3619 = vpop.xlane.xlu0 %3618
    %v3620 = vcvt.f32.s32 %v3619
    %v3621 = vcvt.f32.s32 %v3615
    %v3622 = vshll.u32 %v3621, 16
    %v3623 = vadd.s32 %v3622, %v3620
    %vm3624 = vcmp.gt.f32.partialorder %v3578, %v2850
    %vm3625 = vcmp.gt.f32.partialorder %v3581, %v2851
    %v3626 = vsel %vm3624, %v3607, %v2848
    %v3627 = vsel %vm3625, %v3623, %v2849
    %v3628 = vsel %vm3624, %v3578, %v2850
    %v3629 = vsel %vm3625, %v3581, %v2851
    %v3630 = vld [vmem:[#allocation8 + $0x20] sm:$0xff]
    %v3631 = vld [vmem:[#allocation8 + $0x28] sm:$0xff]
    %v3632 = vld [vmem:[#allocation8 + $0x60] sm:$0xff]
    %v3633 = vld [vmem:[#allocation8 + $0x68] sm:$0xff]
    %v3634 = vld [vmem:[#allocation8 + $0xa0] sm:$0xff]
    %v3635 = vld [vmem:[#allocation8 + $0xa8] sm:$0xff]
    %v3636 = vld [vmem:[#allocation8 + $0xe0] sm:$0xff]
    %v3637 = vld [vmem:[#allocation8 + $0xe8] sm:$0xff]
    %v3638 = vld [vmem:[#allocation8 + $0x120] sm:$0xff]
    %v3639 = vld [vmem:[#allocation8 + $0x128] sm:$0xff]
    %v3640 = vld [vmem:[#allocation8 + $0x160] sm:$0xff]
    %v3641 = vld [vmem:[#allocation8 + $0x168] sm:$0xff]
    %v3642 = vld [vmem:[#allocation8 + $0x1a0] sm:$0xff]
    %v3643 = vld [vmem:[#allocation8 + $0x1a8] sm:$0xff]
    %v3644 = vld [vmem:[#allocation8 + $0x1e0] sm:$0xff]
    %v3645 = vld [vmem:[#allocation8 + $0x1e8] sm:$0xff]
    %v3646 = vld [vmem:[%s7 + $0x4] sm:$0x3]
    %v3648 = vlaneseq
    %v3649 = vshrl.u32 %v3648, 7
    %v3650 = vsub.s32 0, %v3649
    %v3651 = vrot.slane %v3646, %v3650
    %v3652 = vlaneseq
    %v3653 = vshrl.u32 %v3652, 7
    %v3654 = vsub.s32 1, %v3653
    %v3655 = vrot.slane %v3646, %v3654
    %v3658 = vand.u32 %v3631, 4294901760
    %3659 = vmatprep.subr.mxu0 %v3658
    %v3660 = vand.u32 %v3630, 4294901760
    %3661 = vmatpush1.msra.mxu0 %v3660
    %v3662 = vand.u32 %v3633, 4294901760
    %3663 = vmatprep.subr.mxu0 %v3662
    %v3664 = vand.u32 %v3632, 4294901760
    %3665 = vmatpush1.msra.mxu0 %v3664
    %v3666 = vand.u32 %v3635, 4294901760
    %3667 = vmatprep.subr.mxu0 %v3666
    %v3668 = vand.u32 %v3634, 4294901760
    %3669 = vmatpush1.msra.mxu0 %v3668
    %v3670 = vand.u32 %v3637, 4294901760
    %3671 = vmatprep.subr.mxu0 %v3670
    %v3672 = vand.u32 %v3636, 4294901760
    %3673 = vmatpush1.msra.mxu0 %v3672
    %v3674 = vand.u32 %v3639, 4294901760
    %3675 = vmatprep.subr.mxu0 %v3674
    %v3676 = vand.u32 %v3638, 4294901760
    %3677 = vmatpush1.msra.mxu0 %v3676
    %v3678 = vand.u32 %v3641, 4294901760
    %3679 = vmatprep.subr.mxu0 %v3678
    %v3680 = vand.u32 %v3640, 4294901760
    %3681 = vmatpush1.msra.mxu0 %v3680
    %v3682 = vand.u32 %v3643, 4294901760
    %3683 = vmatprep.subr.mxu0 %v3682
    %v3684 = vand.u32 %v3642, 4294901760
    %3685 = vmatpush1.msra.mxu0 %v3684
    %v3686 = vand.u32 %v3645, 4294901760
    %3687 = vmatprep.subr.mxu0 %v3686
    %v3688 = vand.u32 %v3644, 4294901760
    %3689 = vmatpush1.msra.mxu0 %v3688
    %3690 = vmatprep.subr.mxu0 0.0
    %3691 = vmatpush1.msra.mxu0 0.0
    %3692 = vmatprep.subr.mxu0 0.0
    %3693 = vmatpush1.msra.mxu0 0.0
    %3694 = vmatprep.subr.mxu0 0.0
    %3695 = vmatpush1.msra.mxu0 0.0
    %3696 = vmatprep.subr.mxu0 0.0
    %3697 = vmatpush1.msra.mxu0 0.0
    %3698 = vmatprep.subr.mxu0 0.0
    %3699 = vmatpush1.msra.mxu0 0.0
    %3700 = vmatprep.subr.mxu0 0.0
    %3701 = vmatpush1.msra.mxu0 0.0
    %3702 = vmatprep.subr.mxu0 0.0
    %3703 = vmatpush1.msra.mxu0 0.0
    %3704 = vmatprep.subr.mxu0 0.0
    %3705 = vmatpush1.msra.mxu0 0.0
    %3706 = vmatprep.subr.mxu0 0.0
    %3707 = vmatpush1.msra.mxu0 0.0
    %3708 = vmatprep.subr.mxu0 0.0
    %3709 = vmatpush1.msra.mxu0 0.0
    %3710 = vmatprep.subr.mxu0 0.0
    %3711 = vmatpush1.msra.mxu0 0.0
    %3712 = vmatprep.subr.mxu0 0.0
    %3713 = vmatpush1.msra.mxu0 0.0
    %3714 = vmatprep.subr.mxu0 0.0
    %3715 = vmatpush1.msra.mxu0 0.0
    %3716 = vmatprep.subr.mxu0 0.0
    %3717 = vmatpush1.msra.mxu0 0.0
    %3718 = vmatprep.subr.mxu0 0.0
    %3719 = vmatpush1.msra.mxu0 0.0
    %3720 = vmatprep.subr.mxu0 0.0
    %3721 = vmatpush1.msra.mxu0 0.0
    %3722 = vmatprep.subr.mxu0 0.0
    %3723 = vmatpush1.msra.mxu0 0.0
    %3724 = vmatprep.subr.mxu0 0.0
    %3725 = vmatpush1.msra.mxu0 0.0
    %3726 = vmatprep.subr.mxu0 0.0
    %3727 = vmatpush1.msra.mxu0 0.0
    %3728 = vmatprep.subr.mxu0 0.0
    %3729 = vmatpush1.msra.mxu0 0.0
    %3730 = vmatprep.subr.mxu0 0.0
    %3731 = vmatpush1.msra.mxu0 0.0
    %3732 = vmatprep.subr.mxu0 0.0
    %3733 = vmatpush1.msra.mxu0 0.0
    %3734 = vmatprep.subr.mxu0 0.0
    %3735 = vmatpush1.msra.mxu0 0.0
    %3736 = vmatprep.subr.mxu0 0.0
    %3737 = vmatpush1.msra.mxu0 0.0
    %3738 = vmatprep.mubr.f32.mxu0 0.0
    %v3739 = vand.u32 %v2099, 4294901760
    %v3740 = vsub.f32 %v2099, %v3739
    %v3741 = vand.u32 %v3740, 4294901760
    %v3742 = vsub.f32 %v3740, %v3741
    %v3743 = vand.u32 %v3742, 4294901760
    %3744 = vmatmul.mubr.f32.gmra.mrb[0].mxu0 %v3743
    %v3745 = vpop.f32.mrb[0].mxu0
    %v3746 = vadd.f32 %v3651, %v3745
    %v3747 = vpop.f32.mrb[0].mxu0
    %v3748 = vadd.f32 %v3655, %v3747
    %3749 = vmatprep.mubr.f32.mxu0 0.0
    %v3750 = vand.u32 %v2102, 4294901760
    %v3751 = vsub.f32 %v2102, %v3750
    %v3752 = vand.u32 %v3751, 4294901760
    %v3753 = vsub.f32 %v3751, %v3752
    %v3754 = vand.u32 %v3753, 4294901760
    %3755 = vmatmul.mubr.f32.gmra.mrb[0].mxu0 %v3754
    %v3756 = vpop.f32.mrb[0].mxu0
    %v3757 = vadd.f32 %v3651, %v3756
    %v3758 = vpop.f32.mrb[0].mxu0
    %v3759 = vadd.f32 %v3655, %v3758
    %3760 = vdwg.mxu0
    %v3761 = vand.u32 %v3631, 4294901760
    %v3762 = vsub.f32 %v3631, %v3761
    %v3763 = vand.u32 %v3762, 4294901760
    %v3764 = vsub.f32 %v3762, %v3763
    %v3765 = vand.u32 %v3764, 4294901760
    %3766 = vmatprep.subr.mxu0 %v3765
    %v3767 = vand.u32 %v3630, 4294901760
    %v3768 = vsub.f32 %v3630, %v3767
    %v3769 = vand.u32 %v3768, 4294901760
    %v3770 = vsub.f32 %v3768, %v3769
    %v3771 = vand.u32 %v3770, 4294901760
    %3772 = vmatpush1.msra.mxu0 %v3771
    %v3773 = vand.u32 %v3633, 4294901760
    %v3774 = vsub.f32 %v3633, %v3773
    %v3775 = vand.u32 %v3774, 4294901760
    %v3776 = vsub.f32 %v3774, %v3775
    %v3777 = vand.u32 %v3776, 4294901760
    %3778 = vmatprep.subr.mxu0 %v3777
    %v3779 = vand.u32 %v3632, 4294901760
    %v3780 = vsub.f32 %v3632, %v3779
    %v3781 = vand.u32 %v3780, 4294901760
    %v3782 = vsub.f32 %v3780, %v3781
    %v3783 = vand.u32 %v3782, 4294901760
    %3784 = vmatpush1.msra.mxu0 %v3783
    %v3785 = vand.u32 %v3635, 4294901760
    %v3786 = vsub.f32 %v3635, %v3785
    %v3787 = vand.u32 %v3786, 4294901760
    %v3788 = vsub.f32 %v3786, %v3787
    %v3789 = vand.u32 %v3788, 4294901760
    %3790 = vmatprep.subr.mxu0 %v3789
    %v3791 = vand.u32 %v3634, 4294901760
    %v3792 = vsub.f32 %v3634, %v3791
    %v3793 = vand.u32 %v3792, 4294901760
    %v3794 = vsub.f32 %v3792, %v3793
    %v3795 = vand.u32 %v3794, 4294901760
    %3796 = vmatpush1.msra.mxu0 %v3795
    %v3797 = vand.u32 %v3637, 4294901760
    %v3798 = vsub.f32 %v3637, %v3797
    %v3799 = vand.u32 %v3798, 4294901760
    %v3800 = vsub.f32 %v3798, %v3799
    %v3801 = vand.u32 %v3800, 4294901760
    %3802 = vmatprep.subr.mxu0 %v3801
    %v3803 = vand.u32 %v3636, 4294901760
    %v3804 = vsub.f32 %v3636, %v3803
    %v3805 = vand.u32 %v3804, 4294901760
    %v3806 = vsub.f32 %v3804, %v3805
    %v3807 = vand.u32 %v3806, 4294901760
    %3808 = vmatpush1.msra.mxu0 %v3807
    %v3809 = vand.u32 %v3639, 4294901760
    %v3810 = vsub.f32 %v3639, %v3809
    %v3811 = vand.u32 %v3810, 4294901760
    %v3812 = vsub.f32 %v3810, %v3811
    %v3813 = vand.u32 %v3812, 4294901760
    %3814 = vmatprep.subr.mxu0 %v3813
    %v3815 = vand.u32 %v3638, 4294901760
    %v3816 = vsub.f32 %v3638, %v3815
    %v3817 = vand.u32 %v3816, 4294901760
    %v3818 = vsub.f32 %v3816, %v3817
    %v3819 = vand.u32 %v3818, 4294901760
    %3820 = vmatpush1.msra.mxu0 %v3819
    %v3821 = vand.u32 %v3641, 4294901760
    %v3822 = vsub.f32 %v3641, %v3821
    %v3823 = vand.u32 %v3822, 4294901760
    %v3824 = vsub.f32 %v3822, %v3823
    %v3825 = vand.u32 %v3824, 4294901760
    %3826 = vmatprep.subr.mxu0 %v3825
    %v3827 = vand.u32 %v3640, 4294901760
    %v3828 = vsub.f32 %v3640, %v3827
    %v3829 = vand.u32 %v3828, 4294901760
    %v3830 = vsub.f32 %v3828, %v3829
    %v3831 = vand.u32 %v3830, 4294901760
    %3832 = vmatpush1.msra.mxu0 %v3831
    %v3833 = vand.u32 %v3643, 4294901760
    %v3834 = vsub.f32 %v3643, %v3833
    %v3835 = vand.u32 %v3834, 4294901760
    %v3836 = vsub.f32 %v3834, %v3835
    %v3837 = vand.u32 %v3836, 4294901760
    %3838 = vmatprep.subr.mxu0 %v3837
    %v3839 = vand.u32 %v3642, 4294901760
    %v3840 = vsub.f32 %v3642, %v3839
    %v3841 = vand.u32 %v3840, 4294901760
    %v3842 = vsub.f32 %v3840, %v3841
    %v3843 = vand.u32 %v3842, 4294901760
    %3844 = vmatpush1.msra.mxu0 %v3843
    %v3845 = vand.u32 %v3645, 4294901760
    %v3846 = vsub.f32 %v3645, %v3845
    %v3847 = vand.u32 %v3846, 4294901760
    %v3848 = vsub.f32 %v3846, %v3847
    %v3849 = vand.u32 %v3848, 4294901760
    %3850 = vmatprep.subr.mxu0 %v3849
    %v3851 = vand.u32 %v3644, 4294901760
    %v3852 = vsub.f32 %v3644, %v3851
    %v3853 = vand.u32 %v3852, 4294901760
    %v3854 = vsub.f32 %v3852, %v3853
    %v3855 = vand.u32 %v3854, 4294901760
    %3856 = vmatpush1.msra.mxu0 %v3855
    %3857 = vmatprep.subr.mxu0 0.0
    %3858 = vmatpush1.msra.mxu0 0.0
    %3859 = vmatprep.subr.mxu0 0.0
    %3860 = vmatpush1.msra.mxu0 0.0
    %3861 = vmatprep.subr.mxu0 0.0
    %3862 = vmatpush1.msra.mxu0 0.0
    %3863 = vmatprep.subr.mxu0 0.0
    %3864 = vmatpush1.msra.mxu0 0.0
    %3865 = vmatprep.subr.mxu0 0.0
    %3866 = vmatpush1.msra.mxu0 0.0
    %3867 = vmatprep.subr.mxu0 0.0
    %3868 = vmatpush1.msra.mxu0 0.0
    %3869 = vmatprep.subr.mxu0 0.0
    %3870 = vmatpush1.msra.mxu0 0.0
    %3871 = vmatprep.subr.mxu0 0.0
    %3872 = vmatpush1.msra.mxu0 0.0
    %3873 = vmatprep.subr.mxu0 0.0
    %3874 = vmatpush1.msra.mxu0 0.0
    %3875 = vmatprep.subr.mxu0 0.0
    %3876 = vmatpush1.msra.mxu0 0.0
    %3877 = vmatprep.subr.mxu0 0.0
    %3878 = vmatpush1.msra.mxu0 0.0
    %3879 = vmatprep.subr.mxu0 0.0
    %3880 = vmatpush1.msra.mxu0 0.0
    %3881 = vmatprep.subr.mxu0 0.0
    %3882 = vmatpush1.msra.mxu0 0.0
    %3883 = vmatprep.subr.mxu0 0.0
    %3884 = vmatpush1.msra.mxu0 0.0
    %3885 = vmatprep.subr.mxu0 0.0
    %3886 = vmatpush1.msra.mxu0 0.0
    %3887 = vmatprep.subr.mxu0 0.0
    %3888 = vmatpush1.msra.mxu0 0.0
    %3889 = vmatprep.subr.mxu0 0.0
    %3890 = vmatpush1.msra.mxu0 0.0
    %3891 = vmatprep.subr.mxu0 0.0
    %3892 = vmatpush1.msra.mxu0 0.0
    %3893 = vmatprep.subr.mxu0 0.0
    %3894 = vmatpush1.msra.mxu0 0.0
    %3895 = vmatprep.subr.mxu0 0.0
    %3896 = vmatpush1.msra.mxu0 0.0
    %3897 = vmatprep.subr.mxu0 0.0
    %3898 = vmatpush1.msra.mxu0 0.0
    %3899 = vmatprep.subr.mxu0 0.0
    %3900 = vmatpush1.msra.mxu0 0.0
    %3901 = vmatprep.subr.mxu0 0.0
    %3902 = vmatpush1.msra.mxu0 0.0
    %3903 = vmatprep.subr.mxu0 0.0
    %3904 = vmatpush1.msra.mxu0 0.0
    %3905 = vmatprep.mubr.f32.mxu0 0.0
    %v3906 = vand.u32 %v2099, 4294901760
    %3907 = vmatmul.mubr.f32.gmra.mrb[0].mxu0 %v3906
    %v3908 = vpop.f32.mrb[0].mxu0
    %v3909 = vadd.f32 %v3746, %v3908
    %v3910 = vpop.f32.mrb[0].mxu0
    %v3911 = vadd.f32 %v3748, %v3910
    %3912 = vmatprep.mubr.f32.mxu0 0.0
    %v3913 = vand.u32 %v2102, 4294901760
    %3914 = vmatmul.mubr.f32.gmra.mrb[0].mxu0 %v3913
    %v3915 = vpop.f32.mrb[0].mxu0
    %v3916 = vadd.f32 %v3757, %v3915
    %v3917 = vpop.f32.mrb[0].mxu0
    %v3918 = vadd.f32 %v3759, %v3917
    %3919 = vdwg.mxu0
    %v3920 = vand.u32 %v3631, 4294901760
    %v3921 = vsub.f32 %v3631, %v3920
    %3922 = vmatprep.subr.mxu0 %v3921
    %v3923 = vand.u32 %v3630, 4294901760
    %v3924 = vsub.f32 %v3630, %v3923
    %3925 = vmatpush1.msra.mxu0 %v3924
    %v3926 = vand.u32 %v3633, 4294901760
    %v3927 = vsub.f32 %v3633, %v3926
    %3928 = vmatprep.subr.mxu0 %v3927
    %v3929 = vand.u32 %v3632, 4294901760
    %v3930 = vsub.f32 %v3632, %v3929
    %3931 = vmatpush1.msra.mxu0 %v3930
    %v3932 = vand.u32 %v3635, 4294901760
    %v3933 = vsub.f32 %v3635, %v3932
    %3934 = vmatprep.subr.mxu0 %v3933
    %v3935 = vand.u32 %v3634, 4294901760
    %v3936 = vsub.f32 %v3634, %v3935
    %3937 = vmatpush1.msra.mxu0 %v3936
    %v3938 = vand.u32 %v3637, 4294901760
    %v3939 = vsub.f32 %v3637, %v3938
    %3940 = vmatprep.subr.mxu0 %v3939
    %v3941 = vand.u32 %v3636, 4294901760
    %v3942 = vsub.f32 %v3636, %v3941
    %3943 = vmatpush1.msra.mxu0 %v3942
    %v3944 = vand.u32 %v3639, 4294901760
    %v3945 = vsub.f32 %v3639, %v3944
    %3946 = vmatprep.subr.mxu0 %v3945
    %v3947 = vand.u32 %v3638, 4294901760
    %v3948 = vsub.f32 %v3638, %v3947
    %3949 = vmatpush1.msra.mxu0 %v3948
    %v3950 = vand.u32 %v3641, 4294901760
    %v3951 = vsub.f32 %v3641, %v3950
    %3952 = vmatprep.subr.mxu0 %v3951
    %v3953 = vand.u32 %v3640, 4294901760
    %v3954 = vsub.f32 %v3640, %v3953
    %3955 = vmatpush1.msra.mxu0 %v3954
    %v3956 = vand.u32 %v3643, 4294901760
    %v3957 = vsub.f32 %v3643, %v3956
    %3958 = vmatprep.subr.mxu0 %v3957
    %v3959 = vand.u32 %v3642, 4294901760
    %v3960 = vsub.f32 %v3642, %v3959
    %3961 = vmatpush1.msra.mxu0 %v3960
    %v3962 = vand.u32 %v3645, 4294901760
    %v3963 = vsub.f32 %v3645, %v3962
    %3964 = vmatprep.subr.mxu0 %v3963
    %v3965 = vand.u32 %v3644, 4294901760
    %v3966 = vsub.f32 %v3644, %v3965
    %3967 = vmatpush1.msra.mxu0 %v3966
    %3968 = vmatprep.subr.mxu0 0.0
    %3969 = vmatpush1.msra.mxu0 0.0
    %3970 = vmatprep.subr.mxu0 0.0
    %3971 = vmatpush1.msra.mxu0 0.0
    %3972 = vmatprep.subr.mxu0 0.0
    %3973 = vmatpush1.msra.mxu0 0.0
    %3974 = vmatprep.subr.mxu0 0.0
    %3975 = vmatpush1.msra.mxu0 0.0
    %3976 = vmatprep.subr.mxu0 0.0
    %3977 = vmatpush1.msra.mxu0 0.0
    %3978 = vmatprep.subr.mxu0 0.0
    %3979 = vmatpush1.msra.mxu0 0.0
    %3980 = vmatprep.subr.mxu0 0.0
    %3981 = vmatpush1.msra.mxu0 0.0
    %3982 = vmatprep.subr.mxu0 0.0
    %3983 = vmatpush1.msra.mxu0 0.0
    %3984 = vmatprep.subr.mxu0 0.0
    %3985 = vmatpush1.msra.mxu0 0.0
    %3986 = vmatprep.subr.mxu0 0.0
    %3987 = vmatpush1.msra.mxu0 0.0
    %3988 = vmatprep.subr.mxu0 0.0
    %3989 = vmatpush1.msra.mxu0 0.0
    %3990 = vmatprep.subr.mxu0 0.0
    %3991 = vmatpush1.msra.mxu0 0.0
    %3992 = vmatprep.subr.mxu0 0.0
    %3993 = vmatpush1.msra.mxu0 0.0
    %3994 = vmatprep.subr.mxu0 0.0
    %3995 = vmatpush1.msra.mxu0 0.0
    %3996 = vmatprep.subr.mxu0 0.0
    %3997 = vmatpush1.msra.mxu0 0.0
    %3998 = vmatprep.subr.mxu0 0.0
    %3999 = vmatpush1.msra.mxu0 0.0
    %4000 = vmatprep.subr.mxu0 0.0
    %4001 = vmatpush1.msra.mxu0 0.0
    %4002 = vmatprep.subr.mxu0 0.0
    %4003 = vmatpush1.msra.mxu0 0.0
    %4004 = vmatprep.subr.mxu0 0.0
    %4005 = vmatpush1.msra.mxu0 0.0
    %4006 = vmatprep.subr.mxu0 0.0
    %4007 = vmatpush1.msra.mxu0 0.0
    %4008 = vmatprep.subr.mxu0 0.0
    %4009 = vmatpush1.msra.mxu0 0.0
    %4010 = vmatprep.subr.mxu0 0.0
    %4011 = vmatpush1.msra.mxu0 0.0
    %4012 = vmatprep.subr.mxu0 0.0
    %4013 = vmatpush1.msra.mxu0 0.0
    %4014 = vmatprep.subr.mxu0 0.0
    %4015 = vmatpush1.msra.mxu0 0.0
    %4016 = vmatprep.mubr.f32.mxu0 0.0
    %v4017 = vand.u32 %v2099, 4294901760
    %v4018 = vsub.f32 %v2099, %v4017
    %4019 = vmatmul.mubr.f32.gmra.mrb[0].mxu0 %v4018
    %v4020 = vpop.f32.mrb[0].mxu0
    %v4021 = vadd.f32 %v3909, %v4020
    %v4022 = vpop.f32.mrb[0].mxu0
    %v4023 = vadd.f32 %v3911, %v4022
    %4024 = vmatprep.mubr.f32.mxu0 0.0
    %v4025 = vand.u32 %v2102, 4294901760
    %v4026 = vsub.f32 %v2102, %v4025
    %4027 = vmatmul.mubr.f32.gmra.mrb[0].mxu0 %v4026
    %v4028 = vpop.f32.mrb[0].mxu0
    %v4029 = vadd.f32 %v3916, %v4028
    %v4030 = vpop.f32.mrb[0].mxu0
    %v4031 = vadd.f32 %v3918, %v4030
    %4032 = vdwg.mxu0
    %v4033 = vand.u32 %v3631, 4294901760
    %4034 = vmatprep.subr.mxu0 %v4033
    %v4035 = vand.u32 %v3630, 4294901760
    %4036 = vmatpush1.msra.mxu0 %v4035
    %v4037 = vand.u32 %v3633, 4294901760
    %4038 = vmatprep.subr.mxu0 %v4037
    %v4039 = vand.u32 %v3632, 4294901760
    %4040 = vmatpush1.msra.mxu0 %v4039
    %v4041 = vand.u32 %v3635, 4294901760
    %4042 = vmatprep.subr.mxu0 %v4041
    %v4043 = vand.u32 %v3634, 4294901760
    %4044 = vmatpush1.msra.mxu0 %v4043
    %v4045 = vand.u32 %v3637, 4294901760
    %4046 = vmatprep.subr.mxu0 %v4045
    %v4047 = vand.u32 %v3636, 4294901760
    %4048 = vmatpush1.msra.mxu0 %v4047
    %v4049 = vand.u32 %v3639, 4294901760
    %4050 = vmatprep.subr.mxu0 %v4049
    %v4051 = vand.u32 %v3638, 4294901760
    %4052 = vmatpush1.msra.mxu0 %v4051
    %v4053 = vand.u32 %v3641, 4294901760
    %4054 = vmatprep.subr.mxu0 %v4053
    %v4055 = vand.u32 %v3640, 4294901760
    %4056 = vmatpush1.msra.mxu0 %v4055
    %v4057 = vand.u32 %v3643, 4294901760
    %4058 = vmatprep.subr.mxu0 %v4057
    %v4059 = vand.u32 %v3642, 4294901760
    %4060 = vmatpush1.msra.mxu0 %v4059
    %v4061 = vand.u32 %v3645, 4294901760
    %4062 = vmatprep.subr.mxu0 %v4061
    %v4063 = vand.u32 %v3644, 4294901760
    %4064 = vmatpush1.msra.mxu0 %v4063
    %4065 = vmatprep.subr.mxu0 0.0
    %4066 = vmatpush1.msra.mxu0 0.0
    %4067 = vmatprep.subr.mxu0 0.0
    %4068 = vmatpush1.msra.mxu0 0.0
    %4069 = vmatprep.subr.mxu0 0.0
    %4070 = vmatpush1.msra.mxu0 0.0
    %4071 = vmatprep.subr.mxu0 0.0
    %4072 = vmatpush1.msra.mxu0 0.0
    %4073 = vmatprep.subr.mxu0 0.0
    %4074 = vmatpush1.msra.mxu0 0.0
    %4075 = vmatprep.subr.mxu0 0.0
    %4076 = vmatpush1.msra.mxu0 0.0
    %4077 = vmatprep.subr.mxu0 0.0
    %4078 = vmatpush1.msra.mxu0 0.0
    %4079 = vmatprep.subr.mxu0 0.0
    %4080 = vmatpush1.msra.mxu0 0.0
    %4081 = vmatprep.subr.mxu0 0.0
    %4082 = vmatpush1.msra.mxu0 0.0
    %4083 = vmatprep.subr.mxu0 0.0
    %4084 = vmatpush1.msra.mxu0 0.0
    %4085 = vmatprep.subr.mxu0 0.0
    %4086 = vmatpush1.msra.mxu0 0.0
    %4087 = vmatprep.subr.mxu0 0.0
    %4088 = vmatpush1.msra.mxu0 0.0
    %4089 = vmatprep.subr.mxu0 0.0
    %4090 = vmatpush1.msra.mxu0 0.0
    %4091 = vmatprep.subr.mxu0 0.0
    %4092 = vmatpush1.msra.mxu0 0.0
    %4093 = vmatprep.subr.mxu0 0.0
    %4094 = vmatpush1.msra.mxu0 0.0
    %4095 = vmatprep.subr.mxu0 0.0
    %4096 = vmatpush1.msra.mxu0 0.0
    %4097 = vmatprep.subr.mxu0 0.0
    %4098 = vmatpush1.msra.mxu0 0.0
    %4099 = vmatprep.subr.mxu0 0.0
    %4100 = vmatpush1.msra.mxu0 0.0
    %4101 = vmatprep.subr.mxu0 0.0
    %4102 = vmatpush1.msra.mxu0 0.0
    %4103 = vmatprep.subr.mxu0 0.0
    %4104 = vmatpush1.msra.mxu0 0.0
    %4105 = vmatprep.subr.mxu0 0.0
    %4106 = vmatpush1.msra.mxu0 0.0
    %4107 = vmatprep.subr.mxu0 0.0
    %4108 = vmatpush1.msra.mxu0 0.0
    %4109 = vmatprep.subr.mxu0 0.0
    %4110 = vmatpush1.msra.mxu0 0.0
    %4111 = vmatprep.subr.mxu0 0.0
    %4112 = vmatpush1.msra.mxu0 0.0
    %4113 = vmatprep.mubr.f32.mxu0 0.0
    %v4114 = vand.u32 %v2099, 4294901760
    %v4115 = vsub.f32 %v2099, %v4114
    %v4116 = vand.u32 %v4115, 4294901760
    %4117 = vmatmul.mubr.f32.gmra.mrb[0].mxu0 %v4116
    %v4118 = vpop.f32.mrb[0].mxu0
    %v4119 = vadd.f32 %v4021, %v4118
    %v4120 = vpop.f32.mrb[0].mxu0
    %v4121 = vadd.f32 %v4023, %v4120
    %4122 = vmatprep.mubr.f32.mxu0 0.0
    %v4123 = vand.u32 %v2102, 4294901760
    %v4124 = vsub.f32 %v2102, %v4123
    %v4125 = vand.u32 %v4124, 4294901760
    %4126 = vmatmul.mubr.f32.gmra.mrb[0].mxu0 %v4125
    %v4127 = vpop.f32.mrb[0].mxu0
    %v4128 = vadd.f32 %v4029, %v4127
    %v4129 = vpop.f32.mrb[0].mxu0
    %v4130 = vadd.f32 %v4031, %v4129
    %4131 = vdwg.mxu0
    %v4132 = vand.u32 %v3631, 4294901760
    %v4133 = vsub.f32 %v3631, %v4132
    %v4134 = vand.u32 %v4133, 4294901760
    %4135 = vmatprep.subr.mxu0 %v4134
    %v4136 = vand.u32 %v3630, 4294901760
    %v4137 = vsub.f32 %v3630, %v4136
    %v4138 = vand.u32 %v4137, 4294901760
    %4139 = vmatpush1.msra.mxu0 %v4138
    %v4140 = vand.u32 %v3633, 4294901760
    %v4141 = vsub.f32 %v3633, %v4140
    %v4142 = vand.u32 %v4141, 4294901760
    %4143 = vmatprep.subr.mxu0 %v4142
    %v4144 = vand.u32 %v3632, 4294901760
    %v4145 = vsub.f32 %v3632, %v4144
    %v4146 = vand.u32 %v4145, 4294901760
    %4147 = vmatpush1.msra.mxu0 %v4146
    %v4148 = vand.u32 %v3635, 4294901760
    %v4149 = vsub.f32 %v3635, %v4148
    %v4150 = vand.u32 %v4149, 4294901760
    %4151 = vmatprep.subr.mxu0 %v4150
    %v4152 = vand.u32 %v3634, 4294901760
    %v4153 = vsub.f32 %v3634, %v4152
    %v4154 = vand.u32 %v4153, 4294901760
    %4155 = vmatpush1.msra.mxu0 %v4154
    %v4156 = vand.u32 %v3637, 4294901760
    %v4157 = vsub.f32 %v3637, %v4156
    %v4158 = vand.u32 %v4157, 4294901760
    %4159 = vmatprep.subr.mxu0 %v4158
    %v4160 = vand.u32 %v3636, 4294901760
    %v4161 = vsub.f32 %v3636, %v4160
    %v4162 = vand.u32 %v4161, 4294901760
    %4163 = vmatpush1.msra.mxu0 %v4162
    %v4164 = vand.u32 %v3639, 4294901760
    %v4165 = vsub.f32 %v3639, %v4164
    %v4166 = vand.u32 %v4165, 4294901760
    %4167 = vmatprep.subr.mxu0 %v4166
    %v4168 = vand.u32 %v3638, 4294901760
    %v4169 = vsub.f32 %v3638, %v4168
    %v4170 = vand.u32 %v4169, 4294901760
    %4171 = vmatpush1.msra.mxu0 %v4170
    %v4172 = vand.u32 %v3641, 4294901760
    %v4173 = vsub.f32 %v3641, %v4172
    %v4174 = vand.u32 %v4173, 4294901760
    %4175 = vmatprep.subr.mxu0 %v4174
    %v4176 = vand.u32 %v3640, 4294901760
    %v4177 = vsub.f32 %v3640, %v4176
    %v4178 = vand.u32 %v4177, 4294901760
    %4179 = vmatpush1.msra.mxu0 %v4178
    %v4180 = vand.u32 %v3643, 4294901760
    %v4181 = vsub.f32 %v3643, %v4180
    %v4182 = vand.u32 %v4181, 4294901760
    %4183 = vmatprep.subr.mxu0 %v4182
    %v4184 = vand.u32 %v3642, 4294901760
    %v4185 = vsub.f32 %v3642, %v4184
    %v4186 = vand.u32 %v4185, 4294901760
    %4187 = vmatpush1.msra.mxu0 %v4186
    %v4188 = vand.u32 %v3645, 4294901760
    %v4189 = vsub.f32 %v3645, %v4188
    %v4190 = vand.u32 %v4189, 4294901760
    %4191 = vmatprep.subr.mxu0 %v4190
    %v4192 = vand.u32 %v3644, 4294901760
    %v4193 = vsub.f32 %v3644, %v4192
    %v4194 = vand.u32 %v4193, 4294901760
    %4195 = vmatpush1.msra.mxu0 %v4194
    %4196 = vmatprep.subr.mxu0 0.0
    %4197 = vmatpush1.msra.mxu0 0.0
    %4198 = vmatprep.subr.mxu0 0.0
    %4199 = vmatpush1.msra.mxu0 0.0
    %4200 = vmatprep.subr.mxu0 0.0
    %4201 = vmatpush1.msra.mxu0 0.0
    %4202 = vmatprep.subr.mxu0 0.0
    %4203 = vmatpush1.msra.mxu0 0.0
    %4204 = vmatprep.subr.mxu0 0.0
    %4205 = vmatpush1.msra.mxu0 0.0
    %4206 = vmatprep.subr.mxu0 0.0
    %4207 = vmatpush1.msra.mxu0 0.0
    %4208 = vmatprep.subr.mxu0 0.0
    %4209 = vmatpush1.msra.mxu0 0.0
    %4210 = vmatprep.subr.mxu0 0.0
    %4211 = vmatpush1.msra.mxu0 0.0
    %4212 = vmatprep.subr.mxu0 0.0
    %4213 = vmatpush1.msra.mxu0 0.0
    %4214 = vmatprep.subr.mxu0 0.0
    %4215 = vmatpush1.msra.mxu0 0.0
    %4216 = vmatprep.subr.mxu0 0.0
    %4217 = vmatpush1.msra.mxu0 0.0
    %4218 = vmatprep.subr.mxu0 0.0
    %4219 = vmatpush1.msra.mxu0 0.0
    %4220 = vmatprep.subr.mxu0 0.0
    %4221 = vmatpush1.msra.mxu0 0.0
    %4222 = vmatprep.subr.mxu0 0.0
    %4223 = vmatpush1.msra.mxu0 0.0
    %4224 = vmatprep.subr.mxu0 0.0
    %4225 = vmatpush1.msra.mxu0 0.0
    %4226 = vmatprep.subr.mxu0 0.0
    %4227 = vmatpush1.msra.mxu0 0.0
    %4228 = vmatprep.subr.mxu0 0.0
    %4229 = vmatpush1.msra.mxu0 0.0
    %4230 = vmatprep.subr.mxu0 0.0
    %4231 = vmatpush1.msra.mxu0 0.0
    %4232 = vmatprep.subr.mxu0 0.0
    %4233 = vmatpush1.msra.mxu0 0.0
    %4234 = vmatprep.subr.mxu0 0.0
    %4235 = vmatpush1.msra.mxu0 0.0
    %4236 = vmatprep.subr.mxu0 0.0
    %4237 = vmatpush1.msra.mxu0 0.0
    %4238 = vmatprep.subr.mxu0 0.0
    %4239 = vmatpush1.msra.mxu0 0.0
    %4240 = vmatprep.subr.mxu0 0.0
    %4241 = vmatpush1.msra.mxu0 0.0
    %4242 = vmatprep.subr.mxu0 0.0
    %4243 = vmatpush1.msra.mxu0 0.0
    %4244 = vmatprep.mubr.f32.mxu0 0.0
    %v4245 = vand.u32 %v2099, 4294901760
    %4246 = vmatmul.mubr.f32.gmra.mrb[0].mxu0 %v4245
    %v4247 = vpop.f32.mrb[0].mxu0
    %v4248 = vadd.f32 %v4119, %v4247
    %v4249 = vpop.f32.mrb[0].mxu0
    %v4250 = vadd.f32 %v4121, %v4249
    %4251 = vmatprep.mubr.f32.mxu0 0.0
    %v4252 = vand.u32 %v2102, 4294901760
    %4253 = vmatmul.mubr.f32.gmra.mrb[0].mxu0 %v4252
    %v4254 = vpop.f32.mrb[0].mxu0
    %v4255 = vadd.f32 %v4128, %v4254
    %v4256 = vpop.f32.mrb[0].mxu0
    %v4257 = vadd.f32 %v4130, %v4256
    %4258 = vdwg.mxu0
    %v4259 = vand.u32 %v3631, 4294901760
    %4260 = vmatprep.subr.mxu0 %v4259
    %v4261 = vand.u32 %v3630, 4294901760
    %4262 = vmatpush1.msra.mxu0 %v4261
    %v4263 = vand.u32 %v3633, 4294901760
    %4264 = vmatprep.subr.mxu0 %v4263
    %v4265 = vand.u32 %v3632, 4294901760
    %4266 = vmatpush1.msra.mxu0 %v4265
    %v4267 = vand.u32 %v3635, 4294901760
    %4268 = vmatprep.subr.mxu0 %v4267
    %v4269 = vand.u32 %v3634, 4294901760
    %4270 = vmatpush1.msra.mxu0 %v4269
    %v4271 = vand.u32 %v3637, 4294901760
    %4272 = vmatprep.subr.mxu0 %v4271
    %v4273 = vand.u32 %v3636, 4294901760
    %4274 = vmatpush1.msra.mxu0 %v4273
    %v4275 = vand.u32 %v3639, 4294901760
    %4276 = vmatprep.subr.mxu0 %v4275
    %v4277 = vand.u32 %v3638, 4294901760
    %4278 = vmatpush1.msra.mxu0 %v4277
    %v4279 = vand.u32 %v3641, 4294901760
    %4280 = vmatprep.subr.mxu0 %v4279
    %v4281 = vand.u32 %v3640, 4294901760
    %4282 = vmatpush1.msra.mxu0 %v4281
    %v4283 = vand.u32 %v3643, 4294901760
    %4284 = vmatprep.subr.mxu0 %v4283
    %v4285 = vand.u32 %v3642, 4294901760
    %4286 = vmatpush1.msra.mxu0 %v4285
    %v4287 = vand.u32 %v3645, 4294901760
    %4288 = vmatprep.subr.mxu0 %v4287
    %v4289 = vand.u32 %v3644, 4294901760
    %4290 = vmatpush1.msra.mxu0 %v4289
    %4291 = vmatprep.subr.mxu0 0.0
    %4292 = vmatpush1.msra.mxu0 0.0
    %4293 = vmatprep.subr.mxu0 0.0
    %4294 = vmatpush1.msra.mxu0 0.0
    %4295 = vmatprep.subr.mxu0 0.0
    %4296 = vmatpush1.msra.mxu0 0.0
    %4297 = vmatprep.subr.mxu0 0.0
    %4298 = vmatpush1.msra.mxu0 0.0
    %4299 = vmatprep.subr.mxu0 0.0
    %4300 = vmatpush1.msra.mxu0 0.0
    %4301 = vmatprep.subr.mxu0 0.0
    %4302 = vmatpush1.msra.mxu0 0.0
    %4303 = vmatprep.subr.mxu0 0.0
    %4304 = vmatpush1.msra.mxu0 0.0
    %4305 = vmatprep.subr.mxu0 0.0
    %4306 = vmatpush1.msra.mxu0 0.0
    %4307 = vmatprep.subr.mxu0 0.0
    %4308 = vmatpush1.msra.mxu0 0.0
    %4309 = vmatprep.subr.mxu0 0.0
    %4310 = vmatpush1.msra.mxu0 0.0
    %4311 = vmatprep.subr.mxu0 0.0
    %4312 = vmatpush1.msra.mxu0 0.0
    %4313 = vmatprep.subr.mxu0 0.0
    %4314 = vmatpush1.msra.mxu0 0.0
    %4315 = vmatprep.subr.mxu0 0.0
    %4316 = vmatpush1.msra.mxu0 0.0
    %4317 = vmatprep.subr.mxu0 0.0
    %4318 = vmatpush1.msra.mxu0 0.0
    %4319 = vmatprep.subr.mxu0 0.0
    %4320 = vmatpush1.msra.mxu0 0.0
    %4321 = vmatprep.subr.mxu0 0.0
    %4322 = vmatpush1.msra.mxu0 0.0
    %4323 = vmatprep.subr.mxu0 0.0
    %4324 = vmatpush1.msra.mxu0 0.0
    %4325 = vmatprep.subr.mxu0 0.0
    %4326 = vmatpush1.msra.mxu0 0.0
    %4327 = vmatprep.subr.mxu0 0.0
    %4328 = vmatpush1.msra.mxu0 0.0
    %4329 = vmatprep.subr.mxu0 0.0
    %4330 = vmatpush1.msra.mxu0 0.0
    %4331 = vmatprep.subr.mxu0 0.0
    %4332 = vmatpush1.msra.mxu0 0.0
    %4333 = vmatprep.subr.mxu0 0.0
    %4334 = vmatpush1.msra.mxu0 0.0
    %4335 = vmatprep.subr.mxu0 0.0
    %4336 = vmatpush1.msra.mxu0 0.0
    %4337 = vmatprep.subr.mxu0 0.0
    %4338 = vmatpush1.msra.mxu0 0.0
    %4339 = vmatprep.mubr.f32.mxu0 0.0
    %v4340 = vand.u32 %v2099, 4294901760
    %4341 = vmatmul.mubr.f32.gmra.mrb[0].mxu0 %v4340
    %v4342 = vpop.f32.mrb[0].mxu0
    %v4343 = vadd.f32 %v4248, %v4342
    %v4344 = vpop.f32.mrb[0].mxu0
    %v4345 = vadd.f32 %v4250, %v4344
    %4346 = vmatprep.mubr.f32.mxu0 0.0
    %v4347 = vand.u32 %v2102, 4294901760
    %4348 = vmatmul.mubr.f32.gmra.mrb[0].mxu0 %v4347
    %v4349 = vpop.f32.mrb[0].mxu0
    %v4350 = vadd.f32 %v4255, %v4349
    %v4351 = vpop.f32.mrb[0].mxu0
    %v4352 = vadd.f32 %v4257, %v4351
    %4353 = vdwg.mxu0
    %v4354 = vmax.f32 %v4343, %v4345
    %4355 = vmax.xlane.f32.xlu0 %v4354
    %v4356 = vpop.xlane.xlu0 %4355
    %v4357 = vmax.f32 %v4350, %v4352
    %4358 = vmax.xlane.f32.xlu0 %v4357
    %v4359 = vpop.xlane.xlu0 %4358
    %vm4360 = vcmp.eq.f32.partialorder %v4343, %v4356
    %vm4361 = vcmp.eq.f32.partialorder %v4345, %v4356
    %vm4362 = vcmp.eq.f32.partialorder %v4350, %v4359
    %vm4363 = vcmp.eq.f32.partialorder %v4352, %v4359
    %v4364 = vadd.s32 %v97, 512
    %v4365 = vadd.s32 %v2069, 512
    %v4366 = vsel %vm4360, %v4364, 1024
    %v4367 = vsel %vm4361, %v4365, 1024
    %v4368 = vsel %vm4362, %v4364, 1024
    %v4369 = vsel %vm4363, %v4365, 1024
    %vm4370 = vcmp.lt.s32.totalorder %v4366, %v4367
    %v4371 = vsel %vm4370, %v4366, %v4367
    %v4372 = vand.u32 %v4371, 65535
    %v4373 = vshra.s32 %v4371, 16
    %v4374 = vcvt.s32.f32 %v4372
    %v4375 = vcvt.s32.f32 %v4373
    %4376 = vmin.xlane.f32.xlu0 %v4375
    %v4377 = vpop.xlane.xlu0 %4376
    %vm4378 = vcmp.eq.f32.partialorder %v4375, %v4377
    %v4379 = vsel %vm4378, %v4374, inf
    %4380 = vmin.xlane.f32.xlu0 %v4379
    %v4381 = vpop.xlane.xlu0 %4380
    %v4382 = vcvt.f32.s32 %v4381
    %v4383 = vcvt.f32.s32 %v4377
    %v4384 = vshll.u32 %v4383, 16
    %v4385 = vadd.s32 %v4384, %v4382
    %vm4386 = vcmp.lt.s32.totalorder %v4368, %v4369
    %v4387 = vsel %vm4386, %v4368, %v4369
    %v4388 = vand.u32 %v4387, 65535
    %v4389 = vshra.s32 %v4387, 16
    %v4390 = vcvt.s32.f32 %v4388
    %v4391 = vcvt.s32.f32 %v4389
    %4392 = vmin.xlane.f32.xlu0 %v4391
    %v4393 = vpop.xlane.xlu0 %4392
    %vm4394 = vcmp.eq.f32.partialorder %v4391, %v4393
    %v4395 = vsel %vm4394, %v4390, inf
    %4396 = vmin.xlane.f32.xlu0 %v4395
    %v4397 = vpop.xlane.xlu0 %4396
    %v4398 = vcvt.f32.s32 %v4397
    %v4399 = vcvt.f32.s32 %v4393
    %v4400 = vshll.u32 %v4399, 16
    %v4401 = vadd.s32 %v4400, %v4398
    %vm4402 = vcmp.gt.f32.partialorder %v4356, %v3628
    %vm4403 = vcmp.gt.f32.partialorder %v4359, %v3629
    %v4404 = vsel %vm4402, %v4385, %v3626
    %v4405 = vsel %vm4403, %v4401, %v3627
    %v4406 = vsel %vm4402, %v4356, %v3628
    %v4407 = vsel %vm4403, %v4359, %v3629
    %v4408 = vld [vmem:[#allocation8 + $0x30] sm:$0xff]
    %v4409 = vld [vmem:[#allocation8 + $0x38] sm:$0xff]
    %v4410 = vld [vmem:[#allocation8 + $0x70] sm:$0xff]
    %v4411 = vld [vmem:[#allocation8 + $0x78] sm:$0xff]
    %v4412 = vld [vmem:[#allocation8 + $0xb0] sm:$0xff]
    %v4413 = vld [vmem:[#allocation8 + $0xb8] sm:$0xff]
    %v4414 = vld [vmem:[#allocation8 + $0xf0] sm:$0xff]
    %v4415 = vld [vmem:[#allocation8 + $0xf8] sm:$0xff]
    %v4416 = vld [vmem:[#allocation8 + $0x130] sm:$0xff]
    %v4417 = vld [vmem:[#allocation8 + $0x138] sm:$0xff]
    %v4418 = vld [vmem:[#allocation8 + $0x170] sm:$0xff]
    %v4419 = vld [vmem:[#allocation8 + $0x178] sm:$0xff]
    %v4420 = vld [vmem:[#allocation8 + $0x1b0] sm:$0xff]
    %v4421 = vld [vmem:[#allocation8 + $0x1b8] sm:$0xff]
    %v4422 = vld [vmem:[#allocation8 + $0x1f0] sm:$0xff]
    %v4423 = vld [vmem:[#allocation8 + $0x1f8] sm:$0xff]
    %v4424 = vld [vmem:[%s7 + $0x6] sm:$0x3]
    %v4426 = vlaneseq
    %v4427 = vshrl.u32 %v4426, 7
    %v4428 = vsub.s32 0, %v4427
    %v4429 = vrot.slane %v4424, %v4428
    %v4430 = vlaneseq
    %v4431 = vshrl.u32 %v4430, 7
    %v4432 = vsub.s32 1, %v4431
    %v4433 = vrot.slane %v4424, %v4432
    %v4436 = vand.u32 %v4409, 4294901760
    %4437 = vmatprep.subr.mxu0 %v4436
    %v4438 = vand.u32 %v4408, 4294901760
    %4439 = vmatpush1.msra.mxu0 %v4438
    %v4440 = vand.u32 %v4411, 4294901760
    %4441 = vmatprep.subr.mxu0 %v4440
    %v4442 = vand.u32 %v4410, 4294901760
    %4443 = vmatpush1.msra.mxu0 %v4442
    %v4444 = vand.u32 %v4413, 4294901760
    %4445 = vmatprep.subr.mxu0 %v4444
    %v4446 = vand.u32 %v4412, 4294901760
    %4447 = vmatpush1.msra.mxu0 %v4446
    %v4448 = vand.u32 %v4415, 4294901760
    %4449 = vmatprep.subr.mxu0 %v4448
    %v4450 = vand.u32 %v4414, 4294901760
    %4451 = vmatpush1.msra.mxu0 %v4450
    %v4452 = vand.u32 %v4417, 4294901760
    %4453 = vmatprep.subr.mxu0 %v4452
    %v4454 = vand.u32 %v4416, 4294901760
    %4455 = vmatpush1.msra.mxu0 %v4454
    %v4456 = vand.u32 %v4419, 4294901760
    %4457 = vmatprep.subr.mxu0 %v4456
    %v4458 = vand.u32 %v4418, 4294901760
    %4459 = vmatpush1.msra.mxu0 %v4458
    %v4460 = vand.u32 %v4421, 4294901760
    %4461 = vmatprep.subr.mxu0 %v4460
    %v4462 = vand.u32 %v4420, 4294901760
    %4463 = vmatpush1.msra.mxu0 %v4462
    %v4464 = vand.u32 %v4423, 4294901760
    %4465 = vmatprep.subr.mxu0 %v4464
    %v4466 = vand.u32 %v4422, 4294901760
    %4467 = vmatpush1.msra.mxu0 %v4466
    %4468 = vmatprep.subr.mxu0 0.0
    %4469 = vmatpush1.msra.mxu0 0.0
    %4470 = vmatprep.subr.mxu0 0.0
    %4471 = vmatpush1.msra.mxu0 0.0
    %4472 = vmatprep.subr.mxu0 0.0
    %4473 = vmatpush1.msra.mxu0 0.0
    %4474 = vmatprep.subr.mxu0 0.0
    %4475 = vmatpush1.msra.mxu0 0.0
    %4476 = vmatprep.subr.mxu0 0.0
    %4477 = vmatpush1.msra.mxu0 0.0
    %4478 = vmatprep.subr.mxu0 0.0
    %4479 = vmatpush1.msra.mxu0 0.0
    %4480 = vmatprep.subr.mxu0 0.0
    %4481 = vmatpush1.msra.mxu0 0.0
    %4482 = vmatprep.subr.mxu0 0.0
    %4483 = vmatpush1.msra.mxu0 0.0
    %4484 = vmatprep.subr.mxu0 0.0
    %4485 = vmatpush1.msra.mxu0 0.0
    %4486 = vmatprep.subr.mxu0 0.0
    %4487 = vmatpush1.msra.mxu0 0.0
    %4488 = vmatprep.subr.mxu0 0.0
    %4489 = vmatpush1.msra.mxu0 0.0
    %4490 = vmatprep.subr.mxu0 0.0
    %4491 = vmatpush1.msra.mxu0 0.0
    %4492 = vmatprep.subr.mxu0 0.0
    %4493 = vmatpush1.msra.mxu0 0.0
    %4494 = vmatprep.subr.mxu0 0.0
    %4495 = vmatpush1.msra.mxu0 0.0
    %4496 = vmatprep.subr.mxu0 0.0
    %4497 = vmatpush1.msra.mxu0 0.0
    %4498 = vmatprep.subr.mxu0 0.0
    %4499 = vmatpush1.msra.mxu0 0.0
    %4500 = vmatprep.subr.mxu0 0.0
    %4501 = vmatpush1.msra.mxu0 0.0
    %4502 = vmatprep.subr.mxu0 0.0
    %4503 = vmatpush1.msra.mxu0 0.0
    %4504 = vmatprep.subr.mxu0 0.0
    %4505 = vmatpush1.msra.mxu0 0.0
    %4506 = vmatprep.subr.mxu0 0.0
    %4507 = vmatpush1.msra.mxu0 0.0
    %4508 = vmatprep.subr.mxu0 0.0
    %4509 = vmatpush1.msra.mxu0 0.0
    %4510 = vmatprep.subr.mxu0 0.0
    %4511 = vmatpush1.msra.mxu0 0.0
    %4512 = vmatprep.subr.mxu0 0.0
    %4513 = vmatpush1.msra.mxu0 0.0
    %4514 = vmatprep.subr.mxu0 0.0
    %4515 = vmatpush1.msra.mxu0 0.0
    %4516 = vmatprep.mubr.f32.mxu0 0.0
    %v4517 = vand.u32 %v2099, 4294901760
    %v4518 = vsub.f32 %v2099, %v4517
    %v4519 = vand.u32 %v4518, 4294901760
    %v4520 = vsub.f32 %v4518, %v4519
    %v4521 = vand.u32 %v4520, 4294901760
    %4522 = vmatmul.mubr.f32.gmra.mrb[0].mxu0 %v4521
    %v4523 = vpop.f32.mrb[0].mxu0
    %v4524 = vadd.f32 %v4429, %v4523
    %v4525 = vpop.f32.mrb[0].mxu0
    %v4526 = vadd.f32 %v4433, %v4525
    %4527 = vmatprep.mubr.f32.mxu0 0.0
    %v4528 = vand.u32 %v2102, 4294901760
    %v4529 = vsub.f32 %v2102, %v4528
    %v4530 = vand.u32 %v4529, 4294901760
    %v4531 = vsub.f32 %v4529, %v4530
    %v4532 = vand.u32 %v4531, 4294901760
    %4533 = vmatmul.mubr.f32.gmra.mrb[0].mxu0 %v4532
    %v4534 = vpop.f32.mrb[0].mxu0
    %v4535 = vadd.f32 %v4429, %v4534
    %v4536 = vpop.f32.mrb[0].mxu0
    %v4537 = vadd.f32 %v4433, %v4536
    %4538 = vdwg.mxu0
    %v4539 = vand.u32 %v4409, 4294901760
    %v4540 = vsub.f32 %v4409, %v4539
    %v4541 = vand.u32 %v4540, 4294901760
    %v4542 = vsub.f32 %v4540, %v4541
    %v4543 = vand.u32 %v4542, 4294901760
    %4544 = vmatprep.subr.mxu0 %v4543
    %v4545 = vand.u32 %v4408, 4294901760
    %v4546 = vsub.f32 %v4408, %v4545
    %v4547 = vand.u32 %v4546, 4294901760
    %v4548 = vsub.f32 %v4546, %v4547
    %v4549 = vand.u32 %v4548, 4294901760
    %4550 = vmatpush1.msra.mxu0 %v4549
    %v4551 = vand.u32 %v4411, 4294901760
    %v4552 = vsub.f32 %v4411, %v4551
    %v4553 = vand.u32 %v4552, 4294901760
    %v4554 = vsub.f32 %v4552, %v4553
    %v4555 = vand.u32 %v4554, 4294901760
    %4556 = vmatprep.subr.mxu0 %v4555
    %v4557 = vand.u32 %v4410, 4294901760
    %v4558 = vsub.f32 %v4410, %v4557
    %v4559 = vand.u32 %v4558, 4294901760
    %v4560 = vsub.f32 %v4558, %v4559
    %v4561 = vand.u32 %v4560, 4294901760
    %4562 = vmatpush1.msra.mxu0 %v4561
    %v4563 = vand.u32 %v4413, 4294901760
    %v4564 = vsub.f32 %v4413, %v4563
    %v4565 = vand.u32 %v4564, 4294901760
    %v4566 = vsub.f32 %v4564, %v4565
    %v4567 = vand.u32 %v4566, 4294901760
    %4568 = vmatprep.subr.mxu0 %v4567
    %v4569 = vand.u32 %v4412, 4294901760
    %v4570 = vsub.f32 %v4412, %v4569
    %v4571 = vand.u32 %v4570, 4294901760
    %v4572 = vsub.f32 %v4570, %v4571
    %v4573 = vand.u32 %v4572, 4294901760
    %4574 = vmatpush1.msra.mxu0 %v4573
    %v4575 = vand.u32 %v4415, 4294901760
    %v4576 = vsub.f32 %v4415, %v4575
    %v4577 = vand.u32 %v4576, 4294901760
    %v4578 = vsub.f32 %v4576, %v4577
    %v4579 = vand.u32 %v4578, 4294901760
    %4580 = vmatprep.subr.mxu0 %v4579
    %v4581 = vand.u32 %v4414, 4294901760
    %v4582 = vsub.f32 %v4414, %v4581
    %v4583 = vand.u32 %v4582, 4294901760
    %v4584 = vsub.f32 %v4582, %v4583
    %v4585 = vand.u32 %v4584, 4294901760
    %4586 = vmatpush1.msra.mxu0 %v4585
    %v4587 = vand.u32 %v4417, 4294901760
    %v4588 = vsub.f32 %v4417, %v4587
    %v4589 = vand.u32 %v4588, 4294901760
    %v4590 = vsub.f32 %v4588, %v4589
    %v4591 = vand.u32 %v4590, 4294901760
    %4592 = vmatprep.subr.mxu0 %v4591
    %v4593 = vand.u32 %v4416, 4294901760
    %v4594 = vsub.f32 %v4416, %v4593
    %v4595 = vand.u32 %v4594, 4294901760
    %v4596 = vsub.f32 %v4594, %v4595
    %v4597 = vand.u32 %v4596, 4294901760
    %4598 = vmatpush1.msra.mxu0 %v4597
    %v4599 = vand.u32 %v4419, 4294901760
    %v4600 = vsub.f32 %v4419, %v4599
    %v4601 = vand.u32 %v4600, 4294901760
    %v4602 = vsub.f32 %v4600, %v4601
    %v4603 = vand.u32 %v4602, 4294901760
    %4604 = vmatprep.subr.mxu0 %v4603
    %v4605 = vand.u32 %v4418, 4294901760
    %v4606 = vsub.f32 %v4418, %v4605
    %v4607 = vand.u32 %v4606, 4294901760
    %v4608 = vsub.f32 %v4606, %v4607
    %v4609 = vand.u32 %v4608, 4294901760
    %4610 = vmatpush1.msra.mxu0 %v4609
    %v4611 = vand.u32 %v4421, 4294901760
    %v4612 = vsub.f32 %v4421, %v4611
    %v4613 = vand.u32 %v4612, 4294901760
    %v4614 = vsub.f32 %v4612, %v4613
    %v4615 = vand.u32 %v4614, 4294901760
    %4616 = vmatprep.subr.mxu0 %v4615
    %v4617 = vand.u32 %v4420, 4294901760
    %v4618 = vsub.f32 %v4420, %v4617
    %v4619 = vand.u32 %v4618, 4294901760
    %v4620 = vsub.f32 %v4618, %v4619
    %v4621 = vand.u32 %v4620, 4294901760
    %4622 = vmatpush1.msra.mxu0 %v4621
    %v4623 = vand.u32 %v4423, 4294901760
    %v4624 = vsub.f32 %v4423, %v4623
    %v4625 = vand.u32 %v4624, 4294901760
    %v4626 = vsub.f32 %v4624, %v4625
    %v4627 = vand.u32 %v4626, 4294901760
    %4628 = vmatprep.subr.mxu0 %v4627
    %v4629 = vand.u32 %v4422, 4294901760
    %v4630 = vsub.f32 %v4422, %v4629
    %v4631 = vand.u32 %v4630, 4294901760
    %v4632 = vsub.f32 %v4630, %v4631
    %v4633 = vand.u32 %v4632, 4294901760
    %4634 = vmatpush1.msra.mxu0 %v4633
    %4635 = vmatprep.subr.mxu0 0.0
    %4636 = vmatpush1.msra.mxu0 0.0
    %4637 = vmatprep.subr.mxu0 0.0
    %4638 = vmatpush1.msra.mxu0 0.0
    %4639 = vmatprep.subr.mxu0 0.0
    %4640 = vmatpush1.msra.mxu0 0.0
    %4641 = vmatprep.subr.mxu0 0.0
    %4642 = vmatpush1.msra.mxu0 0.0
    %4643 = vmatprep.subr.mxu0 0.0
    %4644 = vmatpush1.msra.mxu0 0.0
    %4645 = vmatprep.subr.mxu0 0.0
    %4646 = vmatpush1.msra.mxu0 0.0
    %4647 = vmatprep.subr.mxu0 0.0
    %4648 = vmatpush1.msra.mxu0 0.0
    %4649 = vmatprep.subr.mxu0 0.0
    %4650 = vmatpush1.msra.mxu0 0.0
    %4651 = vmatprep.subr.mxu0 0.0
    %4652 = vmatpush1.msra.mxu0 0.0
    %4653 = vmatprep.subr.mxu0 0.0
    %4654 = vmatpush1.msra.mxu0 0.0
    %4655 = vmatprep.subr.mxu0 0.0
    %4656 = vmatpush1.msra.mxu0 0.0
    %4657 = vmatprep.subr.mxu0 0.0
    %4658 = vmatpush1.msra.mxu0 0.0
    %4659 = vmatprep.subr.mxu0 0.0
    %4660 = vmatpush1.msra.mxu0 0.0
    %4661 = vmatprep.subr.mxu0 0.0
    %4662 = vmatpush1.msra.mxu0 0.0
    %4663 = vmatprep.subr.mxu0 0.0
    %4664 = vmatpush1.msra.mxu0 0.0
    %4665 = vmatprep.subr.mxu0 0.0
    %4666 = vmatpush1.msra.mxu0 0.0
    %4667 = vmatprep.subr.mxu0 0.0
    %4668 = vmatpush1.msra.mxu0 0.0
    %4669 = vmatprep.subr.mxu0 0.0
    %4670 = vmatpush1.msra.mxu0 0.0
    %4671 = vmatprep.subr.mxu0 0.0
    %4672 = vmatpush1.msra.mxu0 0.0
    %4673 = vmatprep.subr.mxu0 0.0
    %4674 = vmatpush1.msra.mxu0 0.0
    %4675 = vmatprep.subr.mxu0 0.0
    %4676 = vmatpush1.msra.mxu0 0.0
    %4677 = vmatprep.subr.mxu0 0.0
    %4678 = vmatpush1.msra.mxu0 0.0
    %4679 = vmatprep.subr.mxu0 0.0
    %4680 = vmatpush1.msra.mxu0 0.0
    %4681 = vmatprep.subr.mxu0 0.0
    %4682 = vmatpush1.msra.mxu0 0.0
    %4683 = vmatprep.mubr.f32.mxu0 0.0
    %v4684 = vand.u32 %v2099, 4294901760
    %4685 = vmatmul.mubr.f32.gmra.mrb[0].mxu0 %v4684
    %v4686 = vpop.f32.mrb[0].mxu0
    %v4687 = vadd.f32 %v4524, %v4686
    %v4688 = vpop.f32.mrb[0].mxu0
    %v4689 = vadd.f32 %v4526, %v4688
    %4690 = vmatprep.mubr.f32.mxu0 0.0
    %v4691 = vand.u32 %v2102, 4294901760
    %4692 = vmatmul.mubr.f32.gmra.mrb[0].mxu0 %v4691
    %v4693 = vpop.f32.mrb[0].mxu0
    %v4694 = vadd.f32 %v4535, %v4693
    %v4695 = vpop.f32.mrb[0].mxu0
    %v4696 = vadd.f32 %v4537, %v4695
    %4697 = vdwg.mxu0
    %v4698 = vand.u32 %v4409, 4294901760
    %v4699 = vsub.f32 %v4409, %v4698
    %4700 = vmatprep.subr.mxu0 %v4699
    %v4701 = vand.u32 %v4408, 4294901760
    %v4702 = vsub.f32 %v4408, %v4701
    %4703 = vmatpush1.msra.mxu0 %v4702
    %v4704 = vand.u32 %v4411, 4294901760
    %v4705 = vsub.f32 %v4411, %v4704
    %4706 = vmatprep.subr.mxu0 %v4705
    %v4707 = vand.u32 %v4410, 4294901760
    %v4708 = vsub.f32 %v4410, %v4707
    %4709 = vmatpush1.msra.mxu0 %v4708
    %v4710 = vand.u32 %v4413, 4294901760
    %v4711 = vsub.f32 %v4413, %v4710
    %4712 = vmatprep.subr.mxu0 %v4711
    %v4713 = vand.u32 %v4412, 4294901760
    %v4714 = vsub.f32 %v4412, %v4713
    %4715 = vmatpush1.msra.mxu0 %v4714
    %v4716 = vand.u32 %v4415, 4294901760
    %v4717 = vsub.f32 %v4415, %v4716
    %4718 = vmatprep.subr.mxu0 %v4717
    %v4719 = vand.u32 %v4414, 4294901760
    %v4720 = vsub.f32 %v4414, %v4719
    %4721 = vmatpush1.msra.mxu0 %v4720
    %v4722 = vand.u32 %v4417, 4294901760
    %v4723 = vsub.f32 %v4417, %v4722
    %4724 = vmatprep.subr.mxu0 %v4723
    %v4725 = vand.u32 %v4416, 4294901760
    %v4726 = vsub.f32 %v4416, %v4725
    %4727 = vmatpush1.msra.mxu0 %v4726
    %v4728 = vand.u32 %v4419, 4294901760
    %v4729 = vsub.f32 %v4419, %v4728
    %4730 = vmatprep.subr.mxu0 %v4729
    %v4731 = vand.u32 %v4418, 4294901760
    %v4732 = vsub.f32 %v4418, %v4731
    %4733 = vmatpush1.msra.mxu0 %v4732
    %v4734 = vand.u32 %v4421, 4294901760
    %v4735 = vsub.f32 %v4421, %v4734
    %4736 = vmatprep.subr.mxu0 %v4735
    %v4737 = vand.u32 %v4420, 4294901760
    %v4738 = vsub.f32 %v4420, %v4737
    %4739 = vmatpush1.msra.mxu0 %v4738
    %v4740 = vand.u32 %v4423, 4294901760
    %v4741 = vsub.f32 %v4423, %v4740
    %4742 = vmatprep.subr.mxu0 %v4741
    %v4743 = vand.u32 %v4422, 4294901760
    %v4744 = vsub.f32 %v4422, %v4743
    %4745 = vmatpush1.msra.mxu0 %v4744
    %4746 = vmatprep.subr.mxu0 0.0
    %4747 = vmatpush1.msra.mxu0 0.0
    %4748 = vmatprep.subr.mxu0 0.0
    %4749 = vmatpush1.msra.mxu0 0.0
    %4750 = vmatprep.subr.mxu0 0.0
    %4751 = vmatpush1.msra.mxu0 0.0
    %4752 = vmatprep.subr.mxu0 0.0
    %4753 = vmatpush1.msra.mxu0 0.0
    %4754 = vmatprep.subr.mxu0 0.0
    %4755 = vmatpush1.msra.mxu0 0.0
    %4756 = vmatprep.subr.mxu0 0.0
    %4757 = vmatpush1.msra.mxu0 0.0
    %4758 = vmatprep.subr.mxu0 0.0
    %4759 = vmatpush1.msra.mxu0 0.0
    %4760 = vmatprep.subr.mxu0 0.0
    %4761 = vmatpush1.msra.mxu0 0.0
    %4762 = vmatprep.subr.mxu0 0.0
    %4763 = vmatpush1.msra.mxu0 0.0
    %4764 = vmatprep.subr.mxu0 0.0
    %4765 = vmatpush1.msra.mxu0 0.0
    %4766 = vmatprep.subr.mxu0 0.0
    %4767 = vmatpush1.msra.mxu0 0.0
    %4768 = vmatprep.subr.mxu0 0.0
    %4769 = vmatpush1.msra.mxu0 0.0
    %4770 = vmatprep.subr.mxu0 0.0
    %4771 = vmatpush1.msra.mxu0 0.0
    %4772 = vmatprep.subr.mxu0 0.0
    %4773 = vmatpush1.msra.mxu0 0.0
    %4774 = vmatprep.subr.mxu0 0.0
    %4775 = vmatpush1.msra.mxu0 0.0
    %4776 = vmatprep.subr.mxu0 0.0
    %4777 = vmatpush1.msra.mxu0 0.0
    %4778 = vmatprep.subr.mxu0 0.0
    %4779 = vmatpush1.msra.mxu0 0.0
    %4780 = vmatprep.subr.mxu0 0.0
    %4781 = vmatpush1.msra.mxu0 0.0
    %4782 = vmatprep.subr.mxu0 0.0
    %4783 = vmatpush1.msra.mxu0 0.0
    %4784 = vmatprep.subr.mxu0 0.0
    %4785 = vmatpush1.msra.mxu0 0.0
    %4786 = vmatprep.subr.mxu0 0.0
    %4787 = vmatpush1.msra.mxu0 0.0
    %4788 = vmatprep.subr.mxu0 0.0
    %4789 = vmatpush1.msra.mxu0 0.0
    %4790 = vmatprep.subr.mxu0 0.0
    %4791 = vmatpush1.msra.mxu0 0.0
    %4792 = vmatprep.subr.mxu0 0.0
    %4793 = vmatpush1.msra.mxu0 0.0
    %4794 = vmatprep.mubr.f32.mxu0 0.0
    %v4795 = vand.u32 %v2099, 4294901760
    %v4796 = vsub.f32 %v2099, %v4795
    %4797 = vmatmul.mubr.f32.gmra.mrb[0].mxu0 %v4796
    %v4798 = vpop.f32.mrb[0].mxu0
    %v4799 = vadd.f32 %v4687, %v4798
    %v4800 = vpop.f32.mrb[0].mxu0
    %v4801 = vadd.f32 %v4689, %v4800
    %4802 = vmatprep.mubr.f32.mxu0 0.0
    %v4803 = vand.u32 %v2102, 4294901760
    %v4804 = vsub.f32 %v2102, %v4803
    %4805 = vmatmul.mubr.f32.gmra.mrb[0].mxu0 %v4804
    %v4806 = vpop.f32.mrb[0].mxu0
    %v4807 = vadd.f32 %v4694, %v4806
    %v4808 = vpop.f32.mrb[0].mxu0
    %v4809 = vadd.f32 %v4696, %v4808
    %4810 = vdwg.mxu0
    %v4811 = vand.u32 %v4409, 4294901760
    %4812 = vmatprep.subr.mxu0 %v4811
    %v4813 = vand.u32 %v4408, 4294901760
    %4814 = vmatpush1.msra.mxu0 %v4813
    %v4815 = vand.u32 %v4411, 4294901760
    %4816 = vmatprep.subr.mxu0 %v4815
    %v4817 = vand.u32 %v4410, 4294901760
    %4818 = vmatpush1.msra.mxu0 %v4817
    %v4819 = vand.u32 %v4413, 4294901760
    %4820 = vmatprep.subr.mxu0 %v4819
    %v4821 = vand.u32 %v4412, 4294901760
    %4822 = vmatpush1.msra.mxu0 %v4821
    %v4823 = vand.u32 %v4415, 4294901760
    %4824 = vmatprep.subr.mxu0 %v4823
    %v4825 = vand.u32 %v4414, 4294901760
    %4826 = vmatpush1.msra.mxu0 %v4825
    %v4827 = vand.u32 %v4417, 4294901760
    %4828 = vmatprep.subr.mxu0 %v4827
    %v4829 = vand.u32 %v4416, 4294901760
    %4830 = vmatpush1.msra.mxu0 %v4829
    %v4831 = vand.u32 %v4419, 4294901760
    %4832 = vmatprep.subr.mxu0 %v4831
    %v4833 = vand.u32 %v4418, 4294901760
    %4834 = vmatpush1.msra.mxu0 %v4833
    %v4835 = vand.u32 %v4421, 4294901760
    %4836 = vmatprep.subr.mxu0 %v4835
    %v4837 = vand.u32 %v4420, 4294901760
    %4838 = vmatpush1.msra.mxu0 %v4837
    %v4839 = vand.u32 %v4423, 4294901760
    %4840 = vmatprep.subr.mxu0 %v4839
    %v4841 = vand.u32 %v4422, 4294901760
    %4842 = vmatpush1.msra.mxu0 %v4841
    %4843 = vmatprep.subr.mxu0 0.0
    %4844 = vmatpush1.msra.mxu0 0.0
    %4845 = vmatprep.subr.mxu0 0.0
    %4846 = vmatpush1.msra.mxu0 0.0
    %4847 = vmatprep.subr.mxu0 0.0
    %4848 = vmatpush1.msra.mxu0 0.0
    %4849 = vmatprep.subr.mxu0 0.0
    %4850 = vmatpush1.msra.mxu0 0.0
    %4851 = vmatprep.subr.mxu0 0.0
    %4852 = vmatpush1.msra.mxu0 0.0
    %4853 = vmatprep.subr.mxu0 0.0
    %4854 = vmatpush1.msra.mxu0 0.0
    %4855 = vmatprep.subr.mxu0 0.0
    %4856 = vmatpush1.msra.mxu0 0.0
    %4857 = vmatprep.subr.mxu0 0.0
    %4858 = vmatpush1.msra.mxu0 0.0
    %4859 = vmatprep.subr.mxu0 0.0
    %4860 = vmatpush1.msra.mxu0 0.0
    %4861 = vmatprep.subr.mxu0 0.0
    %4862 = vmatpush1.msra.mxu0 0.0
    %4863 = vmatprep.subr.mxu0 0.0
    %4864 = vmatpush1.msra.mxu0 0.0
    %4865 = vmatprep.subr.mxu0 0.0
    %4866 = vmatpush1.msra.mxu0 0.0
    %4867 = vmatprep.subr.mxu0 0.0
    %4868 = vmatpush1.msra.mxu0 0.0
    %4869 = vmatprep.subr.mxu0 0.0
    %4870 = vmatpush1.msra.mxu0 0.0
    %4871 = vmatprep.subr.mxu0 0.0
    %4872 = vmatpush1.msra.mxu0 0.0
    %4873 = vmatprep.subr.mxu0 0.0
    %4874 = vmatpush1.msra.mxu0 0.0
    %4875 = vmatprep.subr.mxu0 0.0
    %4876 = vmatpush1.msra.mxu0 0.0
    %4877 = vmatprep.subr.mxu0 0.0
    %4878 = vmatpush1.msra.mxu0 0.0
    %4879 = vmatprep.subr.mxu0 0.0
    %4880 = vmatpush1.msra.mxu0 0.0
    %4881 = vmatprep.subr.mxu0 0.0
    %4882 = vmatpush1.msra.mxu0 0.0
    %4883 = vmatprep.subr.mxu0 0.0
    %4884 = vmatpush1.msra.mxu0 0.0
    %4885 = vmatprep.subr.mxu0 0.0
    %4886 = vmatpush1.msra.mxu0 0.0
    %4887 = vmatprep.subr.mxu0 0.0
    %4888 = vmatpush1.msra.mxu0 0.0
    %4889 = vmatprep.subr.mxu0 0.0
    %4890 = vmatpush1.msra.mxu0 0.0
    %4891 = vmatprep.mubr.f32.mxu0 0.0
    %v4892 = vand.u32 %v2099, 4294901760
    %v4893 = vsub.f32 %v2099, %v4892
    %v4894 = vand.u32 %v4893, 4294901760
    %4895 = vmatmul.mubr.f32.gmra.mrb[0].mxu0 %v4894
    %v4896 = vpop.f32.mrb[0].mxu0
    %v4897 = vadd.f32 %v4799, %v4896
    %v4898 = vpop.f32.mrb[0].mxu0
    %v4899 = vadd.f32 %v4801, %v4898
    %4900 = vmatprep.mubr.f32.mxu0 0.0
    %v4901 = vand.u32 %v2102, 4294901760
    %v4902 = vsub.f32 %v2102, %v4901
    %v4903 = vand.u32 %v4902, 4294901760
    %4904 = vmatmul.mubr.f32.gmra.mrb[0].mxu0 %v4903
    %v4905 = vpop.f32.mrb[0].mxu0
    %v4906 = vadd.f32 %v4807, %v4905
    %v4907 = vpop.f32.mrb[0].mxu0
    %v4908 = vadd.f32 %v4809, %v4907
    %4909 = vdwg.mxu0
    %v4910 = vand.u32 %v4409, 4294901760
    %v4911 = vsub.f32 %v4409, %v4910
    %v4912 = vand.u32 %v4911, 4294901760
    %4913 = vmatprep.subr.mxu0 %v4912
    %v4914 = vand.u32 %v4408, 4294901760
    %v4915 = vsub.f32 %v4408, %v4914
    %v4916 = vand.u32 %v4915, 4294901760
    %4917 = vmatpush1.msra.mxu0 %v4916
    %v4918 = vand.u32 %v4411, 4294901760
    %v4919 = vsub.f32 %v4411, %v4918
    %v4920 = vand.u32 %v4919, 4294901760
    %4921 = vmatprep.subr.mxu0 %v4920
    %v4922 = vand.u32 %v4410, 4294901760
    %v4923 = vsub.f32 %v4410, %v4922
    %v4924 = vand.u32 %v4923, 4294901760
    %4925 = vmatpush1.msra.mxu0 %v4924
    %v4926 = vand.u32 %v4413, 4294901760
    %v4927 = vsub.f32 %v4413, %v4926
    %v4928 = vand.u32 %v4927, 4294901760
    %4929 = vmatprep.subr.mxu0 %v4928
    %v4930 = vand.u32 %v4412, 4294901760
    %v4931 = vsub.f32 %v4412, %v4930
    %v4932 = vand.u32 %v4931, 4294901760
    %4933 = vmatpush1.msra.mxu0 %v4932
    %v4934 = vand.u32 %v4415, 4294901760
    %v4935 = vsub.f32 %v4415, %v4934
    %v4936 = vand.u32 %v4935, 4294901760
    %4937 = vmatprep.subr.mxu0 %v4936
    %v4938 = vand.u32 %v4414, 4294901760
    %v4939 = vsub.f32 %v4414, %v4938
    %v4940 = vand.u32 %v4939, 4294901760
    %4941 = vmatpush1.msra.mxu0 %v4940
    %v4942 = vand.u32 %v4417, 4294901760
    %v4943 = vsub.f32 %v4417, %v4942
    %v4944 = vand.u32 %v4943, 4294901760
    %4945 = vmatprep.subr.mxu0 %v4944
    %v4946 = vand.u32 %v4416, 4294901760
    %v4947 = vsub.f32 %v4416, %v4946
    %v4948 = vand.u32 %v4947, 4294901760
    %4949 = vmatpush1.msra.mxu0 %v4948
    %v4950 = vand.u32 %v4419, 4294901760
    %v4951 = vsub.f32 %v4419, %v4950
    %v4952 = vand.u32 %v4951, 4294901760
    %4953 = vmatprep.subr.mxu0 %v4952
    %v4954 = vand.u32 %v4418, 4294901760
    %v4955 = vsub.f32 %v4418, %v4954
    %v4956 = vand.u32 %v4955, 4294901760
    %4957 = vmatpush1.msra.mxu0 %v4956
    %v4958 = vand.u32 %v4421, 4294901760
    %v4959 = vsub.f32 %v4421, %v4958
    %v4960 = vand.u32 %v4959, 4294901760
    %4961 = vmatprep.subr.mxu0 %v4960
    %v4962 = vand.u32 %v4420, 4294901760
    %v4963 = vsub.f32 %v4420, %v4962
    %v4964 = vand.u32 %v4963, 4294901760
    %4965 = vmatpush1.msra.mxu0 %v4964
    %v4966 = vand.u32 %v4423, 4294901760
    %v4967 = vsub.f32 %v4423, %v4966
    %v4968 = vand.u32 %v4967, 4294901760
    %4969 = vmatprep.subr.mxu0 %v4968
    %v4970 = vand.u32 %v4422, 4294901760
    %v4971 = vsub.f32 %v4422, %v4970
    %v4972 = vand.u32 %v4971, 4294901760
    %4973 = vmatpush1.msra.mxu0 %v4972
    %4974 = vmatprep.subr.mxu0 0.0
    %4975 = vmatpush1.msra.mxu0 0.0
    %4976 = vmatprep.subr.mxu0 0.0
    %4977 = vmatpush1.msra.mxu0 0.0
    %4978 = vmatprep.subr.mxu0 0.0
    %4979 = vmatpush1.msra.mxu0 0.0
    %4980 = vmatprep.subr.mxu0 0.0
    %4981 = vmatpush1.msra.mxu0 0.0
    %4982 = vmatprep.subr.mxu0 0.0
    %4983 = vmatpush1.msra.mxu0 0.0
    %4984 = vmatprep.subr.mxu0 0.0
    %4985 = vmatpush1.msra.mxu0 0.0
    %4986 = vmatprep.subr.mxu0 0.0
    %4987 = vmatpush1.msra.mxu0 0.0
    %4988 = vmatprep.subr.mxu0 0.0
    %4989 = vmatpush1.msra.mxu0 0.0
    %4990 = vmatprep.subr.mxu0 0.0
    %4991 = vmatpush1.msra.mxu0 0.0
    %4992 = vmatprep.subr.mxu0 0.0
    %4993 = vmatpush1.msra.mxu0 0.0
    %4994 = vmatprep.subr.mxu0 0.0
    %4995 = vmatpush1.msra.mxu0 0.0
    %4996 = vmatprep.subr.mxu0 0.0
    %4997 = vmatpush1.msra.mxu0 0.0
    %4998 = vmatprep.subr.mxu0 0.0
    %4999 = vmatpush1.msra.mxu0 0.0
    %5000 = vmatprep.subr.mxu0 0.0
    %5001 = vmatpush1.msra.mxu0 0.0
    %5002 = vmatprep.subr.mxu0 0.0
    %5003 = vmatpush1.msra.mxu0 0.0
    %5004 = vmatprep.subr.mxu0 0.0
    %5005 = vmatpush1.msra.mxu0 0.0
    %5006 = vmatprep.subr.mxu0 0.0
    %5007 = vmatpush1.msra.mxu0 0.0
    %5008 = vmatprep.subr.mxu0 0.0
    %5009 = vmatpush1.msra.mxu0 0.0
    %5010 = vmatprep.subr.mxu0 0.0
    %5011 = vmatpush1.msra.mxu0 0.0
    %5012 = vmatprep.subr.mxu0 0.0
    %5013 = vmatpush1.msra.mxu0 0.0
    %5014 = vmatprep.subr.mxu0 0.0
    %5015 = vmatpush1.msra.mxu0 0.0
    %5016 = vmatprep.subr.mxu0 0.0
    %5017 = vmatpush1.msra.mxu0 0.0
    %5018 = vmatprep.subr.mxu0 0.0
    %5019 = vmatpush1.msra.mxu0 0.0
    %5020 = vmatprep.subr.mxu0 0.0
    %5021 = vmatpush1.msra.mxu0 0.0
    %5022 = vmatprep.mubr.f32.mxu0 0.0
    %v5023 = vand.u32 %v2099, 4294901760
    %5024 = vmatmul.mubr.f32.gmra.mrb[0].mxu0 %v5023
    %v5025 = vpop.f32.mrb[0].mxu0
    %v5026 = vadd.f32 %v4897, %v5025
    %v5027 = vpop.f32.mrb[0].mxu0
    %v5028 = vadd.f32 %v4899, %v5027
    %5029 = vmatprep.mubr.f32.mxu0 0.0
    %v5030 = vand.u32 %v2102, 4294901760
    %5031 = vmatmul.mubr.f32.gmra.mrb[0].mxu0 %v5030
    %v5032 = vpop.f32.mrb[0].mxu0
    %v5033 = vadd.f32 %v4906, %v5032
    %v5034 = vpop.f32.mrb[0].mxu0
    %v5035 = vadd.f32 %v4908, %v5034
    %5036 = vdwg.mxu0
    %v5037 = vand.u32 %v4409, 4294901760
    %5038 = vmatprep.subr.mxu0 %v5037
    %v5039 = vand.u32 %v4408, 4294901760
    %5040 = vmatpush1.msra.mxu0 %v5039
    %v5041 = vand.u32 %v4411, 4294901760
    %5042 = vmatprep.subr.mxu0 %v5041
    %v5043 = vand.u32 %v4410, 4294901760
    %5044 = vmatpush1.msra.mxu0 %v5043
    %v5045 = vand.u32 %v4413, 4294901760
    %5046 = vmatprep.subr.mxu0 %v5045
    %v5047 = vand.u32 %v4412, 4294901760
    %5048 = vmatpush1.msra.mxu0 %v5047
    %v5049 = vand.u32 %v4415, 4294901760
    %5050 = vmatprep.subr.mxu0 %v5049
    %v5051 = vand.u32 %v4414, 4294901760
    %5052 = vmatpush1.msra.mxu0 %v5051
    %v5053 = vand.u32 %v4417, 4294901760
    %5054 = vmatprep.subr.mxu0 %v5053
    %v5055 = vand.u32 %v4416, 4294901760
    %5056 = vmatpush1.msra.mxu0 %v5055
    %v5057 = vand.u32 %v4419, 4294901760
    %5058 = vmatprep.subr.mxu0 %v5057
    %v5059 = vand.u32 %v4418, 4294901760
    %5060 = vmatpush1.msra.mxu0 %v5059
    %v5061 = vand.u32 %v4421, 4294901760
    %5062 = vmatprep.subr.mxu0 %v5061
    %v5063 = vand.u32 %v4420, 4294901760
    %5064 = vmatpush1.msra.mxu0 %v5063
    %v5065 = vand.u32 %v4423, 4294901760
    %5066 = vmatprep.subr.mxu0 %v5065
    %v5067 = vand.u32 %v4422, 4294901760
    %5068 = vmatpush1.msra.mxu0 %v5067
    %5069 = vmatprep.subr.mxu0 0.0
    %5070 = vmatpush1.msra.mxu0 0.0
    %5071 = vmatprep.subr.mxu0 0.0
    %5072 = vmatpush1.msra.mxu0 0.0
    %5073 = vmatprep.subr.mxu0 0.0
    %5074 = vmatpush1.msra.mxu0 0.0
    %5075 = vmatprep.subr.mxu0 0.0
    %5076 = vmatpush1.msra.mxu0 0.0
    %5077 = vmatprep.subr.mxu0 0.0
    %5078 = vmatpush1.msra.mxu0 0.0
    %5079 = vmatprep.subr.mxu0 0.0
    %5080 = vmatpush1.msra.mxu0 0.0
    %5081 = vmatprep.subr.mxu0 0.0
    %5082 = vmatpush1.msra.mxu0 0.0
    %5083 = vmatprep.subr.mxu0 0.0
    %5084 = vmatpush1.msra.mxu0 0.0
    %5085 = vmatprep.subr.mxu0 0.0
    %5086 = vmatpush1.msra.mxu0 0.0
    %5087 = vmatprep.subr.mxu0 0.0
    %5088 = vmatpush1.msra.mxu0 0.0
    %5089 = vmatprep.subr.mxu0 0.0
    %5090 = vmatpush1.msra.mxu0 0.0
    %5091 = vmatprep.subr.mxu0 0.0
    %5092 = vmatpush1.msra.mxu0 0.0
    %5093 = vmatprep.subr.mxu0 0.0
    %5094 = vmatpush1.msra.mxu0 0.0
    %5095 = vmatprep.subr.mxu0 0.0
    %5096 = vmatpush1.msra.mxu0 0.0
    %5097 = vmatprep.subr.mxu0 0.0
    %5098 = vmatpush1.msra.mxu0 0.0
    %5099 = vmatprep.subr.mxu0 0.0
    %5100 = vmatpush1.msra.mxu0 0.0
    %5101 = vmatprep.subr.mxu0 0.0
    %5102 = vmatpush1.msra.mxu0 0.0
    %5103 = vmatprep.subr.mxu0 0.0
    %5104 = vmatpush1.msra.mxu0 0.0
    %5105 = vmatprep.subr.mxu0 0.0
    %5106 = vmatpush1.msra.mxu0 0.0
    %5107 = vmatprep.subr.mxu0 0.0
    %5108 = vmatpush1.msra.mxu0 0.0
    %5109 = vmatprep.subr.mxu0 0.0
    %5110 = vmatpush1.msra.mxu0 0.0
    %5111 = vmatprep.subr.mxu0 0.0
    %5112 = vmatpush1.msra.mxu0 0.0
    %5113 = vmatprep.subr.mxu0 0.0
    %5114 = vmatpush1.msra.mxu0 0.0
    %5115 = vmatprep.subr.mxu0 0.0
    %5116 = vmatpush1.msra.mxu0 0.0
    %5117 = vmatprep.mubr.f32.mxu0 0.0
    %v5118 = vand.u32 %v2099, 4294901760
    %5119 = vmatmul.mubr.f32.gmra.mrb[0].mxu0 %v5118
    %v5120 = vpop.f32.mrb[0].mxu0
    %v5121 = vadd.f32 %v5026, %v5120
    %v5122 = vpop.f32.mrb[0].mxu0
    %v5123 = vadd.f32 %v5028, %v5122
    %5124 = vmatprep.mubr.f32.mxu0 0.0
    %v5125 = vand.u32 %v2102, 4294901760
    %5126 = vmatmul.mubr.f32.gmra.mrb[0].mxu0 %v5125
    %v5127 = vpop.f32.mrb[0].mxu0
    %v5128 = vadd.f32 %v5033, %v5127
    %v5129 = vpop.f32.mrb[0].mxu0
    %v5130 = vadd.f32 %v5035, %v5129
    %5131 = vdwg.mxu0
    %v5132 = vmax.f32 %v5121, %v5123
    %5133 = vmax.xlane.f32.xlu0 %v5132
    %v5134 = vpop.xlane.xlu0 %5133
    %v5135 = vmax.f32 %v5128, %v5130
    %5136 = vmax.xlane.f32.xlu0 %v5135
    %v5137 = vpop.xlane.xlu0 %5136
    %vm5138 = vcmp.eq.f32.partialorder %v5121, %v5134
    %vm5139 = vcmp.eq.f32.partialorder %v5123, %v5134
    %vm5140 = vcmp.eq.f32.partialorder %v5128, %v5137
    %vm5141 = vcmp.eq.f32.partialorder %v5130, %v5137
    %v5142 = vadd.s32 %v97, 768
    %v5143 = vadd.s32 %v2069, 768
    %v5144 = vsel %vm5138, %v5142, 1024
    %v5145 = vsel %vm5139, %v5143, 1024
    %v5146 = vsel %vm5140, %v5142, 1024
    %v5147 = vsel %vm5141, %v5143, 1024
    %vm5148 = vcmp.lt.s32.totalorder %v5144, %v5145
    %v5149 = vsel %vm5148, %v5144, %v5145
    %v5150 = vand.u32 %v5149, 65535
    %v5151 = vshra.s32 %v5149, 16
    %v5152 = vcvt.s32.f32 %v5150
    %v5153 = vcvt.s32.f32 %v5151
    %5154 = vmin.xlane.f32.xlu0 %v5153
    %v5155 = vpop.xlane.xlu0 %5154
    %vm5156 = vcmp.eq.f32.partialorder %v5153, %v5155
    %v5157 = vsel %vm5156, %v5152, inf
    %5158 = vmin.xlane.f32.xlu0 %v5157
    %v5159 = vpop.xlane.xlu0 %5158
    %v5160 = vcvt.f32.s32 %v5159
    %v5161 = vcvt.f32.s32 %v5155
    %v5162 = vshll.u32 %v5161, 16
    %v5163 = vadd.s32 %v5162, %v5160
    %vm5164 = vcmp.lt.s32.totalorder %v5146, %v5147
    %v5165 = vsel %vm5164, %v5146, %v5147
    %v5166 = vand.u32 %v5165, 65535
    %v5167 = vshra.s32 %v5165, 16
    %v5168 = vcvt.s32.f32 %v5166
    %v5169 = vcvt.s32.f32 %v5167
    %5170 = vmin.xlane.f32.xlu0 %v5169
    %v5171 = vpop.xlane.xlu0 %5170
    %vm5172 = vcmp.eq.f32.partialorder %v5169, %v5171
    %v5173 = vsel %vm5172, %v5168, inf
    %5174 = vmin.xlane.f32.xlu0 %v5173
    %v5175 = vpop.xlane.xlu0 %5174
    %v5176 = vcvt.f32.s32 %v5175
    %v5177 = vcvt.f32.s32 %v5171
    %v5178 = vshll.u32 %v5177, 16
    %v5179 = vadd.s32 %v5178, %v5176
    %vm5180 = vcmp.gt.f32.partialorder %v5134, %v4406
    %vm5181 = vcmp.gt.f32.partialorder %v5137, %v4407
    %v5182 = vsel %vm5180, %v5163, %v4404
    %v5183 = vsel %vm5181, %v5179, %v4405
    %vm5184 = vcmask 7168
    %5185 = vst.msk [vmem:[%s10] sm:$0xff] %vm5184, %v5182
    %5186 = vst.msk [vmem:[%s10 + $0x8] sm:$0xff] %vm5184, %v5183
    %5187 = vst.msk [vmem:[%s11] sm:$0xff] %vm5184, %v2067
    %5188 = vst.msk [vmem:[%s11 + $0x8] sm:$0xff] %vm5184, %v2068
    // Predicated region
    $region58: #{tpu_custom_call.1} parent=1 // pred_check
      _
    $region59: #{tpu_custom_call.1} parent=1 // pred_check_branch
      %5190 = sbr.rel (0) target = $region61
    $region60: #{tpu_custom_call.1} parent=1 // pred_region
      _
    $region61: #{tpu_custom_call.1} parent=1 // pred_fallthru
      _
    // Predicated region
    $region62: #{tpu_custom_call.1} parent=1 // pred_check
      _
    $region63: #{tpu_custom_call.1} parent=1 // pred_check_branch
      %5192 = sbr.rel (0) target = $region65
    $region64: #{tpu_custom_call.1} parent=1 // pred_region
      _
    $region65: #{tpu_custom_call.1} parent=1 // pred_fallthru
      _
    // Predicated region
    $region66: #{tpu_custom_call.1} parent=1 // pred_check
      _
    $region67: #{tpu_custom_call.1} parent=1 // pred_check_branch
      %5194 = sbr.rel (0) target = $region69
    $region68: #{tpu_custom_call.1} parent=1 // pred_region
      _
    $region69: #{tpu_custom_call.1} parent=1 // pred_fallthru
      _
    // Predicated region
    $region70: #{tpu_custom_call.1} parent=1 // pred_check
      _
    $region71: #{tpu_custom_call.1} parent=1 // pred_check_branch
      %5196 = sbr.rel (0) target = $region73
    $region72: #{tpu_custom_call.1} parent=1 // pred_region
      _
    $region73: #{tpu_custom_call.1} parent=1 // pred_fallthru
      _
    %5197 = vsyncpa [#allocation4], 1
    %5198 = vsyncpa [#allocation6], 1
    %5199 = vsyncpa [#allocation9], 1

</llo_original>
